<compile_context>
chip_gen: v7x
topology: tpu7x:2x2x1
jax: 0.10.0
libtpu: 0.0.40
codegen_flags: <defaults>
</compile_context>

<pallas_src>
import functools

import jax
import jax.numpy as jnp
from jax.experimental import pallas as pl
from jax.experimental.pallas import tpu as pltpu

DATA_DIM = 32 * 32 * 3   # 3072
H1 = 512
H2 = 128
NCLS = 10
TB = 512                 # max batch tile (rows per grid step)


def mlp_kernel(x_ref, w1_ref, b1_ref, w2_ref, b2_ref, w3_ref, b3_ref, o_ref):
    """One batch tile: fused fc1+relu, fc2+relu, fc3+softmax.

    x arrives as f32 (single HBM pass) and is cast to bf16 in-kernel; w* are bf16;
    all matmuls accumulate in f32 on the MXU; bias/ReLU/softmax epilogue runs in f32.
    """
    # in-kernel bf16 cast of the activation stream (VPU convert hides under the MXU)
    x = x_ref[...].astype(jnp.bfloat16)

    # fc1 + ReLU   (TB, 3072)bf16 @ (3072, 512)bf16 -> f32
    h1 = jnp.dot(x, w1_ref[...], preferred_element_type=jnp.float32)
    h1 = jnp.maximum(h1 + b1_ref[...], 0.0).astype(jnp.bfloat16)

    # fc2 + ReLU   (TB, 512)bf16 @ (512, 128)bf16 -> f32
    h2 = jnp.dot(h1, w2_ref[...], preferred_element_type=jnp.float32)
    h2 = jnp.maximum(h2 + b2_ref[...], 0.0).astype(jnp.bfloat16)

    # fc3          (TB, 128)bf16 @ (128, 10)bf16 -> f32
    logits = jnp.dot(h2, w3_ref[...], preferred_element_type=jnp.float32) + b3_ref[...]

    # softmax over the class axis (dim=1 in the PyTorch module), f32 throughout
    m = jnp.max(logits, axis=-1, keepdims=True)
    e = jnp.exp(logits - m)
    denom = jnp.sum(e, axis=-1, keepdims=True)
    o_ref[...] = (e * pl.reciprocal(denom, approx=True)).astype(o_ref.dtype)


def _round_up(n, m):
    return -(-n // m) * m


def _choose_tb(b, tb_max):
    """Batch tile: full batch for small B; otherwise >= 2 balanced 8-aligned blocks
    (both v7x TensorCores busy, no ragged half-size block), capped at tb_max."""
    if b <= 64:
        return b
    half = _round_up(-(-b // 2), 8)   # ceil(b/2) rounded up to the sublane multiple
    return min(tb_max, half)


@functools.partial(jax.jit, static_argnames=("tb",))
def mlp_forward(x, w1, b1, w2, b2, w3, b3, tb=TB):
    """x: any shape (B, ...) flattening to (B, 3072). Returns (B, 10) f32 softmax probs."""
    b = x.shape[0]
    # Keep x in f32: no wrapper-side bf16 cast (that would be an extra full HBM pass);
    # the reshape of a contiguous array is free.
    xf = x.reshape(b, DATA_DIM).astype(jnp.float32)

    # bf16 matmul operands (accumulation stays f32 in-kernel); biases stay f32.
    w1b = w1.astype(jnp.bfloat16)
    w2b = w2.astype(jnp.bfloat16)
    w3b = w3.astype(jnp.bfloat16)

    tb_eff = _choose_tb(b, tb)
    grid = (pl.cdiv(b, tb_eff),)   # partial last block (if any) is masked by Pallas

    out = pl.pallas_call(
        mlp_kernel,
        out_shape=jax.ShapeDtypeStruct((b, NCLS), jnp.float32),
        grid_spec=pltpu.PrefetchScalarGridSpec(
            num_scalar_prefetch=0,
            grid=grid,
            in_specs=[
                pl.BlockSpec((tb_eff, DATA_DIM), lambda i: (i, 0)),   # x tile (f32)
                pl.BlockSpec((DATA_DIM, H1), lambda i: (0, 0)),       # w1 (constant -> resident)
                pl.BlockSpec((1, H1), lambda i: (0, 0)),              # b1
                pl.BlockSpec((H1, H2), lambda i: (0, 0)),             # w2
                pl.BlockSpec((1, H2), lambda i: (0, 0)),              # b2
                pl.BlockSpec((H2, NCLS), lambda i: (0, 0)),           # w3
                pl.BlockSpec((1, NCLS), lambda i: (0, 0)),            # b3
            ],
            out_specs=pl.BlockSpec((tb_eff, NCLS), lambda i: (i, 0)),
        ),
        compiler_params=pltpu.CompilerParams(
            dimension_semantics=("parallel",),     # batch axis shards across TCs (v7x megacore)
            vmem_limit_bytes=32 * 1024 * 1024,     # TB=512 f32 x + bf16 weights ~ 20 MiB
        ),
    )(xf, w1b, b1, w2b, b2, w3b, b3)

    return out


def init_params(key):
    """Deterministic init mimicking torch.nn.Linear default (U[-1/sqrt(fan_in), +bound]).

    Weights are stored pre-transposed as (in, out); biases as (1, out); all f32."""
    ks = jax.random.split(key, 6)

    def linear(kw, kb, fan_in, fan_out):
        bound = 1.0 / jnp.sqrt(fan_in)
        w = jax.random.uniform(kw, (fan_in, fan_out), jnp.float32, -bound, bound)
        b = jax.random.uniform(kb, (1, fan_out), jnp.float32, -bound, bound)
        return w, b

    w1, b1 = linear(ks[0], ks[1], DATA_DIM, H1)
    w2, b2 = linear(ks[2], ks[3], H1, H2)
    w3, b3 = linear(ks[4], ks[5], H2, NCLS)
    return w1, b1, w2, b2, w3, b3


def _reference(x, params):
    """Plain-JAX f32 forward matching the PyTorch module."""
    w1, b1, w2, b2, w3, b3 = params
    xf = x.reshape(x.shape[0], DATA_DIM).astype(jnp.float32)
    h1 = jnp.maximum(xf @ w1 + b1, 0.0)
    h2 = jnp.maximum(h1 @ w2 + b2, 0.0)
    return jax.nn.softmax(h2 @ w3 + b3, axis=1)


if __name__ == "__main__":
    key = jax.random.PRNGKey(0)
    k_in, k_in2, k_par = jax.random.split(key, 3)
    params = init_params(k_par)

    # 1) small CIFAR-like NCHW batch (single full-batch block, grid=(1,))
    x_small = jax.random.normal(k_in, (2, 3, 32, 32), dtype=jnp.float32)
    out_small = jax.block_until_ready(mlp_forward(x_small, *params))
    assert out_small.shape == (2, NCLS)
    # bf16 matmuls -> loosened tolerances vs. the f32 reference
    assert bool(jnp.all(jnp.abs(jnp.sum(out_small, axis=1) - 1.0) < 1e-2))
    assert bool(jnp.all(jnp.abs(out_small - _reference(x_small, params)) < 2e-2))

    # 2) tiled path: B=384 -> balanced split tb=192, grid=(2,), both v7x cores get equal work
    x_big = jax.random.normal(k_in2, (384, DATA_DIM), dtype=jnp.float32)
    out_big = jax.block_until_ready(mlp_forward(x_big, *params))
    assert out_big.shape == (384, NCLS)
    assert bool(jnp.all(jnp.abs(jnp.sum(out_big, axis=1) - 1.0) < 1e-2))
    assert bool(jnp.all(jnp.abs(out_big - _reference(x_big, params)) < 2e-2))

    print("KERNEL_OK")
</pallas_src>

<mosaic_0001>
module attributes {stable_mosaic.version = 11 : i64} {
  func.func @mlp_kernel(%arg0: i32, %arg1: memref<2x3072xf32, #tpu.memory_space<vmem>>, %arg2: memref<3072x512xbf16, #tpu.memory_space<vmem>>, %arg3: memref<1x512xf32, #tpu.memory_space<vmem>>, %arg4: memref<512x128xbf16, #tpu.memory_space<vmem>>, %arg5: memref<1x128xf32, #tpu.memory_space<vmem>>, %arg6: memref<128x10xbf16, #tpu.memory_space<vmem>>, %arg7: memref<1x10xf32, #tpu.memory_space<vmem>>, %arg8: memref<2x10xf32, #tpu.memory_space<vmem>>) attributes {dimension_semantics = [#tpu.dimension_semantics<parallel>], iteration_bounds = array<i64: 1>, scalar_prefetch = 0 : i64, scratch_operands = 0 : i64, tpu.core_type = #tpu.core_type<tc>, window_params = [{transform_indices = @transform_0, window_bounds = array<i64: 2, 3072>}, {pipeline_mode = #tpu.pipeline_mode<synchronous>, transform_indices = @transform_1, window_bounds = array<i64: 3072, 512>}, {pipeline_mode = #tpu.pipeline_mode<synchronous>, transform_indices = @transform_2, window_bounds = array<i64: 1, 512>}, {pipeline_mode = #tpu.pipeline_mode<synchronous>, transform_indices = @transform_3, window_bounds = array<i64: 512, 128>}, {pipeline_mode = #tpu.pipeline_mode<synchronous>, transform_indices = @transform_4, window_bounds = array<i64: 1, 128>}, {pipeline_mode = #tpu.pipeline_mode<synchronous>, transform_indices = @transform_5, window_bounds = array<i64: 128, 10>}, {pipeline_mode = #tpu.pipeline_mode<synchronous>, transform_indices = @transform_6, window_bounds = array<i64: 1, 10>}, {transform_indices = @transform_7, window_bounds = array<i64: 2, 10>}]} {
    %c0 = arith.constant 0 : index
    %c0_0 = arith.constant 0 : index
    %0 = vector.load %arg1[%c0, %c0_0] : memref<2x3072xf32, #tpu.memory_space<vmem>>, vector<2x3072xf32>
    %1 = arith.truncf %0 : vector<2x3072xf32> to vector<2x3072xbf16>
    %c0_1 = arith.constant 0 : index
    %c0_2 = arith.constant 0 : index
    %2 = vector.load %arg2[%c0_1, %c0_2] : memref<3072x512xbf16, #tpu.memory_space<vmem>>, vector<3072x512xbf16>
    %cst = arith.constant dense<0.000000e+00> : vector<2x512xf32>
    %3 = tpu.matmul %1, %2, %cst {dimension_numbers = #tpu.dot_dimension_numbers<[1], [0], [0], [1], [0, 0, 1, 1], [], []>} : vector<2x3072xbf16>, vector<3072x512xbf16>, vector<2x512xf32> -> vector<2x512xf32>
    %c0_3 = arith.constant 0 : index
    %c0_4 = arith.constant 0 : index
    %4 = vector.load %arg3[%c0_3, %c0_4] : memref<1x512xf32, #tpu.memory_space<vmem>>, vector<1x512xf32>
    %5 = vector.broadcast %4 : vector<1x512xf32> to vector<2x512xf32>
    %6 = arith.addf %3, %5 : vector<2x512xf32>
    %cst_5 = arith.constant 0.000000e+00 : f32
    %7 = vector.broadcast %cst_5 : f32 to vector<2x512xf32>
    %8 = arith.maximumf %6, %7 : vector<2x512xf32>
    %9 = arith.truncf %8 : vector<2x512xf32> to vector<2x512xbf16>
    %c0_6 = arith.constant 0 : index
    %c0_7 = arith.constant 0 : index
    %10 = vector.load %arg4[%c0_6, %c0_7] : memref<512x128xbf16, #tpu.memory_space<vmem>>, vector<512x128xbf16>
    %cst_8 = arith.constant dense<0.000000e+00> : vector<2x128xf32>
    %11 = tpu.matmul %9, %10, %cst_8 {dimension_numbers = #tpu.dot_dimension_numbers<[1], [0], [0], [1], [0, 0, 1, 1], [], []>} : vector<2x512xbf16>, vector<512x128xbf16>, vector<2x128xf32> -> vector<2x128xf32>
    %c0_9 = arith.constant 0 : index
    %c0_10 = arith.constant 0 : index
    %12 = vector.load %arg5[%c0_9, %c0_10] : memref<1x128xf32, #tpu.memory_space<vmem>>, vector<1x128xf32>
    %13 = vector.broadcast %12 : vector<1x128xf32> to vector<2x128xf32>
    %14 = arith.addf %11, %13 : vector<2x128xf32>
    %cst_11 = arith.constant 0.000000e+00 : f32
    %15 = vector.broadcast %cst_11 : f32 to vector<2x128xf32>
    %16 = arith.maximumf %14, %15 : vector<2x128xf32>
    %17 = arith.truncf %16 : vector<2x128xf32> to vector<2x128xbf16>
    %c0_12 = arith.constant 0 : index
    %c0_13 = arith.constant 0 : index
    %18 = vector.load %arg6[%c0_12, %c0_13] : memref<128x10xbf16, #tpu.memory_space<vmem>>, vector<128x10xbf16>
    %cst_14 = arith.constant dense<0.000000e+00> : vector<2x10xf32>
    %19 = tpu.matmul %17, %18, %cst_14 {dimension_numbers = #tpu.dot_dimension_numbers<[1], [0], [0], [1], [0, 0, 1, 1], [], []>} : vector<2x128xbf16>, vector<128x10xbf16>, vector<2x10xf32> -> vector<2x10xf32>
    %c0_15 = arith.constant 0 : index
    %c0_16 = arith.constant 0 : index
    %20 = vector.load %arg7[%c0_15, %c0_16] : memref<1x10xf32, #tpu.memory_space<vmem>>, vector<1x10xf32>
    %21 = vector.broadcast %20 : vector<1x10xf32> to vector<2x10xf32>
    %22 = arith.addf %19, %21 : vector<2x10xf32>
    %cst_17 = arith.constant dense<0xFF800000> : vector<2xf32>
    %23 = vector.multi_reduction <maximumf>, %22, %cst_17 [1] : vector<2x10xf32> to vector<2xf32>
    %24 = vector.shape_cast %23 : vector<2xf32> to vector<2x1xf32>
    %25 = vector.broadcast %24 : vector<2x1xf32> to vector<2x10xf32>
    %26 = arith.subf %22, %25 : vector<2x10xf32>
    %27 = math.exp %26 : vector<2x10xf32>
    %cst_18 = arith.constant dense<0.000000e+00> : vector<2xf32>
    %28 = vector.multi_reduction <add>, %27, %cst_18 [1] : vector<2x10xf32> to vector<2xf32>
    %29 = vector.shape_cast %28 : vector<2xf32> to vector<2x1xf32>
    %30 = tpu.reciprocal %29 {approx = true} : vector<2x1xf32> -> vector<2x1xf32>
    %31 = vector.broadcast %30 : vector<2x1xf32> to vector<2x10xf32>
    %32 = arith.mulf %27, %31 : vector<2x10xf32>
    %c0_19 = arith.constant 0 : index
    %c0_20 = arith.constant 0 : index
    %33 = vector.load %arg8[%c0_19, %c0_20] : memref<2x10xf32, #tpu.memory_space<vmem>>, vector<2x10xf32>
    tpu.vector_store %arg8[%c0_19, %c0_20], %32 {strides = array<i32>} : memref<2x10xf32, #tpu.memory_space<vmem>>, vector<2x10xf32>,
    return
  }
  func.func @transform_0(%arg0: i32) -> (i32, i32) {
    %c0_i32 = arith.constant 0 : i32
    %c0_i32_0 = arith.constant 0 : i32
    return %arg0, %c0_i32 : i32, i32
  }
  func.func @transform_1(%arg0: i32) -> (i32, i32) {
    %c0_i32 = arith.constant 0 : i32
    %c0_i32_0 = arith.constant 0 : i32
    %c0_i32_1 = arith.constant 0 : i32
    return %c0_i32, %c0_i32_0 : i32, i32
  }
  func.func @transform_2(%arg0: i32) -> (i32, i32) {
    %c0_i32 = arith.constant 0 : i32
    %c0_i32_0 = arith.constant 0 : i32
    %c0_i32_1 = arith.constant 0 : i32
    return %c0_i32, %c0_i32_0 : i32, i32
  }
  func.func @transform_3(%arg0: i32) -> (i32, i32) {
    %c0_i32 = arith.constant 0 : i32
    %c0_i32_0 = arith.constant 0 : i32
    %c0_i32_1 = arith.constant 0 : i32
    return %c0_i32, %c0_i32_0 : i32, i32
  }
  func.func @transform_4(%arg0: i32) -> (i32, i32) {
    %c0_i32 = arith.constant 0 : i32
    %c0_i32_0 = arith.constant 0 : i32
    %c0_i32_1 = arith.constant 0 : i32
    return %c0_i32, %c0_i32_0 : i32, i32
  }
  func.func @transform_5(%arg0: i32) -> (i32, i32) {
    %c0_i32 = arith.constant 0 : i32
    %c0_i32_0 = arith.constant 0 : i32
    %c0_i32_1 = arith.constant 0 : i32
    return %c0_i32, %c0_i32_0 : i32, i32
  }
  func.func @transform_6(%arg0: i32) -> (i32, i32) {
    %c0_i32 = arith.constant 0 : i32
    %c0_i32_0 = arith.constant 0 : i32
    %c0_i32_1 = arith.constant 0 : i32
    return %c0_i32, %c0_i32_0 : i32, i32
  }
  func.func @transform_7(%arg0: i32) -> (i32, i32) {
    %c0_i32 = arith.constant 0 : i32
    %c0_i32_0 = arith.constant 0 : i32
    return %arg0, %c0_i32 : i32, i32
  }
}

</mosaic_0001>

<llo_original>
// kernel: mlp_forward.1
$region0: #{mlp_forward.1}
  #allocation0 [shape = 'u32[]', space=smem, size = 0x4, offset = 0x4, fixed_abs, tag = 'smem constant byte address 0x4 - core index']
  #allocation1 [shape = 'u32[144,128]{1,0:T(1,128)}', space=vmem, size = 0x12000, scoped, tag = 'internal scratch']
  %s0 = inlined_call_operand.vmem [shape: f32[2,3072], index: 0, kind: input, shape index: {}]
  %s1 = inlined_call_operand.vmem [shape: bf16[3072,512], index: 1, kind: input, shape index: {}]
  %s2 = inlined_call_operand.vmem [shape: f32[1,512], index: 2, kind: input, shape index: {}]
  %s3 = inlined_call_operand.vmem [shape: bf16[512,128], index: 3, kind: input, shape index: {}]
  %s4 = inlined_call_operand.vmem [shape: f32[1,128], index: 4, kind: input, shape index: {}]
  %s5 = inlined_call_operand.vmem [shape: bf16[128,10], index: 5, kind: input, shape index: {}]
  %s6 = inlined_call_operand.vmem [shape: f32[1,10], index: 6, kind: input, shape index: {}]
  %s7 = inlined_call_operand.hbm [shape: f32[2,10], index: 7, kind: output, shape index: {}]
  %s8 = sld [smem:[#allocation0]]
  $region38: #{mlp_forward.1} parent=0
    _
  %s10 = ssub.s32 1, %s8
  %s11 = scalar_select 0, %s10, %s8
  $region1: #{mlp_forward.1} parent=0
    #allocation2 [shape = 'u8[1024]{0}', space=vmem, size = 0x400, scoped, tag = 'output window, operand 0, single buffered']
    #allocation3 [shape = 's32[1]{0}', space=sflag, size = 0x4, scoped, tag = 'scoped memory for mlp_forward.1']
    %12 = vsyncpa [#allocation3], 0
    // Predicated region
    $region2: #{mlp_forward.1} parent=1 // pred_check
      _
    $region3: #{mlp_forward.1} parent=1 // pred_check_branch
      %14 = sbr.rel (0) target = $region5
    $region4: #{mlp_forward.1} parent=1 // pred_region
      _
    $region5: #{mlp_forward.1} parent=1 // pred_fallthru
      _
    // Predicated region
    $region6: #{mlp_forward.1} parent=1 // pred_check
      _
    $region7: #{mlp_forward.1} parent=1 // pred_check_branch
      %16 = sbr.rel (0) target = $region9
    $region8: #{mlp_forward.1} parent=1 // pred_region
      _
    $region9: #{mlp_forward.1} parent=1 // pred_fallthru
      _
    // Predicated region
    $region10: #{mlp_forward.1} parent=1 // pred_check
      _
    $region11: #{mlp_forward.1} parent=1 // pred_check_branch
      %18 = sbr.rel (0) target = $region13
    $region12: #{mlp_forward.1} parent=1 // pred_region
      _
    $region13: #{mlp_forward.1} parent=1 // pred_fallthru
      _
    // Predicated region
    $region14: #{mlp_forward.1} parent=1 // pred_check
      _
    $region15: #{mlp_forward.1} parent=1 // pred_check_branch
      %20 = sbr.rel (0) target = $region17
    $region16: #{mlp_forward.1} parent=1 // pred_region
      _
    $region17: #{mlp_forward.1} parent=1 // pred_fallthru
      _
    // Predicated region
    $region18: #{mlp_forward.1} parent=1 // pred_check
      _
    $region19: #{mlp_forward.1} parent=1 // pred_check_branch
      %22 = sbr.rel (0) target = $region21
    $region20: #{mlp_forward.1} parent=1 // pred_region
      _
    $region21: #{mlp_forward.1} parent=1 // pred_fallthru
      _
    // Predicated region
    $region22: #{mlp_forward.1} parent=1 // pred_check
      _
    $region23: #{mlp_forward.1} parent=1 // pred_check_branch
      %24 = sbr.rel (0) target = $region25
    $region24: #{mlp_forward.1} parent=1 // pred_region
      _
    $region25: #{mlp_forward.1} parent=1 // pred_fallthru
      _
    // Predicated region
    $region26: #{mlp_forward.1} parent=1 // pred_check
      _
    $region27: #{mlp_forward.1} parent=1 // pred_check_branch
      %26 = sbr.rel (0) target = $region29
    $region28: #{mlp_forward.1} parent=1 // pred_region
      _
    $region29: #{mlp_forward.1} parent=1 // pred_fallthru
      _
    %v28 = vld [vmem:[%s0] sm:$0xff]
    %v29 = vld [vmem:[%s0 + $0x8] sm:$0xff]
    %v30 = vld [vmem:[%s0 + $0x10] sm:$0xff]
    %v31 = vld [vmem:[%s0 + $0x18] sm:$0xff]
    %v32 = vld [vmem:[%s0 + $0x20] sm:$0xff]
    %v33 = vld [vmem:[%s0 + $0x28] sm:$0xff]
    %v40 = vcombine.high %v28, %v28
    %v42 = vunpack.c.l.s4 1983009808
    %v43 = vunpack.c.0.s8 %v42
    %v44 = vlaneseq
    %v45 = vshrl.u32 %v44, 7
    %v46 = vsub.s32 %v43, %v45
    %v47 = vrot.slane %v28, %v46
    %v49 = vunpack.c.l.s4 1983009808
    %v50 = vunpack.c.0.s8 %v49
    %v51 = vlaneseq
    %v52 = vshrl.u32 %v51, 7
    %v53 = vsub.s32 %v50, %v52
    %v54 = vrot.slane %v40, %v53
    %v55 = vcombine.high %v47, %v47
    %v56 = vcombine.high %v54, %v54
    %v57 = vcombine.high %v29, %v29
    %v59 = vunpack.c.l.s4 1983009808
    %v60 = vunpack.c.0.s8 %v59
    %v61 = vlaneseq
    %v62 = vshrl.u32 %v61, 7
    %v63 = vsub.s32 %v60, %v62
    %v64 = vrot.slane %v29, %v63
    %v66 = vunpack.c.l.s4 1983009808
    %v67 = vunpack.c.0.s8 %v66
    %v68 = vlaneseq
    %v69 = vshrl.u32 %v68, 7
    %v70 = vsub.s32 %v67, %v69
    %v71 = vrot.slane %v57, %v70
    %v72 = vcombine.high %v64, %v64
    %v73 = vcombine.high %v71, %v71
    %v74 = vcombine.high %v30, %v30
    %v76 = vunpack.c.l.s4 1983009808
    %v77 = vunpack.c.0.s8 %v76
    %v78 = vlaneseq
    %v79 = vshrl.u32 %v78, 7
    %v80 = vsub.s32 %v77, %v79
    %v81 = vrot.slane %v30, %v80
    %v83 = vunpack.c.l.s4 1983009808
    %v84 = vunpack.c.0.s8 %v83
    %v85 = vlaneseq
    %v86 = vshrl.u32 %v85, 7
    %v87 = vsub.s32 %v84, %v86
    %v88 = vrot.slane %v74, %v87
    %v89 = vcombine.high %v81, %v81
    %v90 = vcombine.high %v88, %v88
    %v91 = vcombine.high %v31, %v31
    %v93 = vunpack.c.l.s4 1983009808
    %v94 = vunpack.c.0.s8 %v93
    %v95 = vlaneseq
    %v96 = vshrl.u32 %v95, 7
    %v97 = vsub.s32 %v94, %v96
    %v98 = vrot.slane %v31, %v97
    %v100 = vunpack.c.l.s4 1983009808
    %v101 = vunpack.c.0.s8 %v100
    %v102 = vlaneseq
    %v103 = vshrl.u32 %v102, 7
    %v104 = vsub.s32 %v101, %v103
    %v105 = vrot.slane %v91, %v104
    %v106 = vcombine.high %v98, %v98
    %v107 = vcombine.high %v105, %v105
    %v108 = vcombine.high %v32, %v32
    %v110 = vunpack.c.l.s4 1983009808
    %v111 = vunpack.c.0.s8 %v110
    %v112 = vlaneseq
    %v113 = vshrl.u32 %v112, 7
    %v114 = vsub.s32 %v111, %v113
    %v115 = vrot.slane %v32, %v114
    %v117 = vunpack.c.l.s4 1983009808
    %v118 = vunpack.c.0.s8 %v117
    %v119 = vlaneseq
    %v120 = vshrl.u32 %v119, 7
    %v121 = vsub.s32 %v118, %v120
    %v122 = vrot.slane %v108, %v121
    %v123 = vcombine.high %v115, %v115
    %v124 = vcombine.high %v122, %v122
    %v125 = vcombine.high %v33, %v33
    %v127 = vunpack.c.l.s4 1983009808
    %v128 = vunpack.c.0.s8 %v127
    %v129 = vlaneseq
    %v130 = vshrl.u32 %v129, 7
    %v131 = vsub.s32 %v128, %v130
    %v132 = vrot.slane %v33, %v131
    %v134 = vunpack.c.l.s4 1983009808
    %v135 = vunpack.c.0.s8 %v134
    %v136 = vlaneseq
    %v137 = vshrl.u32 %v136, 7
    %v138 = vsub.s32 %v135, %v137
    %v139 = vrot.slane %v125, %v138
    %v140 = vcombine.high %v132, %v132
    %v141 = vcombine.high %v139, %v139
    %v166 = vpack.c.bf16 %v47, %v47
    %v167 = vpack.c.bf16 %v55, %v55
    %v168 = vpack.c.bf16 %v54, %v54
    %v169 = vpack.c.bf16 %v56, %v56
    %v170 = vpack.c.bf16 %v64, %v64
    %v171 = vpack.c.bf16 %v72, %v72
    %v172 = vpack.c.bf16 %v71, %v71
    %v173 = vpack.c.bf16 %v73, %v73
    %v174 = vpack.c.bf16 %v81, %v81
    %v175 = vpack.c.bf16 %v89, %v89
    %v176 = vpack.c.bf16 %v88, %v88
    %v177 = vpack.c.bf16 %v90, %v90
    %v178 = vpack.c.bf16 %v98, %v98
    %v179 = vpack.c.bf16 %v106, %v106
    %v180 = vpack.c.bf16 %v105, %v105
    %v181 = vpack.c.bf16 %v107, %v107
    %v182 = vpack.c.bf16 %v115, %v115
    %v183 = vpack.c.bf16 %v123, %v123
    %v184 = vpack.c.bf16 %v122, %v122
    %v185 = vpack.c.bf16 %v124, %v124
    %v186 = vpack.c.bf16 %v132, %v132
    %v187 = vpack.c.bf16 %v140, %v140
    %v188 = vpack.c.bf16 %v139, %v139
    %v189 = vpack.c.bf16 %v141, %v141
    %v190 = vld [vmem:[%s1] sm:$0xff]
    %v191 = vld [vmem:[%s1 + $0x8] sm:$0xff]
    %v192 = vld [vmem:[%s1 + $0x10] sm:$0xff]
    %v193 = vld [vmem:[%s1 + $0x18] sm:$0xff]
    %v194 = vld [vmem:[%s1 + $0x20] sm:$0xff]
    %v195 = vld [vmem:[%s1 + $0x28] sm:$0xff]
    %v196 = vld [vmem:[%s1 + $0x30] sm:$0xff]
    %v197 = vld [vmem:[%s1 + $0x38] sm:$0xff]
    %v198 = vld [vmem:[%s1 + $0x40] sm:$0xff]
    %v199 = vld [vmem:[%s1 + $0x48] sm:$0xff]
    %v200 = vld [vmem:[%s1 + $0x50] sm:$0xff]
    %v201 = vld [vmem:[%s1 + $0x58] sm:$0xff]
    %v202 = vld [vmem:[%s1 + $0x60] sm:$0xff]
    %v203 = vld [vmem:[%s1 + $0x68] sm:$0xff]
    %v204 = vld [vmem:[%s1 + $0x70] sm:$0xff]
    %v205 = vld [vmem:[%s1 + $0x78] sm:$0xff]
    %v206 = vld [vmem:[%s1 + $0x80] sm:$0xff]
    %v207 = vld [vmem:[%s1 + $0x88] sm:$0xff]
    %v208 = vld [vmem:[%s1 + $0x90] sm:$0xff]
    %v209 = vld [vmem:[%s1 + $0x98] sm:$0xff]
    %v210 = vld [vmem:[%s1 + $0xa0] sm:$0xff]
    %v211 = vld [vmem:[%s1 + $0xa8] sm:$0xff]
    %v212 = vld [vmem:[%s1 + $0xb0] sm:$0xff]
    %v213 = vld [vmem:[%s1 + $0xb8] sm:$0xff]
    %v214 = vld [vmem:[%s1 + $0xc0] sm:$0xff]
    %v215 = vld [vmem:[%s1 + $0xc8] sm:$0xff]
    %v216 = vld [vmem:[%s1 + $0xd0] sm:$0xff]
    %v217 = vld [vmem:[%s1 + $0xd8] sm:$0xff]
    %v218 = vld [vmem:[%s1 + $0xe0] sm:$0xff]
    %v219 = vld [vmem:[%s1 + $0xe8] sm:$0xff]
    %v220 = vld [vmem:[%s1 + $0xf0] sm:$0xff]
    %v221 = vld [vmem:[%s1 + $0xf8] sm:$0xff]
    %v222 = vld [vmem:[%s1 + $0x100] sm:$0xff]
    %v223 = vld [vmem:[%s1 + $0x108] sm:$0xff]
    %v224 = vld [vmem:[%s1 + $0x110] sm:$0xff]
    %v225 = vld [vmem:[%s1 + $0x118] sm:$0xff]
    %v226 = vld [vmem:[%s1 + $0x120] sm:$0xff]
    %v227 = vld [vmem:[%s1 + $0x128] sm:$0xff]
    %v228 = vld [vmem:[%s1 + $0x130] sm:$0xff]
    %v229 = vld [vmem:[%s1 + $0x138] sm:$0xff]
    %v230 = vld [vmem:[%s1 + $0x140] sm:$0xff]
    %v231 = vld [vmem:[%s1 + $0x148] sm:$0xff]
    %v232 = vld [vmem:[%s1 + $0x150] sm:$0xff]
    %v233 = vld [vmem:[%s1 + $0x158] sm:$0xff]
    %v234 = vld [vmem:[%s1 + $0x160] sm:$0xff]
    %v235 = vld [vmem:[%s1 + $0x168] sm:$0xff]
    %v236 = vld [vmem:[%s1 + $0x170] sm:$0xff]
    %v237 = vld [vmem:[%s1 + $0x178] sm:$0xff]
    %v238 = vld [vmem:[%s1 + $0x180] sm:$0xff]
    %v239 = vld [vmem:[%s1 + $0x188] sm:$0xff]
    %v240 = vld [vmem:[%s1 + $0x190] sm:$0xff]
    %v241 = vld [vmem:[%s1 + $0x198] sm:$0xff]
    %v242 = vld [vmem:[%s1 + $0x1a0] sm:$0xff]
    %v243 = vld [vmem:[%s1 + $0x1a8] sm:$0xff]
    %v244 = vld [vmem:[%s1 + $0x1b0] sm:$0xff]
    %v245 = vld [vmem:[%s1 + $0x1b8] sm:$0xff]
    %v246 = vld [vmem:[%s1 + $0x1c0] sm:$0xff]
    %v247 = vld [vmem:[%s1 + $0x1c8] sm:$0xff]
    %v248 = vld [vmem:[%s1 + $0x1d0] sm:$0xff]
    %v249 = vld [vmem:[%s1 + $0x1d8] sm:$0xff]
    %v250 = vld [vmem:[%s1 + $0x1e0] sm:$0xff]
    %v251 = vld [vmem:[%s1 + $0x1e8] sm:$0xff]
    %v252 = vld [vmem:[%s1 + $0x1f0] sm:$0xff]
    %v253 = vld [vmem:[%s1 + $0x1f8] sm:$0xff]
    %v254 = vld [vmem:[%s1 + $0x200] sm:$0xff]
    %v255 = vld [vmem:[%s1 + $0x208] sm:$0xff]
    %v256 = vld [vmem:[%s1 + $0x210] sm:$0xff]
    %v257 = vld [vmem:[%s1 + $0x218] sm:$0xff]
    %v258 = vld [vmem:[%s1 + $0x220] sm:$0xff]
    %v259 = vld [vmem:[%s1 + $0x228] sm:$0xff]
    %v260 = vld [vmem:[%s1 + $0x230] sm:$0xff]
    %v261 = vld [vmem:[%s1 + $0x238] sm:$0xff]
    %v262 = vld [vmem:[%s1 + $0x240] sm:$0xff]
    %v263 = vld [vmem:[%s1 + $0x248] sm:$0xff]
    %v264 = vld [vmem:[%s1 + $0x250] sm:$0xff]
    %v265 = vld [vmem:[%s1 + $0x258] sm:$0xff]
    %v266 = vld [vmem:[%s1 + $0x260] sm:$0xff]
    %v267 = vld [vmem:[%s1 + $0x268] sm:$0xff]
    %v268 = vld [vmem:[%s1 + $0x270] sm:$0xff]
    %v269 = vld [vmem:[%s1 + $0x278] sm:$0xff]
    %v270 = vld [vmem:[%s1 + $0x280] sm:$0xff]
    %v271 = vld [vmem:[%s1 + $0x288] sm:$0xff]
    %v272 = vld [vmem:[%s1 + $0x290] sm:$0xff]
    %v273 = vld [vmem:[%s1 + $0x298] sm:$0xff]
    %v274 = vld [vmem:[%s1 + $0x2a0] sm:$0xff]
    %v275 = vld [vmem:[%s1 + $0x2a8] sm:$0xff]
    %v276 = vld [vmem:[%s1 + $0x2b0] sm:$0xff]
    %v277 = vld [vmem:[%s1 + $0x2b8] sm:$0xff]
    %v278 = vld [vmem:[%s1 + $0x2c0] sm:$0xff]
    %v279 = vld [vmem:[%s1 + $0x2c8] sm:$0xff]
    %v280 = vld [vmem:[%s1 + $0x2d0] sm:$0xff]
    %v281 = vld [vmem:[%s1 + $0x2d8] sm:$0xff]
    %v282 = vld [vmem:[%s1 + $0x2e0] sm:$0xff]
    %v283 = vld [vmem:[%s1 + $0x2e8] sm:$0xff]
    %v284 = vld [vmem:[%s1 + $0x2f0] sm:$0xff]
    %v285 = vld [vmem:[%s1 + $0x2f8] sm:$0xff]
    %v286 = vld [vmem:[%s1 + $0x300] sm:$0xff]
    %v287 = vld [vmem:[%s1 + $0x308] sm:$0xff]
    %v288 = vld [vmem:[%s1 + $0x310] sm:$0xff]
    %v289 = vld [vmem:[%s1 + $0x318] sm:$0xff]
    %v290 = vld [vmem:[%s1 + $0x320] sm:$0xff]
    %v291 = vld [vmem:[%s1 + $0x328] sm:$0xff]
    %v292 = vld [vmem:[%s1 + $0x330] sm:$0xff]
    %v293 = vld [vmem:[%s1 + $0x338] sm:$0xff]
    %v294 = vld [vmem:[%s1 + $0x340] sm:$0xff]
    %v295 = vld [vmem:[%s1 + $0x348] sm:$0xff]
    %v296 = vld [vmem:[%s1 + $0x350] sm:$0xff]
    %v297 = vld [vmem:[%s1 + $0x358] sm:$0xff]
    %v298 = vld [vmem:[%s1 + $0x360] sm:$0xff]
    %v299 = vld [vmem:[%s1 + $0x368] sm:$0xff]
    %v300 = vld [vmem:[%s1 + $0x370] sm:$0xff]
    %v301 = vld [vmem:[%s1 + $0x378] sm:$0xff]
    %v302 = vld [vmem:[%s1 + $0x380] sm:$0xff]
    %v303 = vld [vmem:[%s1 + $0x388] sm:$0xff]
    %v304 = vld [vmem:[%s1 + $0x390] sm:$0xff]
    %v305 = vld [vmem:[%s1 + $0x398] sm:$0xff]
    %v306 = vld [vmem:[%s1 + $0x3a0] sm:$0xff]
    %v307 = vld [vmem:[%s1 + $0x3a8] sm:$0xff]
    %v308 = vld [vmem:[%s1 + $0x3b0] sm:$0xff]
    %v309 = vld [vmem:[%s1 + $0x3b8] sm:$0xff]
    %v310 = vld [vmem:[%s1 + $0x3c0] sm:$0xff]
    %v311 = vld [vmem:[%s1 + $0x3c8] sm:$0xff]
    %v312 = vld [vmem:[%s1 + $0x3d0] sm:$0xff]
    %v313 = vld [vmem:[%s1 + $0x3d8] sm:$0xff]
    %v314 = vld [vmem:[%s1 + $0x3e0] sm:$0xff]
    %v315 = vld [vmem:[%s1 + $0x3e8] sm:$0xff]
    %v316 = vld [vmem:[%s1 + $0x3f0] sm:$0xff]
    %v317 = vld [vmem:[%s1 + $0x3f8] sm:$0xff]
    %v318 = vld [vmem:[%s1 + $0x400] sm:$0xff]
    %v319 = vld [vmem:[%s1 + $0x408] sm:$0xff]
    %v320 = vld [vmem:[%s1 + $0x410] sm:$0xff]
    %v321 = vld [vmem:[%s1 + $0x418] sm:$0xff]
    %v322 = vld [vmem:[%s1 + $0x420] sm:$0xff]
    %v323 = vld [vmem:[%s1 + $0x428] sm:$0xff]
    %v324 = vld [vmem:[%s1 + $0x430] sm:$0xff]
    %v325 = vld [vmem:[%s1 + $0x438] sm:$0xff]
    %v326 = vld [vmem:[%s1 + $0x440] sm:$0xff]
    %v327 = vld [vmem:[%s1 + $0x448] sm:$0xff]
    %v328 = vld [vmem:[%s1 + $0x450] sm:$0xff]
    %v329 = vld [vmem:[%s1 + $0x458] sm:$0xff]
    %v330 = vld [vmem:[%s1 + $0x460] sm:$0xff]
    %v331 = vld [vmem:[%s1 + $0x468] sm:$0xff]
    %v332 = vld [vmem:[%s1 + $0x470] sm:$0xff]
    %v333 = vld [vmem:[%s1 + $0x478] sm:$0xff]
    %v334 = vld [vmem:[%s1 + $0x480] sm:$0xff]
    %v335 = vld [vmem:[%s1 + $0x488] sm:$0xff]
    %v336 = vld [vmem:[%s1 + $0x490] sm:$0xff]
    %v337 = vld [vmem:[%s1 + $0x498] sm:$0xff]
    %v338 = vld [vmem:[%s1 + $0x4a0] sm:$0xff]
    %v339 = vld [vmem:[%s1 + $0x4a8] sm:$0xff]
    %v340 = vld [vmem:[%s1 + $0x4b0] sm:$0xff]
    %v341 = vld [vmem:[%s1 + $0x4b8] sm:$0xff]
    %v342 = vld [vmem:[%s1 + $0x4c0] sm:$0xff]
    %v343 = vld [vmem:[%s1 + $0x4c8] sm:$0xff]
    %v344 = vld [vmem:[%s1 + $0x4d0] sm:$0xff]
    %v345 = vld [vmem:[%s1 + $0x4d8] sm:$0xff]
    %v346 = vld [vmem:[%s1 + $0x4e0] sm:$0xff]
    %v347 = vld [vmem:[%s1 + $0x4e8] sm:$0xff]
    %v348 = vld [vmem:[%s1 + $0x4f0] sm:$0xff]
    %v349 = vld [vmem:[%s1 + $0x4f8] sm:$0xff]
    %v350 = vld [vmem:[%s1 + $0x500] sm:$0xff]
    %v351 = vld [vmem:[%s1 + $0x508] sm:$0xff]
    %v352 = vld [vmem:[%s1 + $0x510] sm:$0xff]
    %v353 = vld [vmem:[%s1 + $0x518] sm:$0xff]
    %v354 = vld [vmem:[%s1 + $0x520] sm:$0xff]
    %v355 = vld [vmem:[%s1 + $0x528] sm:$0xff]
    %v356 = vld [vmem:[%s1 + $0x530] sm:$0xff]
    %v357 = vld [vmem:[%s1 + $0x538] sm:$0xff]
    %v358 = vld [vmem:[%s1 + $0x540] sm:$0xff]
    %v359 = vld [vmem:[%s1 + $0x548] sm:$0xff]
    %v360 = vld [vmem:[%s1 + $0x550] sm:$0xff]
    %v361 = vld [vmem:[%s1 + $0x558] sm:$0xff]
    %v362 = vld [vmem:[%s1 + $0x560] sm:$0xff]
    %v363 = vld [vmem:[%s1 + $0x568] sm:$0xff]
    %v364 = vld [vmem:[%s1 + $0x570] sm:$0xff]
    %v365 = vld [vmem:[%s1 + $0x578] sm:$0xff]
    %v366 = vld [vmem:[%s1 + $0x580] sm:$0xff]
    %v367 = vld [vmem:[%s1 + $0x588] sm:$0xff]
    %v368 = vld [vmem:[%s1 + $0x590] sm:$0xff]
    %v369 = vld [vmem:[%s1 + $0x598] sm:$0xff]
    %v370 = vld [vmem:[%s1 + $0x5a0] sm:$0xff]
    %v371 = vld [vmem:[%s1 + $0x5a8] sm:$0xff]
    %v372 = vld [vmem:[%s1 + $0x5b0] sm:$0xff]
    %v373 = vld [vmem:[%s1 + $0x5b8] sm:$0xff]
    %v374 = vld [vmem:[%s1 + $0x5c0] sm:$0xff]
    %v375 = vld [vmem:[%s1 + $0x5c8] sm:$0xff]
    %v376 = vld [vmem:[%s1 + $0x5d0] sm:$0xff]
    %v377 = vld [vmem:[%s1 + $0x5d8] sm:$0xff]
    %v378 = vld [vmem:[%s1 + $0x5e0] sm:$0xff]
    %v379 = vld [vmem:[%s1 + $0x5e8] sm:$0xff]
    %v380 = vld [vmem:[%s1 + $0x5f0] sm:$0xff]
    %v381 = vld [vmem:[%s1 + $0x5f8] sm:$0xff]
    %v382 = vld [vmem:[%s1 + $0x600] sm:$0xff]
    %v383 = vld [vmem:[%s1 + $0x608] sm:$0xff]
    %v384 = vld [vmem:[%s1 + $0x610] sm:$0xff]
    %v385 = vld [vmem:[%s1 + $0x618] sm:$0xff]
    %v386 = vld [vmem:[%s1 + $0x620] sm:$0xff]
    %v387 = vld [vmem:[%s1 + $0x628] sm:$0xff]
    %v388 = vld [vmem:[%s1 + $0x630] sm:$0xff]
    %v389 = vld [vmem:[%s1 + $0x638] sm:$0xff]
    %v390 = vld [vmem:[%s1 + $0x640] sm:$0xff]
    %v391 = vld [vmem:[%s1 + $0x648] sm:$0xff]
    %v392 = vld [vmem:[%s1 + $0x650] sm:$0xff]
    %v393 = vld [vmem:[%s1 + $0x658] sm:$0xff]
    %v394 = vld [vmem:[%s1 + $0x660] sm:$0xff]
    %v395 = vld [vmem:[%s1 + $0x668] sm:$0xff]
    %v396 = vld [vmem:[%s1 + $0x670] sm:$0xff]
    %v397 = vld [vmem:[%s1 + $0x678] sm:$0xff]
    %v398 = vld [vmem:[%s1 + $0x680] sm:$0xff]
    %v399 = vld [vmem:[%s1 + $0x688] sm:$0xff]
    %v400 = vld [vmem:[%s1 + $0x690] sm:$0xff]
    %v401 = vld [vmem:[%s1 + $0x698] sm:$0xff]
    %v402 = vld [vmem:[%s1 + $0x6a0] sm:$0xff]
    %v403 = vld [vmem:[%s1 + $0x6a8] sm:$0xff]
    %v404 = vld [vmem:[%s1 + $0x6b0] sm:$0xff]
    %v405 = vld [vmem:[%s1 + $0x6b8] sm:$0xff]
    %v406 = vld [vmem:[%s1 + $0x6c0] sm:$0xff]
    %v407 = vld [vmem:[%s1 + $0x6c8] sm:$0xff]
    %v408 = vld [vmem:[%s1 + $0x6d0] sm:$0xff]
    %v409 = vld [vmem:[%s1 + $0x6d8] sm:$0xff]
    %v410 = vld [vmem:[%s1 + $0x6e0] sm:$0xff]
    %v411 = vld [vmem:[%s1 + $0x6e8] sm:$0xff]
    %v412 = vld [vmem:[%s1 + $0x6f0] sm:$0xff]
    %v413 = vld [vmem:[%s1 + $0x6f8] sm:$0xff]
    %v414 = vld [vmem:[%s1 + $0x700] sm:$0xff]
    %v415 = vld [vmem:[%s1 + $0x708] sm:$0xff]
    %v416 = vld [vmem:[%s1 + $0x710] sm:$0xff]
    %v417 = vld [vmem:[%s1 + $0x718] sm:$0xff]
    %v418 = vld [vmem:[%s1 + $0x720] sm:$0xff]
    %v419 = vld [vmem:[%s1 + $0x728] sm:$0xff]
    %v420 = vld [vmem:[%s1 + $0x730] sm:$0xff]
    %v421 = vld [vmem:[%s1 + $0x738] sm:$0xff]
    %v422 = vld [vmem:[%s1 + $0x740] sm:$0xff]
    %v423 = vld [vmem:[%s1 + $0x748] sm:$0xff]
    %v424 = vld [vmem:[%s1 + $0x750] sm:$0xff]
    %v425 = vld [vmem:[%s1 + $0x758] sm:$0xff]
    %v426 = vld [vmem:[%s1 + $0x760] sm:$0xff]
    %v427 = vld [vmem:[%s1 + $0x768] sm:$0xff]
    %v428 = vld [vmem:[%s1 + $0x770] sm:$0xff]
    %v429 = vld [vmem:[%s1 + $0x778] sm:$0xff]
    %v430 = vld [vmem:[%s1 + $0x780] sm:$0xff]
    %v431 = vld [vmem:[%s1 + $0x788] sm:$0xff]
    %v432 = vld [vmem:[%s1 + $0x790] sm:$0xff]
    %v433 = vld [vmem:[%s1 + $0x798] sm:$0xff]
    %v434 = vld [vmem:[%s1 + $0x7a0] sm:$0xff]
    %v435 = vld [vmem:[%s1 + $0x7a8] sm:$0xff]
    %v436 = vld [vmem:[%s1 + $0x7b0] sm:$0xff]
    %v437 = vld [vmem:[%s1 + $0x7b8] sm:$0xff]
    %v438 = vld [vmem:[%s1 + $0x7c0] sm:$0xff]
    %v439 = vld [vmem:[%s1 + $0x7c8] sm:$0xff]
    %v440 = vld [vmem:[%s1 + $0x7d0] sm:$0xff]
    %v441 = vld [vmem:[%s1 + $0x7d8] sm:$0xff]
    %v442 = vld [vmem:[%s1 + $0x7e0] sm:$0xff]
    %v443 = vld [vmem:[%s1 + $0x7e8] sm:$0xff]
    %v444 = vld [vmem:[%s1 + $0x7f0] sm:$0xff]
    %v445 = vld [vmem:[%s1 + $0x7f8] sm:$0xff]
    %v446 = vld [vmem:[%s1 + $0x800] sm:$0xff]
    %v447 = vld [vmem:[%s1 + $0x808] sm:$0xff]
    %v448 = vld [vmem:[%s1 + $0x810] sm:$0xff]
    %v449 = vld [vmem:[%s1 + $0x818] sm:$0xff]
    %v450 = vld [vmem:[%s1 + $0x820] sm:$0xff]
    %v451 = vld [vmem:[%s1 + $0x828] sm:$0xff]
    %v452 = vld [vmem:[%s1 + $0x830] sm:$0xff]
    %v453 = vld [vmem:[%s1 + $0x838] sm:$0xff]
    %v454 = vld [vmem:[%s1 + $0x840] sm:$0xff]
    %v455 = vld [vmem:[%s1 + $0x848] sm:$0xff]
    %v456 = vld [vmem:[%s1 + $0x850] sm:$0xff]
    %v457 = vld [vmem:[%s1 + $0x858] sm:$0xff]
    %v458 = vld [vmem:[%s1 + $0x860] sm:$0xff]
    %v459 = vld [vmem:[%s1 + $0x868] sm:$0xff]
    %v460 = vld [vmem:[%s1 + $0x870] sm:$0xff]
    %v461 = vld [vmem:[%s1 + $0x878] sm:$0xff]
    %v462 = vld [vmem:[%s1 + $0x880] sm:$0xff]
    %v463 = vld [vmem:[%s1 + $0x888] sm:$0xff]
    %v464 = vld [vmem:[%s1 + $0x890] sm:$0xff]
    %v465 = vld [vmem:[%s1 + $0x898] sm:$0xff]
    %v466 = vld [vmem:[%s1 + $0x8a0] sm:$0xff]
    %v467 = vld [vmem:[%s1 + $0x8a8] sm:$0xff]
    %v468 = vld [vmem:[%s1 + $0x8b0] sm:$0xff]
    %v469 = vld [vmem:[%s1 + $0x8b8] sm:$0xff]
    %v470 = vld [vmem:[%s1 + $0x8c0] sm:$0xff]
    %v471 = vld [vmem:[%s1 + $0x8c8] sm:$0xff]
    %v472 = vld [vmem:[%s1 + $0x8d0] sm:$0xff]
    %v473 = vld [vmem:[%s1 + $0x8d8] sm:$0xff]
    %v474 = vld [vmem:[%s1 + $0x8e0] sm:$0xff]
    %v475 = vld [vmem:[%s1 + $0x8e8] sm:$0xff]
    %v476 = vld [vmem:[%s1 + $0x8f0] sm:$0xff]
    %v477 = vld [vmem:[%s1 + $0x8f8] sm:$0xff]
    %v478 = vld [vmem:[%s1 + $0x900] sm:$0xff]
    %v479 = vld [vmem:[%s1 + $0x908] sm:$0xff]
    %v480 = vld [vmem:[%s1 + $0x910] sm:$0xff]
    %v481 = vld [vmem:[%s1 + $0x918] sm:$0xff]
    %v482 = vld [vmem:[%s1 + $0x920] sm:$0xff]
    %v483 = vld [vmem:[%s1 + $0x928] sm:$0xff]
    %v484 = vld [vmem:[%s1 + $0x930] sm:$0xff]
    %v485 = vld [vmem:[%s1 + $0x938] sm:$0xff]
    %v486 = vld [vmem:[%s1 + $0x940] sm:$0xff]
    %v487 = vld [vmem:[%s1 + $0x948] sm:$0xff]
    %v488 = vld [vmem:[%s1 + $0x950] sm:$0xff]
    %v489 = vld [vmem:[%s1 + $0x958] sm:$0xff]
    %v490 = vld [vmem:[%s1 + $0x960] sm:$0xff]
    %v491 = vld [vmem:[%s1 + $0x968] sm:$0xff]
    %v492 = vld [vmem:[%s1 + $0x970] sm:$0xff]
    %v493 = vld [vmem:[%s1 + $0x978] sm:$0xff]
    %v494 = vld [vmem:[%s1 + $0x980] sm:$0xff]
    %v495 = vld [vmem:[%s1 + $0x988] sm:$0xff]
    %v496 = vld [vmem:[%s1 + $0x990] sm:$0xff]
    %v497 = vld [vmem:[%s1 + $0x998] sm:$0xff]
    %v498 = vld [vmem:[%s1 + $0x9a0] sm:$0xff]
    %v499 = vld [vmem:[%s1 + $0x9a8] sm:$0xff]
    %v500 = vld [vmem:[%s1 + $0x9b0] sm:$0xff]
    %v501 = vld [vmem:[%s1 + $0x9b8] sm:$0xff]
    %v502 = vld [vmem:[%s1 + $0x9c0] sm:$0xff]
    %v503 = vld [vmem:[%s1 + $0x9c8] sm:$0xff]
    %v504 = vld [vmem:[%s1 + $0x9d0] sm:$0xff]
    %v505 = vld [vmem:[%s1 + $0x9d8] sm:$0xff]
    %v506 = vld [vmem:[%s1 + $0x9e0] sm:$0xff]
    %v507 = vld [vmem:[%s1 + $0x9e8] sm:$0xff]
    %v508 = vld [vmem:[%s1 + $0x9f0] sm:$0xff]
    %v509 = vld [vmem:[%s1 + $0x9f8] sm:$0xff]
    %v510 = vld [vmem:[%s1 + $0xa00] sm:$0xff]
    %v511 = vld [vmem:[%s1 + $0xa08] sm:$0xff]
    %v512 = vld [vmem:[%s1 + $0xa10] sm:$0xff]
    %v513 = vld [vmem:[%s1 + $0xa18] sm:$0xff]
    %v514 = vld [vmem:[%s1 + $0xa20] sm:$0xff]
    %v515 = vld [vmem:[%s1 + $0xa28] sm:$0xff]
    %v516 = vld [vmem:[%s1 + $0xa30] sm:$0xff]
    %v517 = vld [vmem:[%s1 + $0xa38] sm:$0xff]
    %v518 = vld [vmem:[%s1 + $0xa40] sm:$0xff]
    %v519 = vld [vmem:[%s1 + $0xa48] sm:$0xff]
    %v520 = vld [vmem:[%s1 + $0xa50] sm:$0xff]
    %v521 = vld [vmem:[%s1 + $0xa58] sm:$0xff]
    %v522 = vld [vmem:[%s1 + $0xa60] sm:$0xff]
    %v523 = vld [vmem:[%s1 + $0xa68] sm:$0xff]
    %v524 = vld [vmem:[%s1 + $0xa70] sm:$0xff]
    %v525 = vld [vmem:[%s1 + $0xa78] sm:$0xff]
    %v526 = vld [vmem:[%s1 + $0xa80] sm:$0xff]
    %v527 = vld [vmem:[%s1 + $0xa88] sm:$0xff]
    %v528 = vld [vmem:[%s1 + $0xa90] sm:$0xff]
    %v529 = vld [vmem:[%s1 + $0xa98] sm:$0xff]
    %v530 = vld [vmem:[%s1 + $0xaa0] sm:$0xff]
    %v531 = vld [vmem:[%s1 + $0xaa8] sm:$0xff]
    %v532 = vld [vmem:[%s1 + $0xab0] sm:$0xff]
    %v533 = vld [vmem:[%s1 + $0xab8] sm:$0xff]
    %v534 = vld [vmem:[%s1 + $0xac0] sm:$0xff]
    %v535 = vld [vmem:[%s1 + $0xac8] sm:$0xff]
    %v536 = vld [vmem:[%s1 + $0xad0] sm:$0xff]
    %v537 = vld [vmem:[%s1 + $0xad8] sm:$0xff]
    %v538 = vld [vmem:[%s1 + $0xae0] sm:$0xff]
    %v539 = vld [vmem:[%s1 + $0xae8] sm:$0xff]
    %v540 = vld [vmem:[%s1 + $0xaf0] sm:$0xff]
    %v541 = vld [vmem:[%s1 + $0xaf8] sm:$0xff]
    %v542 = vld [vmem:[%s1 + $0xb00] sm:$0xff]
    %v543 = vld [vmem:[%s1 + $0xb08] sm:$0xff]
    %v544 = vld [vmem:[%s1 + $0xb10] sm:$0xff]
    %v545 = vld [vmem:[%s1 + $0xb18] sm:$0xff]
    %v546 = vld [vmem:[%s1 + $0xb20] sm:$0xff]
    %v547 = vld [vmem:[%s1 + $0xb28] sm:$0xff]
    %v548 = vld [vmem:[%s1 + $0xb30] sm:$0xff]
    %v549 = vld [vmem:[%s1 + $0xb38] sm:$0xff]
    %v550 = vld [vmem:[%s1 + $0xb40] sm:$0xff]
    %v551 = vld [vmem:[%s1 + $0xb48] sm:$0xff]
    %v552 = vld [vmem:[%s1 + $0xb50] sm:$0xff]
    %v553 = vld [vmem:[%s1 + $0xb58] sm:$0xff]
    %v554 = vld [vmem:[%s1 + $0xb60] sm:$0xff]
    %v555 = vld [vmem:[%s1 + $0xb68] sm:$0xff]
    %v556 = vld [vmem:[%s1 + $0xb70] sm:$0xff]
    %v557 = vld [vmem:[%s1 + $0xb78] sm:$0xff]
    %v558 = vld [vmem:[%s1 + $0xb80] sm:$0xff]
    %v559 = vld [vmem:[%s1 + $0xb88] sm:$0xff]
    %v560 = vld [vmem:[%s1 + $0xb90] sm:$0xff]
    %v561 = vld [vmem:[%s1 + $0xb98] sm:$0xff]
    %v562 = vld [vmem:[%s1 + $0xba0] sm:$0xff]
    %v563 = vld [vmem:[%s1 + $0xba8] sm:$0xff]
    %v564 = vld [vmem:[%s1 + $0xbb0] sm:$0xff]
    %v565 = vld [vmem:[%s1 + $0xbb8] sm:$0xff]
    %v566 = vld [vmem:[%s1 + $0xbc0] sm:$0xff]
    %v567 = vld [vmem:[%s1 + $0xbc8] sm:$0xff]
    %v568 = vld [vmem:[%s1 + $0xbd0] sm:$0xff]
    %v569 = vld [vmem:[%s1 + $0xbd8] sm:$0xff]
    %v570 = vld [vmem:[%s1 + $0xbe0] sm:$0xff]
    %v571 = vld [vmem:[%s1 + $0xbe8] sm:$0xff]
    %v572 = vld [vmem:[%s1 + $0xbf0] sm:$0xff]
    %v573 = vld [vmem:[%s1 + $0xbf8] sm:$0xff]
    %v574 = vld [vmem:[%s1 + $0xc00] sm:$0xff]
    %v575 = vld [vmem:[%s1 + $0xc08] sm:$0xff]
    %v576 = vld [vmem:[%s1 + $0xc10] sm:$0xff]
    %v577 = vld [vmem:[%s1 + $0xc18] sm:$0xff]
    %v578 = vld [vmem:[%s1 + $0xc20] sm:$0xff]
    %v579 = vld [vmem:[%s1 + $0xc28] sm:$0xff]
    %v580 = vld [vmem:[%s1 + $0xc30] sm:$0xff]
    %v581 = vld [vmem:[%s1 + $0xc38] sm:$0xff]
    %v582 = vld [vmem:[%s1 + $0xc40] sm:$0xff]
    %v583 = vld [vmem:[%s1 + $0xc48] sm:$0xff]
    %v584 = vld [vmem:[%s1 + $0xc50] sm:$0xff]
    %v585 = vld [vmem:[%s1 + $0xc58] sm:$0xff]
    %v586 = vld [vmem:[%s1 + $0xc60] sm:$0xff]
    %v587 = vld [vmem:[%s1 + $0xc68] sm:$0xff]
    %v588 = vld [vmem:[%s1 + $0xc70] sm:$0xff]
    %v589 = vld [vmem:[%s1 + $0xc78] sm:$0xff]
    %v590 = vld [vmem:[%s1 + $0xc80] sm:$0xff]
    %v591 = vld [vmem:[%s1 + $0xc88] sm:$0xff]
    %v592 = vld [vmem:[%s1 + $0xc90] sm:$0xff]
    %v593 = vld [vmem:[%s1 + $0xc98] sm:$0xff]
    %v594 = vld [vmem:[%s1 + $0xca0] sm:$0xff]
    %v595 = vld [vmem:[%s1 + $0xca8] sm:$0xff]
    %v596 = vld [vmem:[%s1 + $0xcb0] sm:$0xff]
    %v597 = vld [vmem:[%s1 + $0xcb8] sm:$0xff]
    %v598 = vld [vmem:[%s1 + $0xcc0] sm:$0xff]
    %v599 = vld [vmem:[%s1 + $0xcc8] sm:$0xff]
    %v600 = vld [vmem:[%s1 + $0xcd0] sm:$0xff]
    %v601 = vld [vmem:[%s1 + $0xcd8] sm:$0xff]
    %v602 = vld [vmem:[%s1 + $0xce0] sm:$0xff]
    %v603 = vld [vmem:[%s1 + $0xce8] sm:$0xff]
    %v604 = vld [vmem:[%s1 + $0xcf0] sm:$0xff]
    %v605 = vld [vmem:[%s1 + $0xcf8] sm:$0xff]
    %v606 = vld [vmem:[%s1 + $0xd00] sm:$0xff]
    %v607 = vld [vmem:[%s1 + $0xd08] sm:$0xff]
    %v608 = vld [vmem:[%s1 + $0xd10] sm:$0xff]
    %v609 = vld [vmem:[%s1 + $0xd18] sm:$0xff]
    %v610 = vld [vmem:[%s1 + $0xd20] sm:$0xff]
    %v611 = vld [vmem:[%s1 + $0xd28] sm:$0xff]
    %v612 = vld [vmem:[%s1 + $0xd30] sm:$0xff]
    %v613 = vld [vmem:[%s1 + $0xd38] sm:$0xff]
    %v614 = vld [vmem:[%s1 + $0xd40] sm:$0xff]
    %v615 = vld [vmem:[%s1 + $0xd48] sm:$0xff]
    %v616 = vld [vmem:[%s1 + $0xd50] sm:$0xff]
    %v617 = vld [vmem:[%s1 + $0xd58] sm:$0xff]
    %v618 = vld [vmem:[%s1 + $0xd60] sm:$0xff]
    %v619 = vld [vmem:[%s1 + $0xd68] sm:$0xff]
    %v620 = vld [vmem:[%s1 + $0xd70] sm:$0xff]
    %v621 = vld [vmem:[%s1 + $0xd78] sm:$0xff]
    %v622 = vld [vmem:[%s1 + $0xd80] sm:$0xff]
    %v623 = vld [vmem:[%s1 + $0xd88] sm:$0xff]
    %v624 = vld [vmem:[%s1 + $0xd90] sm:$0xff]
    %v625 = vld [vmem:[%s1 + $0xd98] sm:$0xff]
    %v626 = vld [vmem:[%s1 + $0xda0] sm:$0xff]
    %v627 = vld [vmem:[%s1 + $0xda8] sm:$0xff]
    %v628 = vld [vmem:[%s1 + $0xdb0] sm:$0xff]
    %v629 = vld [vmem:[%s1 + $0xdb8] sm:$0xff]
    %v630 = vld [vmem:[%s1 + $0xdc0] sm:$0xff]
    %v631 = vld [vmem:[%s1 + $0xdc8] sm:$0xff]
    %v632 = vld [vmem:[%s1 + $0xdd0] sm:$0xff]
    %v633 = vld [vmem:[%s1 + $0xdd8] sm:$0xff]
    %v634 = vld [vmem:[%s1 + $0xde0] sm:$0xff]
    %v635 = vld [vmem:[%s1 + $0xde8] sm:$0xff]
    %v636 = vld [vmem:[%s1 + $0xdf0] sm:$0xff]
    %v637 = vld [vmem:[%s1 + $0xdf8] sm:$0xff]
    %v638 = vld [vmem:[%s1 + $0xe00] sm:$0xff]
    %v639 = vld [vmem:[%s1 + $0xe08] sm:$0xff]
    %v640 = vld [vmem:[%s1 + $0xe10] sm:$0xff]
    %v641 = vld [vmem:[%s1 + $0xe18] sm:$0xff]
    %v642 = vld [vmem:[%s1 + $0xe20] sm:$0xff]
    %v643 = vld [vmem:[%s1 + $0xe28] sm:$0xff]
    %v644 = vld [vmem:[%s1 + $0xe30] sm:$0xff]
    %v645 = vld [vmem:[%s1 + $0xe38] sm:$0xff]
    %v646 = vld [vmem:[%s1 + $0xe40] sm:$0xff]
    %v647 = vld [vmem:[%s1 + $0xe48] sm:$0xff]
    %v648 = vld [vmem:[%s1 + $0xe50] sm:$0xff]
    %v649 = vld [vmem:[%s1 + $0xe58] sm:$0xff]
    %v650 = vld [vmem:[%s1 + $0xe60] sm:$0xff]
    %v651 = vld [vmem:[%s1 + $0xe68] sm:$0xff]
    %v652 = vld [vmem:[%s1 + $0xe70] sm:$0xff]
    %v653 = vld [vmem:[%s1 + $0xe78] sm:$0xff]
    %v654 = vld [vmem:[%s1 + $0xe80] sm:$0xff]
    %v655 = vld [vmem:[%s1 + $0xe88] sm:$0xff]
    %v656 = vld [vmem:[%s1 + $0xe90] sm:$0xff]
    %v657 = vld [vmem:[%s1 + $0xe98] sm:$0xff]
    %v658 = vld [vmem:[%s1 + $0xea0] sm:$0xff]
    %v659 = vld [vmem:[%s1 + $0xea8] sm:$0xff]
    %v660 = vld [vmem:[%s1 + $0xeb0] sm:$0xff]
    %v661 = vld [vmem:[%s1 + $0xeb8] sm:$0xff]
    %v662 = vld [vmem:[%s1 + $0xec0] sm:$0xff]
    %v663 = vld [vmem:[%s1 + $0xec8] sm:$0xff]
    %v664 = vld [vmem:[%s1 + $0xed0] sm:$0xff]
    %v665 = vld [vmem:[%s1 + $0xed8] sm:$0xff]
    %v666 = vld [vmem:[%s1 + $0xee0] sm:$0xff]
    %v667 = vld [vmem:[%s1 + $0xee8] sm:$0xff]
    %v668 = vld [vmem:[%s1 + $0xef0] sm:$0xff]
    %v669 = vld [vmem:[%s1 + $0xef8] sm:$0xff]
    %v670 = vld [vmem:[%s1 + $0xf00] sm:$0xff]
    %v671 = vld [vmem:[%s1 + $0xf08] sm:$0xff]
    %v672 = vld [vmem:[%s1 + $0xf10] sm:$0xff]
    %v673 = vld [vmem:[%s1 + $0xf18] sm:$0xff]
    %v674 = vld [vmem:[%s1 + $0xf20] sm:$0xff]
    %v675 = vld [vmem:[%s1 + $0xf28] sm:$0xff]
    %v676 = vld [vmem:[%s1 + $0xf30] sm:$0xff]
    %v677 = vld [vmem:[%s1 + $0xf38] sm:$0xff]
    %v678 = vld [vmem:[%s1 + $0xf40] sm:$0xff]
    %v679 = vld [vmem:[%s1 + $0xf48] sm:$0xff]
    %v680 = vld [vmem:[%s1 + $0xf50] sm:$0xff]
    %v681 = vld [vmem:[%s1 + $0xf58] sm:$0xff]
    %v682 = vld [vmem:[%s1 + $0xf60] sm:$0xff]
    %v683 = vld [vmem:[%s1 + $0xf68] sm:$0xff]
    %v684 = vld [vmem:[%s1 + $0xf70] sm:$0xff]
    %v685 = vld [vmem:[%s1 + $0xf78] sm:$0xff]
    %v686 = vld [vmem:[%s1 + $0xf80] sm:$0xff]
    %v687 = vld [vmem:[%s1 + $0xf88] sm:$0xff]
    %v688 = vld [vmem:[%s1 + $0xf90] sm:$0xff]
    %v689 = vld [vmem:[%s1 + $0xf98] sm:$0xff]
    %v690 = vld [vmem:[%s1 + $0xfa0] sm:$0xff]
    %v691 = vld [vmem:[%s1 + $0xfa8] sm:$0xff]
    %v692 = vld [vmem:[%s1 + $0xfb0] sm:$0xff]
    %v693 = vld [vmem:[%s1 + $0xfb8] sm:$0xff]
    %v694 = vld [vmem:[%s1 + $0xfc0] sm:$0xff]
    %v695 = vld [vmem:[%s1 + $0xfc8] sm:$0xff]
    %v696 = vld [vmem:[%s1 + $0xfd0] sm:$0xff]
    %v697 = vld [vmem:[%s1 + $0xfd8] sm:$0xff]
    %v698 = vld [vmem:[%s1 + $0xfe0] sm:$0xff]
    %v699 = vld [vmem:[%s1 + $0xfe8] sm:$0xff]
    %v700 = vld [vmem:[%s1 + $0xff0] sm:$0xff]
    %v701 = vld [vmem:[%s1 + $0xff8] sm:$0xff]
    %v702 = vld [vmem:[%s1 + $0x1000] sm:$0xff]
    %v703 = vld [vmem:[%s1 + $0x1008] sm:$0xff]
    %v704 = vld [vmem:[%s1 + $0x1010] sm:$0xff]
    %v705 = vld [vmem:[%s1 + $0x1018] sm:$0xff]
    %v706 = vld [vmem:[%s1 + $0x1020] sm:$0xff]
    %v707 = vld [vmem:[%s1 + $0x1028] sm:$0xff]
    %v708 = vld [vmem:[%s1 + $0x1030] sm:$0xff]
    %v709 = vld [vmem:[%s1 + $0x1038] sm:$0xff]
    %v710 = vld [vmem:[%s1 + $0x1040] sm:$0xff]
    %v711 = vld [vmem:[%s1 + $0x1048] sm:$0xff]
    %v712 = vld [vmem:[%s1 + $0x1050] sm:$0xff]
    %v713 = vld [vmem:[%s1 + $0x1058] sm:$0xff]
    %v714 = vld [vmem:[%s1 + $0x1060] sm:$0xff]
    %v715 = vld [vmem:[%s1 + $0x1068] sm:$0xff]
    %v716 = vld [vmem:[%s1 + $0x1070] sm:$0xff]
    %v717 = vld [vmem:[%s1 + $0x1078] sm:$0xff]
    %v718 = vld [vmem:[%s1 + $0x1080] sm:$0xff]
    %v719 = vld [vmem:[%s1 + $0x1088] sm:$0xff]
    %v720 = vld [vmem:[%s1 + $0x1090] sm:$0xff]
    %v721 = vld [vmem:[%s1 + $0x1098] sm:$0xff]
    %v722 = vld [vmem:[%s1 + $0x10a0] sm:$0xff]
    %v723 = vld [vmem:[%s1 + $0x10a8] sm:$0xff]
    %v724 = vld [vmem:[%s1 + $0x10b0] sm:$0xff]
    %v725 = vld [vmem:[%s1 + $0x10b8] sm:$0xff]
    %v726 = vld [vmem:[%s1 + $0x10c0] sm:$0xff]
    %v727 = vld [vmem:[%s1 + $0x10c8] sm:$0xff]
    %v728 = vld [vmem:[%s1 + $0x10d0] sm:$0xff]
    %v729 = vld [vmem:[%s1 + $0x10d8] sm:$0xff]
    %v730 = vld [vmem:[%s1 + $0x10e0] sm:$0xff]
    %v731 = vld [vmem:[%s1 + $0x10e8] sm:$0xff]
    %v732 = vld [vmem:[%s1 + $0x10f0] sm:$0xff]
    %v733 = vld [vmem:[%s1 + $0x10f8] sm:$0xff]
    %v734 = vld [vmem:[%s1 + $0x1100] sm:$0xff]
    %v735 = vld [vmem:[%s1 + $0x1108] sm:$0xff]
    %v736 = vld [vmem:[%s1 + $0x1110] sm:$0xff]
    %v737 = vld [vmem:[%s1 + $0x1118] sm:$0xff]
    %v738 = vld [vmem:[%s1 + $0x1120] sm:$0xff]
    %v739 = vld [vmem:[%s1 + $0x1128] sm:$0xff]
    %v740 = vld [vmem:[%s1 + $0x1130] sm:$0xff]
    %v741 = vld [vmem:[%s1 + $0x1138] sm:$0xff]
    %v742 = vld [vmem:[%s1 + $0x1140] sm:$0xff]
    %v743 = vld [vmem:[%s1 + $0x1148] sm:$0xff]
    %v744 = vld [vmem:[%s1 + $0x1150] sm:$0xff]
    %v745 = vld [vmem:[%s1 + $0x1158] sm:$0xff]
    %v746 = vld [vmem:[%s1 + $0x1160] sm:$0xff]
    %v747 = vld [vmem:[%s1 + $0x1168] sm:$0xff]
    %v748 = vld [vmem:[%s1 + $0x1170] sm:$0xff]
    %v749 = vld [vmem:[%s1 + $0x1178] sm:$0xff]
    %v750 = vld [vmem:[%s1 + $0x1180] sm:$0xff]
    %v751 = vld [vmem:[%s1 + $0x1188] sm:$0xff]
    %v752 = vld [vmem:[%s1 + $0x1190] sm:$0xff]
    %v753 = vld [vmem:[%s1 + $0x1198] sm:$0xff]
    %v754 = vld [vmem:[%s1 + $0x11a0] sm:$0xff]
    %v755 = vld [vmem:[%s1 + $0x11a8] sm:$0xff]
    %v756 = vld [vmem:[%s1 + $0x11b0] sm:$0xff]
    %v757 = vld [vmem:[%s1 + $0x11b8] sm:$0xff]
    %v758 = vld [vmem:[%s1 + $0x11c0] sm:$0xff]
    %v759 = vld [vmem:[%s1 + $0x11c8] sm:$0xff]
    %v760 = vld [vmem:[%s1 + $0x11d0] sm:$0xff]
    %v761 = vld [vmem:[%s1 + $0x11d8] sm:$0xff]
    %v762 = vld [vmem:[%s1 + $0x11e0] sm:$0xff]
    %v763 = vld [vmem:[%s1 + $0x11e8] sm:$0xff]
    %v764 = vld [vmem:[%s1 + $0x11f0] sm:$0xff]
    %v765 = vld [vmem:[%s1 + $0x11f8] sm:$0xff]
    %v766 = vld [vmem:[%s1 + $0x1200] sm:$0xff]
    %v767 = vld [vmem:[%s1 + $0x1208] sm:$0xff]
    %v768 = vld [vmem:[%s1 + $0x1210] sm:$0xff]
    %v769 = vld [vmem:[%s1 + $0x1218] sm:$0xff]
    %v770 = vld [vmem:[%s1 + $0x1220] sm:$0xff]
    %v771 = vld [vmem:[%s1 + $0x1228] sm:$0xff]
    %v772 = vld [vmem:[%s1 + $0x1230] sm:$0xff]
    %v773 = vld [vmem:[%s1 + $0x1238] sm:$0xff]
    %v774 = vld [vmem:[%s1 + $0x1240] sm:$0xff]
    %v775 = vld [vmem:[%s1 + $0x1248] sm:$0xff]
    %v776 = vld [vmem:[%s1 + $0x1250] sm:$0xff]
    %v777 = vld [vmem:[%s1 + $0x1258] sm:$0xff]
    %v778 = vld [vmem:[%s1 + $0x1260] sm:$0xff]
    %v779 = vld [vmem:[%s1 + $0x1268] sm:$0xff]
    %v780 = vld [vmem:[%s1 + $0x1270] sm:$0xff]
    %v781 = vld [vmem:[%s1 + $0x1278] sm:$0xff]
    %v782 = vld [vmem:[%s1 + $0x1280] sm:$0xff]
    %v783 = vld [vmem:[%s1 + $0x1288] sm:$0xff]
    %v784 = vld [vmem:[%s1 + $0x1290] sm:$0xff]
    %v785 = vld [vmem:[%s1 + $0x1298] sm:$0xff]
    %v786 = vld [vmem:[%s1 + $0x12a0] sm:$0xff]
    %v787 = vld [vmem:[%s1 + $0x12a8] sm:$0xff]
    %v788 = vld [vmem:[%s1 + $0x12b0] sm:$0xff]
    %v789 = vld [vmem:[%s1 + $0x12b8] sm:$0xff]
    %v790 = vld [vmem:[%s1 + $0x12c0] sm:$0xff]
    %v791 = vld [vmem:[%s1 + $0x12c8] sm:$0xff]
    %v792 = vld [vmem:[%s1 + $0x12d0] sm:$0xff]
    %v793 = vld [vmem:[%s1 + $0x12d8] sm:$0xff]
    %v794 = vld [vmem:[%s1 + $0x12e0] sm:$0xff]
    %v795 = vld [vmem:[%s1 + $0x12e8] sm:$0xff]
    %v796 = vld [vmem:[%s1 + $0x12f0] sm:$0xff]
    %v797 = vld [vmem:[%s1 + $0x12f8] sm:$0xff]
    %v798 = vld [vmem:[%s1 + $0x1300] sm:$0xff]
    %v799 = vld [vmem:[%s1 + $0x1308] sm:$0xff]
    %v800 = vld [vmem:[%s1 + $0x1310] sm:$0xff]
    %v801 = vld [vmem:[%s1 + $0x1318] sm:$0xff]
    %v802 = vld [vmem:[%s1 + $0x1320] sm:$0xff]
    %v803 = vld [vmem:[%s1 + $0x1328] sm:$0xff]
    %v804 = vld [vmem:[%s1 + $0x1330] sm:$0xff]
    %v805 = vld [vmem:[%s1 + $0x1338] sm:$0xff]
    %v806 = vld [vmem:[%s1 + $0x1340] sm:$0xff]
    %v807 = vld [vmem:[%s1 + $0x1348] sm:$0xff]
    %v808 = vld [vmem:[%s1 + $0x1350] sm:$0xff]
    %v809 = vld [vmem:[%s1 + $0x1358] sm:$0xff]
    %v810 = vld [vmem:[%s1 + $0x1360] sm:$0xff]
    %v811 = vld [vmem:[%s1 + $0x1368] sm:$0xff]
    %v812 = vld [vmem:[%s1 + $0x1370] sm:$0xff]
    %v813 = vld [vmem:[%s1 + $0x1378] sm:$0xff]
    %v814 = vld [vmem:[%s1 + $0x1380] sm:$0xff]
    %v815 = vld [vmem:[%s1 + $0x1388] sm:$0xff]
    %v816 = vld [vmem:[%s1 + $0x1390] sm:$0xff]
    %v817 = vld [vmem:[%s1 + $0x1398] sm:$0xff]
    %v818 = vld [vmem:[%s1 + $0x13a0] sm:$0xff]
    %v819 = vld [vmem:[%s1 + $0x13a8] sm:$0xff]
    %v820 = vld [vmem:[%s1 + $0x13b0] sm:$0xff]
    %v821 = vld [vmem:[%s1 + $0x13b8] sm:$0xff]
    %v822 = vld [vmem:[%s1 + $0x13c0] sm:$0xff]
    %v823 = vld [vmem:[%s1 + $0x13c8] sm:$0xff]
    %v824 = vld [vmem:[%s1 + $0x13d0] sm:$0xff]
    %v825 = vld [vmem:[%s1 + $0x13d8] sm:$0xff]
    %v826 = vld [vmem:[%s1 + $0x13e0] sm:$0xff]
    %v827 = vld [vmem:[%s1 + $0x13e8] sm:$0xff]
    %v828 = vld [vmem:[%s1 + $0x13f0] sm:$0xff]
    %v829 = vld [vmem:[%s1 + $0x13f8] sm:$0xff]
    %v830 = vld [vmem:[%s1 + $0x1400] sm:$0xff]
    %v831 = vld [vmem:[%s1 + $0x1408] sm:$0xff]
    %v832 = vld [vmem:[%s1 + $0x1410] sm:$0xff]
    %v833 = vld [vmem:[%s1 + $0x1418] sm:$0xff]
    %v834 = vld [vmem:[%s1 + $0x1420] sm:$0xff]
    %v835 = vld [vmem:[%s1 + $0x1428] sm:$0xff]
    %v836 = vld [vmem:[%s1 + $0x1430] sm:$0xff]
    %v837 = vld [vmem:[%s1 + $0x1438] sm:$0xff]
    %v838 = vld [vmem:[%s1 + $0x1440] sm:$0xff]
    %v839 = vld [vmem:[%s1 + $0x1448] sm:$0xff]
    %v840 = vld [vmem:[%s1 + $0x1450] sm:$0xff]
    %v841 = vld [vmem:[%s1 + $0x1458] sm:$0xff]
    %v842 = vld [vmem:[%s1 + $0x1460] sm:$0xff]
    %v843 = vld [vmem:[%s1 + $0x1468] sm:$0xff]
    %v844 = vld [vmem:[%s1 + $0x1470] sm:$0xff]
    %v845 = vld [vmem:[%s1 + $0x1478] sm:$0xff]
    %v846 = vld [vmem:[%s1 + $0x1480] sm:$0xff]
    %v847 = vld [vmem:[%s1 + $0x1488] sm:$0xff]
    %v848 = vld [vmem:[%s1 + $0x1490] sm:$0xff]
    %v849 = vld [vmem:[%s1 + $0x1498] sm:$0xff]
    %v850 = vld [vmem:[%s1 + $0x14a0] sm:$0xff]
    %v851 = vld [vmem:[%s1 + $0x14a8] sm:$0xff]
    %v852 = vld [vmem:[%s1 + $0x14b0] sm:$0xff]
    %v853 = vld [vmem:[%s1 + $0x14b8] sm:$0xff]
    %v854 = vld [vmem:[%s1 + $0x14c0] sm:$0xff]
    %v855 = vld [vmem:[%s1 + $0x14c8] sm:$0xff]
    %v856 = vld [vmem:[%s1 + $0x14d0] sm:$0xff]
    %v857 = vld [vmem:[%s1 + $0x14d8] sm:$0xff]
    %v858 = vld [vmem:[%s1 + $0x14e0] sm:$0xff]
    %v859 = vld [vmem:[%s1 + $0x14e8] sm:$0xff]
    %v860 = vld [vmem:[%s1 + $0x14f0] sm:$0xff]
    %v861 = vld [vmem:[%s1 + $0x14f8] sm:$0xff]
    %v862 = vld [vmem:[%s1 + $0x1500] sm:$0xff]
    %v863 = vld [vmem:[%s1 + $0x1508] sm:$0xff]
    %v864 = vld [vmem:[%s1 + $0x1510] sm:$0xff]
    %v865 = vld [vmem:[%s1 + $0x1518] sm:$0xff]
    %v866 = vld [vmem:[%s1 + $0x1520] sm:$0xff]
    %v867 = vld [vmem:[%s1 + $0x1528] sm:$0xff]
    %v868 = vld [vmem:[%s1 + $0x1530] sm:$0xff]
    %v869 = vld [vmem:[%s1 + $0x1538] sm:$0xff]
    %v870 = vld [vmem:[%s1 + $0x1540] sm:$0xff]
    %v871 = vld [vmem:[%s1 + $0x1548] sm:$0xff]
    %v872 = vld [vmem:[%s1 + $0x1550] sm:$0xff]
    %v873 = vld [vmem:[%s1 + $0x1558] sm:$0xff]
    %v874 = vld [vmem:[%s1 + $0x1560] sm:$0xff]
    %v875 = vld [vmem:[%s1 + $0x1568] sm:$0xff]
    %v876 = vld [vmem:[%s1 + $0x1570] sm:$0xff]
    %v877 = vld [vmem:[%s1 + $0x1578] sm:$0xff]
    %v878 = vld [vmem:[%s1 + $0x1580] sm:$0xff]
    %v879 = vld [vmem:[%s1 + $0x1588] sm:$0xff]
    %v880 = vld [vmem:[%s1 + $0x1590] sm:$0xff]
    %v881 = vld [vmem:[%s1 + $0x1598] sm:$0xff]
    %v882 = vld [vmem:[%s1 + $0x15a0] sm:$0xff]
    %v883 = vld [vmem:[%s1 + $0x15a8] sm:$0xff]
    %v884 = vld [vmem:[%s1 + $0x15b0] sm:$0xff]
    %v885 = vld [vmem:[%s1 + $0x15b8] sm:$0xff]
    %v886 = vld [vmem:[%s1 + $0x15c0] sm:$0xff]
    %v887 = vld [vmem:[%s1 + $0x15c8] sm:$0xff]
    %v888 = vld [vmem:[%s1 + $0x15d0] sm:$0xff]
    %v889 = vld [vmem:[%s1 + $0x15d8] sm:$0xff]
    %v890 = vld [vmem:[%s1 + $0x15e0] sm:$0xff]
    %v891 = vld [vmem:[%s1 + $0x15e8] sm:$0xff]
    %v892 = vld [vmem:[%s1 + $0x15f0] sm:$0xff]
    %v893 = vld [vmem:[%s1 + $0x15f8] sm:$0xff]
    %v894 = vld [vmem:[%s1 + $0x1600] sm:$0xff]
    %v895 = vld [vmem:[%s1 + $0x1608] sm:$0xff]
    %v896 = vld [vmem:[%s1 + $0x1610] sm:$0xff]
    %v897 = vld [vmem:[%s1 + $0x1618] sm:$0xff]
    %v898 = vld [vmem:[%s1 + $0x1620] sm:$0xff]
    %v899 = vld [vmem:[%s1 + $0x1628] sm:$0xff]
    %v900 = vld [vmem:[%s1 + $0x1630] sm:$0xff]
    %v901 = vld [vmem:[%s1 + $0x1638] sm:$0xff]
    %v902 = vld [vmem:[%s1 + $0x1640] sm:$0xff]
    %v903 = vld [vmem:[%s1 + $0x1648] sm:$0xff]
    %v904 = vld [vmem:[%s1 + $0x1650] sm:$0xff]
    %v905 = vld [vmem:[%s1 + $0x1658] sm:$0xff]
    %v906 = vld [vmem:[%s1 + $0x1660] sm:$0xff]
    %v907 = vld [vmem:[%s1 + $0x1668] sm:$0xff]
    %v908 = vld [vmem:[%s1 + $0x1670] sm:$0xff]
    %v909 = vld [vmem:[%s1 + $0x1678] sm:$0xff]
    %v910 = vld [vmem:[%s1 + $0x1680] sm:$0xff]
    %v911 = vld [vmem:[%s1 + $0x1688] sm:$0xff]
    %v912 = vld [vmem:[%s1 + $0x1690] sm:$0xff]
    %v913 = vld [vmem:[%s1 + $0x1698] sm:$0xff]
    %v914 = vld [vmem:[%s1 + $0x16a0] sm:$0xff]
    %v915 = vld [vmem:[%s1 + $0x16a8] sm:$0xff]
    %v916 = vld [vmem:[%s1 + $0x16b0] sm:$0xff]
    %v917 = vld [vmem:[%s1 + $0x16b8] sm:$0xff]
    %v918 = vld [vmem:[%s1 + $0x16c0] sm:$0xff]
    %v919 = vld [vmem:[%s1 + $0x16c8] sm:$0xff]
    %v920 = vld [vmem:[%s1 + $0x16d0] sm:$0xff]
    %v921 = vld [vmem:[%s1 + $0x16d8] sm:$0xff]
    %v922 = vld [vmem:[%s1 + $0x16e0] sm:$0xff]
    %v923 = vld [vmem:[%s1 + $0x16e8] sm:$0xff]
    %v924 = vld [vmem:[%s1 + $0x16f0] sm:$0xff]
    %v925 = vld [vmem:[%s1 + $0x16f8] sm:$0xff]
    %v926 = vld [vmem:[%s1 + $0x1700] sm:$0xff]
    %v927 = vld [vmem:[%s1 + $0x1708] sm:$0xff]
    %v928 = vld [vmem:[%s1 + $0x1710] sm:$0xff]
    %v929 = vld [vmem:[%s1 + $0x1718] sm:$0xff]
    %v930 = vld [vmem:[%s1 + $0x1720] sm:$0xff]
    %v931 = vld [vmem:[%s1 + $0x1728] sm:$0xff]
    %v932 = vld [vmem:[%s1 + $0x1730] sm:$0xff]
    %v933 = vld [vmem:[%s1 + $0x1738] sm:$0xff]
    %v934 = vld [vmem:[%s1 + $0x1740] sm:$0xff]
    %v935 = vld [vmem:[%s1 + $0x1748] sm:$0xff]
    %v936 = vld [vmem:[%s1 + $0x1750] sm:$0xff]
    %v937 = vld [vmem:[%s1 + $0x1758] sm:$0xff]
    %v938 = vld [vmem:[%s1 + $0x1760] sm:$0xff]
    %v939 = vld [vmem:[%s1 + $0x1768] sm:$0xff]
    %v940 = vld [vmem:[%s1 + $0x1770] sm:$0xff]
    %v941 = vld [vmem:[%s1 + $0x1778] sm:$0xff]
    %v942 = vld [vmem:[%s1 + $0x1780] sm:$0xff]
    %v943 = vld [vmem:[%s1 + $0x1788] sm:$0xff]
    %v944 = vld [vmem:[%s1 + $0x1790] sm:$0xff]
    %v945 = vld [vmem:[%s1 + $0x1798] sm:$0xff]
    %v946 = vld [vmem:[%s1 + $0x17a0] sm:$0xff]
    %v947 = vld [vmem:[%s1 + $0x17a8] sm:$0xff]
    %v948 = vld [vmem:[%s1 + $0x17b0] sm:$0xff]
    %v949 = vld [vmem:[%s1 + $0x17b8] sm:$0xff]
    %v950 = vld [vmem:[%s1 + $0x17c0] sm:$0xff]
    %v951 = vld [vmem:[%s1 + $0x17c8] sm:$0xff]
    %v952 = vld [vmem:[%s1 + $0x17d0] sm:$0xff]
    %v953 = vld [vmem:[%s1 + $0x17d8] sm:$0xff]
    %v954 = vld [vmem:[%s1 + $0x17e0] sm:$0xff]
    %v955 = vld [vmem:[%s1 + $0x17e8] sm:$0xff]
    %v956 = vld [vmem:[%s1 + $0x17f0] sm:$0xff]
    %v957 = vld [vmem:[%s1 + $0x17f8] sm:$0xff]
    %v958 = vld [vmem:[%s2] sm:$0xf]
    %v960 = vlaneseq
    %v961 = vshrl.u32 %v960, 7
    %v962 = vsub.s32 0, %v961
    %v963 = vrot.slane %v958, %v962
    %v964 = vlaneseq
    %v965 = vshrl.u32 %v964, 7
    %v966 = vsub.s32 1, %v965
    %v967 = vrot.slane %v958, %v966
    %v968 = vlaneseq
    %v969 = vshrl.u32 %v968, 7
    %v970 = vsub.s32 2, %v969
    %v971 = vrot.slane %v958, %v970
    %v972 = vlaneseq
    %v973 = vshrl.u32 %v972, 7
    %v974 = vsub.s32 3, %v973
    %v975 = vrot.slane %v958, %v974
    %v1748 = vunpack.c.l.b16 %v190
    %v1749 = vunpack.c.h.b16 %v190
    %v1750 = vunpack.c.l.b16 %v191
    %v1751 = vunpack.c.h.b16 %v191
    %v1752 = vunpack.c.l.b16 %v192
    %v1753 = vunpack.c.h.b16 %v192
    %v1754 = vunpack.c.l.b16 %v193
    %v1755 = vunpack.c.h.b16 %v193
    %v1756 = vunpack.c.l.b16 %v194
    %v1757 = vunpack.c.h.b16 %v194
    %v1758 = vunpack.c.l.b16 %v195
    %v1759 = vunpack.c.h.b16 %v195
    %v1760 = vunpack.c.l.b16 %v196
    %v1761 = vunpack.c.h.b16 %v196
    %v1762 = vunpack.c.l.b16 %v197
    %v1763 = vunpack.c.h.b16 %v197
    %v1764 = vunpack.c.l.b16 %v198
    %v1765 = vunpack.c.h.b16 %v198
    %v1766 = vunpack.c.l.b16 %v199
    %v1767 = vunpack.c.h.b16 %v199
    %v1768 = vunpack.c.l.b16 %v200
    %v1769 = vunpack.c.h.b16 %v200
    %v1770 = vunpack.c.l.b16 %v201
    %v1771 = vunpack.c.h.b16 %v201
    %v1772 = vunpack.c.l.b16 %v202
    %v1773 = vunpack.c.h.b16 %v202
    %v1774 = vunpack.c.l.b16 %v203
    %v1775 = vunpack.c.h.b16 %v203
    %v1776 = vunpack.c.l.b16 %v204
    %v1777 = vunpack.c.h.b16 %v204
    %v1778 = vunpack.c.l.b16 %v205
    %v1779 = vunpack.c.h.b16 %v205
    %v1780 = vunpack.c.l.b16 %v206
    %v1781 = vunpack.c.h.b16 %v206
    %v1782 = vunpack.c.l.b16 %v207
    %v1783 = vunpack.c.h.b16 %v207
    %v1784 = vunpack.c.l.b16 %v208
    %v1785 = vunpack.c.h.b16 %v208
    %v1786 = vunpack.c.l.b16 %v209
    %v1787 = vunpack.c.h.b16 %v209
    %v1788 = vunpack.c.l.b16 %v210
    %v1789 = vunpack.c.h.b16 %v210
    %v1790 = vunpack.c.l.b16 %v211
    %v1791 = vunpack.c.h.b16 %v211
    %v1792 = vunpack.c.l.b16 %v212
    %v1793 = vunpack.c.h.b16 %v212
    %v1794 = vunpack.c.l.b16 %v213
    %v1795 = vunpack.c.h.b16 %v213
    %v1796 = vunpack.c.l.b16 %v214
    %v1797 = vunpack.c.h.b16 %v214
    %v1798 = vunpack.c.l.b16 %v215
    %v1799 = vunpack.c.h.b16 %v215
    %v1800 = vunpack.c.l.b16 %v216
    %v1801 = vunpack.c.h.b16 %v216
    %v1802 = vunpack.c.l.b16 %v217
    %v1803 = vunpack.c.h.b16 %v217
    %v1804 = vunpack.c.l.b16 %v218
    %v1805 = vunpack.c.h.b16 %v218
    %v1806 = vunpack.c.l.b16 %v219
    %v1807 = vunpack.c.h.b16 %v219
    %v1808 = vunpack.c.l.b16 %v220
    %v1809 = vunpack.c.h.b16 %v220
    %v1810 = vunpack.c.l.b16 %v221
    %v1811 = vunpack.c.h.b16 %v221
    %v1812 = vunpack.c.l.b16 %v222
    %v1813 = vunpack.c.h.b16 %v222
    %v1814 = vunpack.c.l.b16 %v223
    %v1815 = vunpack.c.h.b16 %v223
    %v1816 = vunpack.c.l.b16 %v224
    %v1817 = vunpack.c.h.b16 %v224
    %v1818 = vunpack.c.l.b16 %v225
    %v1819 = vunpack.c.h.b16 %v225
    %v1820 = vunpack.c.l.b16 %v226
    %v1821 = vunpack.c.h.b16 %v226
    %v1822 = vunpack.c.l.b16 %v227
    %v1823 = vunpack.c.h.b16 %v227
    %v1824 = vunpack.c.l.b16 %v228
    %v1825 = vunpack.c.h.b16 %v228
    %v1826 = vunpack.c.l.b16 %v229
    %v1827 = vunpack.c.h.b16 %v229
    %v1828 = vunpack.c.l.b16 %v230
    %v1829 = vunpack.c.h.b16 %v230
    %v1830 = vunpack.c.l.b16 %v231
    %v1831 = vunpack.c.h.b16 %v231
    %v1832 = vunpack.c.l.b16 %v232
    %v1833 = vunpack.c.h.b16 %v232
    %v1834 = vunpack.c.l.b16 %v233
    %v1835 = vunpack.c.h.b16 %v233
    %v1836 = vunpack.c.l.b16 %v234
    %v1837 = vunpack.c.h.b16 %v234
    %v1838 = vunpack.c.l.b16 %v235
    %v1839 = vunpack.c.h.b16 %v235
    %v1840 = vunpack.c.l.b16 %v236
    %v1841 = vunpack.c.h.b16 %v236
    %v1842 = vunpack.c.l.b16 %v237
    %v1843 = vunpack.c.h.b16 %v237
    %v1844 = vunpack.c.l.b16 %v238
    %v1845 = vunpack.c.h.b16 %v238
    %v1846 = vunpack.c.l.b16 %v239
    %v1847 = vunpack.c.h.b16 %v239
    %v1848 = vunpack.c.l.b16 %v240
    %v1849 = vunpack.c.h.b16 %v240
    %v1850 = vunpack.c.l.b16 %v241
    %v1851 = vunpack.c.h.b16 %v241
    %v1852 = vunpack.c.l.b16 %v242
    %v1853 = vunpack.c.h.b16 %v242
    %v1854 = vunpack.c.l.b16 %v243
    %v1855 = vunpack.c.h.b16 %v243
    %v1856 = vunpack.c.l.b16 %v244
    %v1857 = vunpack.c.h.b16 %v244
    %v1858 = vunpack.c.l.b16 %v245
    %v1859 = vunpack.c.h.b16 %v245
    %v1860 = vunpack.c.l.b16 %v246
    %v1861 = vunpack.c.h.b16 %v246
    %v1862 = vunpack.c.l.b16 %v247
    %v1863 = vunpack.c.h.b16 %v247
    %v1864 = vunpack.c.l.b16 %v248
    %v1865 = vunpack.c.h.b16 %v248
    %v1866 = vunpack.c.l.b16 %v249
    %v1867 = vunpack.c.h.b16 %v249
    %v1868 = vunpack.c.l.b16 %v250
    %v1869 = vunpack.c.h.b16 %v250
    %v1870 = vunpack.c.l.b16 %v251
    %v1871 = vunpack.c.h.b16 %v251
    %v1872 = vunpack.c.l.b16 %v252
    %v1873 = vunpack.c.h.b16 %v252
    %v1874 = vunpack.c.l.b16 %v253
    %v1875 = vunpack.c.h.b16 %v253
    %v1876 = vunpack.c.l.b16 %v254
    %v1877 = vunpack.c.h.b16 %v254
    %v1878 = vunpack.c.l.b16 %v255
    %v1879 = vunpack.c.h.b16 %v255
    %v1880 = vunpack.c.l.b16 %v256
    %v1881 = vunpack.c.h.b16 %v256
    %v1882 = vunpack.c.l.b16 %v257
    %v1883 = vunpack.c.h.b16 %v257
    %v1884 = vunpack.c.l.b16 %v258
    %v1885 = vunpack.c.h.b16 %v258
    %v1886 = vunpack.c.l.b16 %v259
    %v1887 = vunpack.c.h.b16 %v259
    %v1888 = vunpack.c.l.b16 %v260
    %v1889 = vunpack.c.h.b16 %v260
    %v1890 = vunpack.c.l.b16 %v261
    %v1891 = vunpack.c.h.b16 %v261
    %v1892 = vunpack.c.l.b16 %v262
    %v1893 = vunpack.c.h.b16 %v262
    %v1894 = vunpack.c.l.b16 %v263
    %v1895 = vunpack.c.h.b16 %v263
    %v1896 = vunpack.c.l.b16 %v264
    %v1897 = vunpack.c.h.b16 %v264
    %v1898 = vunpack.c.l.b16 %v265
    %v1899 = vunpack.c.h.b16 %v265
    %v1900 = vunpack.c.l.b16 %v266
    %v1901 = vunpack.c.h.b16 %v266
    %v1902 = vunpack.c.l.b16 %v267
    %v1903 = vunpack.c.h.b16 %v267
    %v1904 = vunpack.c.l.b16 %v268
    %v1905 = vunpack.c.h.b16 %v268
    %v1906 = vunpack.c.l.b16 %v269
    %v1907 = vunpack.c.h.b16 %v269
    %v1908 = vunpack.c.l.b16 %v270
    %v1909 = vunpack.c.h.b16 %v270
    %v1910 = vunpack.c.l.b16 %v271
    %v1911 = vunpack.c.h.b16 %v271
    %v1912 = vunpack.c.l.b16 %v272
    %v1913 = vunpack.c.h.b16 %v272
    %v1914 = vunpack.c.l.b16 %v273
    %v1915 = vunpack.c.h.b16 %v273
    %v1916 = vunpack.c.l.b16 %v274
    %v1917 = vunpack.c.h.b16 %v274
    %v1918 = vunpack.c.l.b16 %v275
    %v1919 = vunpack.c.h.b16 %v275
    %v1920 = vunpack.c.l.b16 %v276
    %v1921 = vunpack.c.h.b16 %v276
    %v1922 = vunpack.c.l.b16 %v277
    %v1923 = vunpack.c.h.b16 %v277
    %v1924 = vunpack.c.l.b16 %v278
    %v1925 = vunpack.c.h.b16 %v278
    %v1926 = vunpack.c.l.b16 %v279
    %v1927 = vunpack.c.h.b16 %v279
    %v1928 = vunpack.c.l.b16 %v280
    %v1929 = vunpack.c.h.b16 %v280
    %v1930 = vunpack.c.l.b16 %v281
    %v1931 = vunpack.c.h.b16 %v281
    %v1932 = vunpack.c.l.b16 %v282
    %v1933 = vunpack.c.h.b16 %v282
    %v1934 = vunpack.c.l.b16 %v283
    %v1935 = vunpack.c.h.b16 %v283
    %v1936 = vunpack.c.l.b16 %v284
    %v1937 = vunpack.c.h.b16 %v284
    %v1938 = vunpack.c.l.b16 %v285
    %v1939 = vunpack.c.h.b16 %v285
    %v1940 = vunpack.c.l.b16 %v286
    %v1941 = vunpack.c.h.b16 %v286
    %v1942 = vunpack.c.l.b16 %v287
    %v1943 = vunpack.c.h.b16 %v287
    %v1944 = vunpack.c.l.b16 %v288
    %v1945 = vunpack.c.h.b16 %v288
    %v1946 = vunpack.c.l.b16 %v289
    %v1947 = vunpack.c.h.b16 %v289
    %v1948 = vunpack.c.l.b16 %v290
    %v1949 = vunpack.c.h.b16 %v290
    %v1950 = vunpack.c.l.b16 %v291
    %v1951 = vunpack.c.h.b16 %v291
    %v1952 = vunpack.c.l.b16 %v292
    %v1953 = vunpack.c.h.b16 %v292
    %v1954 = vunpack.c.l.b16 %v293
    %v1955 = vunpack.c.h.b16 %v293
    %v1956 = vunpack.c.l.b16 %v294
    %v1957 = vunpack.c.h.b16 %v294
    %v1958 = vunpack.c.l.b16 %v295
    %v1959 = vunpack.c.h.b16 %v295
    %v1960 = vunpack.c.l.b16 %v296
    %v1961 = vunpack.c.h.b16 %v296
    %v1962 = vunpack.c.l.b16 %v297
    %v1963 = vunpack.c.h.b16 %v297
    %v1964 = vunpack.c.l.b16 %v298
    %v1965 = vunpack.c.h.b16 %v298
    %v1966 = vunpack.c.l.b16 %v299
    %v1967 = vunpack.c.h.b16 %v299
    %v1968 = vunpack.c.l.b16 %v300
    %v1969 = vunpack.c.h.b16 %v300
    %v1970 = vunpack.c.l.b16 %v301
    %v1971 = vunpack.c.h.b16 %v301
    %v1972 = vunpack.c.l.b16 %v302
    %v1973 = vunpack.c.h.b16 %v302
    %v1974 = vunpack.c.l.b16 %v303
    %v1975 = vunpack.c.h.b16 %v303
    %v1976 = vunpack.c.l.b16 %v304
    %v1977 = vunpack.c.h.b16 %v304
    %v1978 = vunpack.c.l.b16 %v305
    %v1979 = vunpack.c.h.b16 %v305
    %v1980 = vunpack.c.l.b16 %v306
    %v1981 = vunpack.c.h.b16 %v306
    %v1982 = vunpack.c.l.b16 %v307
    %v1983 = vunpack.c.h.b16 %v307
    %v1984 = vunpack.c.l.b16 %v308
    %v1985 = vunpack.c.h.b16 %v308
    %v1986 = vunpack.c.l.b16 %v309
    %v1987 = vunpack.c.h.b16 %v309
    %v1988 = vunpack.c.l.b16 %v310
    %v1989 = vunpack.c.h.b16 %v310
    %v1990 = vunpack.c.l.b16 %v311
    %v1991 = vunpack.c.h.b16 %v311
    %v1992 = vunpack.c.l.b16 %v312
    %v1993 = vunpack.c.h.b16 %v312
    %v1994 = vunpack.c.l.b16 %v313
    %v1995 = vunpack.c.h.b16 %v313
    %v1996 = vunpack.c.l.b16 %v314
    %v1997 = vunpack.c.h.b16 %v314
    %v1998 = vunpack.c.l.b16 %v315
    %v1999 = vunpack.c.h.b16 %v315
    %v2000 = vunpack.c.l.b16 %v316
    %v2001 = vunpack.c.h.b16 %v316
    %v2002 = vunpack.c.l.b16 %v317
    %v2003 = vunpack.c.h.b16 %v317
    %v2004 = vunpack.c.l.b16 %v318
    %v2005 = vunpack.c.h.b16 %v318
    %v2006 = vunpack.c.l.b16 %v319
    %v2007 = vunpack.c.h.b16 %v319
    %v2008 = vunpack.c.l.b16 %v320
    %v2009 = vunpack.c.h.b16 %v320
    %v2010 = vunpack.c.l.b16 %v321
    %v2011 = vunpack.c.h.b16 %v321
    %v2012 = vunpack.c.l.b16 %v322
    %v2013 = vunpack.c.h.b16 %v322
    %v2014 = vunpack.c.l.b16 %v323
    %v2015 = vunpack.c.h.b16 %v323
    %v2016 = vunpack.c.l.b16 %v324
    %v2017 = vunpack.c.h.b16 %v324
    %v2018 = vunpack.c.l.b16 %v325
    %v2019 = vunpack.c.h.b16 %v325
    %v2020 = vunpack.c.l.b16 %v326
    %v2021 = vunpack.c.h.b16 %v326
    %v2022 = vunpack.c.l.b16 %v327
    %v2023 = vunpack.c.h.b16 %v327
    %v2024 = vunpack.c.l.b16 %v328
    %v2025 = vunpack.c.h.b16 %v328
    %v2026 = vunpack.c.l.b16 %v329
    %v2027 = vunpack.c.h.b16 %v329
    %v2028 = vunpack.c.l.b16 %v330
    %v2029 = vunpack.c.h.b16 %v330
    %v2030 = vunpack.c.l.b16 %v331
    %v2031 = vunpack.c.h.b16 %v331
    %v2032 = vunpack.c.l.b16 %v332
    %v2033 = vunpack.c.h.b16 %v332
    %v2034 = vunpack.c.l.b16 %v333
    %v2035 = vunpack.c.h.b16 %v333
    %v2036 = vunpack.c.l.b16 %v334
    %v2037 = vunpack.c.h.b16 %v334
    %v2038 = vunpack.c.l.b16 %v335
    %v2039 = vunpack.c.h.b16 %v335
    %v2040 = vunpack.c.l.b16 %v336
    %v2041 = vunpack.c.h.b16 %v336
    %v2042 = vunpack.c.l.b16 %v337
    %v2043 = vunpack.c.h.b16 %v337
    %v2044 = vunpack.c.l.b16 %v338
    %v2045 = vunpack.c.h.b16 %v338
    %v2046 = vunpack.c.l.b16 %v339
    %v2047 = vunpack.c.h.b16 %v339
    %v2048 = vunpack.c.l.b16 %v340
    %v2049 = vunpack.c.h.b16 %v340
    %v2050 = vunpack.c.l.b16 %v341
    %v2051 = vunpack.c.h.b16 %v341
    %v2052 = vunpack.c.l.b16 %v342
    %v2053 = vunpack.c.h.b16 %v342
    %v2054 = vunpack.c.l.b16 %v343
    %v2055 = vunpack.c.h.b16 %v343
    %v2056 = vunpack.c.l.b16 %v344
    %v2057 = vunpack.c.h.b16 %v344
    %v2058 = vunpack.c.l.b16 %v345
    %v2059 = vunpack.c.h.b16 %v345
    %v2060 = vunpack.c.l.b16 %v346
    %v2061 = vunpack.c.h.b16 %v346
    %v2062 = vunpack.c.l.b16 %v347
    %v2063 = vunpack.c.h.b16 %v347
    %v2064 = vunpack.c.l.b16 %v348
    %v2065 = vunpack.c.h.b16 %v348
    %v2066 = vunpack.c.l.b16 %v349
    %v2067 = vunpack.c.h.b16 %v349
    %v2068 = vunpack.c.l.b16 %v350
    %v2069 = vunpack.c.h.b16 %v350
    %v2070 = vunpack.c.l.b16 %v351
    %v2071 = vunpack.c.h.b16 %v351
    %v2072 = vunpack.c.l.b16 %v352
    %v2073 = vunpack.c.h.b16 %v352
    %v2074 = vunpack.c.l.b16 %v353
    %v2075 = vunpack.c.h.b16 %v353
    %v2076 = vunpack.c.l.b16 %v354
    %v2077 = vunpack.c.h.b16 %v354
    %v2078 = vunpack.c.l.b16 %v355
    %v2079 = vunpack.c.h.b16 %v355
    %v2080 = vunpack.c.l.b16 %v356
    %v2081 = vunpack.c.h.b16 %v356
    %v2082 = vunpack.c.l.b16 %v357
    %v2083 = vunpack.c.h.b16 %v357
    %v2084 = vunpack.c.l.b16 %v358
    %v2085 = vunpack.c.h.b16 %v358
    %v2086 = vunpack.c.l.b16 %v359
    %v2087 = vunpack.c.h.b16 %v359
    %v2088 = vunpack.c.l.b16 %v360
    %v2089 = vunpack.c.h.b16 %v360
    %v2090 = vunpack.c.l.b16 %v361
    %v2091 = vunpack.c.h.b16 %v361
    %v2092 = vunpack.c.l.b16 %v362
    %v2093 = vunpack.c.h.b16 %v362
    %v2094 = vunpack.c.l.b16 %v363
    %v2095 = vunpack.c.h.b16 %v363
    %v2096 = vunpack.c.l.b16 %v364
    %v2097 = vunpack.c.h.b16 %v364
    %v2098 = vunpack.c.l.b16 %v365
    %v2099 = vunpack.c.h.b16 %v365
    %v2100 = vunpack.c.l.b16 %v366
    %v2101 = vunpack.c.h.b16 %v366
    %v2102 = vunpack.c.l.b16 %v367
    %v2103 = vunpack.c.h.b16 %v367
    %v2104 = vunpack.c.l.b16 %v368
    %v2105 = vunpack.c.h.b16 %v368
    %v2106 = vunpack.c.l.b16 %v369
    %v2107 = vunpack.c.h.b16 %v369
    %v2108 = vunpack.c.l.b16 %v370
    %v2109 = vunpack.c.h.b16 %v370
    %v2110 = vunpack.c.l.b16 %v371
    %v2111 = vunpack.c.h.b16 %v371
    %v2112 = vunpack.c.l.b16 %v372
    %v2113 = vunpack.c.h.b16 %v372
    %v2114 = vunpack.c.l.b16 %v373
    %v2115 = vunpack.c.h.b16 %v373
    %v2116 = vunpack.c.l.b16 %v374
    %v2117 = vunpack.c.h.b16 %v374
    %v2118 = vunpack.c.l.b16 %v375
    %v2119 = vunpack.c.h.b16 %v375
    %v2120 = vunpack.c.l.b16 %v376
    %v2121 = vunpack.c.h.b16 %v376
    %v2122 = vunpack.c.l.b16 %v377
    %v2123 = vunpack.c.h.b16 %v377
    %v2124 = vunpack.c.l.b16 %v378
    %v2125 = vunpack.c.h.b16 %v378
    %v2126 = vunpack.c.l.b16 %v379
    %v2127 = vunpack.c.h.b16 %v379
    %v2128 = vunpack.c.l.b16 %v380
    %v2129 = vunpack.c.h.b16 %v380
    %v2130 = vunpack.c.l.b16 %v381
    %v2131 = vunpack.c.h.b16 %v381
    %v2132 = vunpack.c.l.b16 %v382
    %v2133 = vunpack.c.h.b16 %v382
    %v2134 = vunpack.c.l.b16 %v383
    %v2135 = vunpack.c.h.b16 %v383
    %v2136 = vunpack.c.l.b16 %v384
    %v2137 = vunpack.c.h.b16 %v384
    %v2138 = vunpack.c.l.b16 %v385
    %v2139 = vunpack.c.h.b16 %v385
    %v2140 = vunpack.c.l.b16 %v386
    %v2141 = vunpack.c.h.b16 %v386
    %v2142 = vunpack.c.l.b16 %v387
    %v2143 = vunpack.c.h.b16 %v387
    %v2144 = vunpack.c.l.b16 %v388
    %v2145 = vunpack.c.h.b16 %v388
    %v2146 = vunpack.c.l.b16 %v389
    %v2147 = vunpack.c.h.b16 %v389
    %v2148 = vunpack.c.l.b16 %v390
    %v2149 = vunpack.c.h.b16 %v390
    %v2150 = vunpack.c.l.b16 %v391
    %v2151 = vunpack.c.h.b16 %v391
    %v2152 = vunpack.c.l.b16 %v392
    %v2153 = vunpack.c.h.b16 %v392
    %v2154 = vunpack.c.l.b16 %v393
    %v2155 = vunpack.c.h.b16 %v393
    %v2156 = vunpack.c.l.b16 %v394
    %v2157 = vunpack.c.h.b16 %v394
    %v2158 = vunpack.c.l.b16 %v395
    %v2159 = vunpack.c.h.b16 %v395
    %v2160 = vunpack.c.l.b16 %v396
    %v2161 = vunpack.c.h.b16 %v396
    %v2162 = vunpack.c.l.b16 %v397
    %v2163 = vunpack.c.h.b16 %v397
    %v2164 = vunpack.c.l.b16 %v398
    %v2165 = vunpack.c.h.b16 %v398
    %v2166 = vunpack.c.l.b16 %v399
    %v2167 = vunpack.c.h.b16 %v399
    %v2168 = vunpack.c.l.b16 %v400
    %v2169 = vunpack.c.h.b16 %v400
    %v2170 = vunpack.c.l.b16 %v401
    %v2171 = vunpack.c.h.b16 %v401
    %v2172 = vunpack.c.l.b16 %v402
    %v2173 = vunpack.c.h.b16 %v402
    %v2174 = vunpack.c.l.b16 %v403
    %v2175 = vunpack.c.h.b16 %v403
    %v2176 = vunpack.c.l.b16 %v404
    %v2177 = vunpack.c.h.b16 %v404
    %v2178 = vunpack.c.l.b16 %v405
    %v2179 = vunpack.c.h.b16 %v405
    %v2180 = vunpack.c.l.b16 %v406
    %v2181 = vunpack.c.h.b16 %v406
    %v2182 = vunpack.c.l.b16 %v407
    %v2183 = vunpack.c.h.b16 %v407
    %v2184 = vunpack.c.l.b16 %v408
    %v2185 = vunpack.c.h.b16 %v408
    %v2186 = vunpack.c.l.b16 %v409
    %v2187 = vunpack.c.h.b16 %v409
    %v2188 = vunpack.c.l.b16 %v410
    %v2189 = vunpack.c.h.b16 %v410
    %v2190 = vunpack.c.l.b16 %v411
    %v2191 = vunpack.c.h.b16 %v411
    %v2192 = vunpack.c.l.b16 %v412
    %v2193 = vunpack.c.h.b16 %v412
    %v2194 = vunpack.c.l.b16 %v413
    %v2195 = vunpack.c.h.b16 %v413
    %v2196 = vunpack.c.l.b16 %v414
    %v2197 = vunpack.c.h.b16 %v414
    %v2198 = vunpack.c.l.b16 %v415
    %v2199 = vunpack.c.h.b16 %v415
    %v2200 = vunpack.c.l.b16 %v416
    %v2201 = vunpack.c.h.b16 %v416
    %v2202 = vunpack.c.l.b16 %v417
    %v2203 = vunpack.c.h.b16 %v417
    %v2204 = vunpack.c.l.b16 %v418
    %v2205 = vunpack.c.h.b16 %v418
    %v2206 = vunpack.c.l.b16 %v419
    %v2207 = vunpack.c.h.b16 %v419
    %v2208 = vunpack.c.l.b16 %v420
    %v2209 = vunpack.c.h.b16 %v420
    %v2210 = vunpack.c.l.b16 %v421
    %v2211 = vunpack.c.h.b16 %v421
    %v2212 = vunpack.c.l.b16 %v422
    %v2213 = vunpack.c.h.b16 %v422
    %v2214 = vunpack.c.l.b16 %v423
    %v2215 = vunpack.c.h.b16 %v423
    %v2216 = vunpack.c.l.b16 %v424
    %v2217 = vunpack.c.h.b16 %v424
    %v2218 = vunpack.c.l.b16 %v425
    %v2219 = vunpack.c.h.b16 %v425
    %v2220 = vunpack.c.l.b16 %v426
    %v2221 = vunpack.c.h.b16 %v426
    %v2222 = vunpack.c.l.b16 %v427
    %v2223 = vunpack.c.h.b16 %v427
    %v2224 = vunpack.c.l.b16 %v428
    %v2225 = vunpack.c.h.b16 %v428
    %v2226 = vunpack.c.l.b16 %v429
    %v2227 = vunpack.c.h.b16 %v429
    %v2228 = vunpack.c.l.b16 %v430
    %v2229 = vunpack.c.h.b16 %v430
    %v2230 = vunpack.c.l.b16 %v431
    %v2231 = vunpack.c.h.b16 %v431
    %v2232 = vunpack.c.l.b16 %v432
    %v2233 = vunpack.c.h.b16 %v432
    %v2234 = vunpack.c.l.b16 %v433
    %v2235 = vunpack.c.h.b16 %v433
    %v2236 = vunpack.c.l.b16 %v434
    %v2237 = vunpack.c.h.b16 %v434
    %v2238 = vunpack.c.l.b16 %v435
    %v2239 = vunpack.c.h.b16 %v435
    %v2240 = vunpack.c.l.b16 %v436
    %v2241 = vunpack.c.h.b16 %v436
    %v2242 = vunpack.c.l.b16 %v437
    %v2243 = vunpack.c.h.b16 %v437
    %v2244 = vunpack.c.l.b16 %v438
    %v2245 = vunpack.c.h.b16 %v438
    %v2246 = vunpack.c.l.b16 %v439
    %v2247 = vunpack.c.h.b16 %v439
    %v2248 = vunpack.c.l.b16 %v440
    %v2249 = vunpack.c.h.b16 %v440
    %v2250 = vunpack.c.l.b16 %v441
    %v2251 = vunpack.c.h.b16 %v441
    %v2252 = vunpack.c.l.b16 %v442
    %v2253 = vunpack.c.h.b16 %v442
    %v2254 = vunpack.c.l.b16 %v443
    %v2255 = vunpack.c.h.b16 %v443
    %v2256 = vunpack.c.l.b16 %v444
    %v2257 = vunpack.c.h.b16 %v444
    %v2258 = vunpack.c.l.b16 %v445
    %v2259 = vunpack.c.h.b16 %v445
    %v2260 = vunpack.c.l.b16 %v446
    %v2261 = vunpack.c.h.b16 %v446
    %v2262 = vunpack.c.l.b16 %v447
    %v2263 = vunpack.c.h.b16 %v447
    %v2264 = vunpack.c.l.b16 %v448
    %v2265 = vunpack.c.h.b16 %v448
    %v2266 = vunpack.c.l.b16 %v449
    %v2267 = vunpack.c.h.b16 %v449
    %v2268 = vunpack.c.l.b16 %v450
    %v2269 = vunpack.c.h.b16 %v450
    %v2270 = vunpack.c.l.b16 %v451
    %v2271 = vunpack.c.h.b16 %v451
    %v2272 = vunpack.c.l.b16 %v452
    %v2273 = vunpack.c.h.b16 %v452
    %v2274 = vunpack.c.l.b16 %v453
    %v2275 = vunpack.c.h.b16 %v453
    %v2276 = vunpack.c.l.b16 %v454
    %v2277 = vunpack.c.h.b16 %v454
    %v2278 = vunpack.c.l.b16 %v455
    %v2279 = vunpack.c.h.b16 %v455
    %v2280 = vunpack.c.l.b16 %v456
    %v2281 = vunpack.c.h.b16 %v456
    %v2282 = vunpack.c.l.b16 %v457
    %v2283 = vunpack.c.h.b16 %v457
    %v2284 = vunpack.c.l.b16 %v458
    %v2285 = vunpack.c.h.b16 %v458
    %v2286 = vunpack.c.l.b16 %v459
    %v2287 = vunpack.c.h.b16 %v459
    %v2288 = vunpack.c.l.b16 %v460
    %v2289 = vunpack.c.h.b16 %v460
    %v2290 = vunpack.c.l.b16 %v461
    %v2291 = vunpack.c.h.b16 %v461
    %v2292 = vunpack.c.l.b16 %v462
    %v2293 = vunpack.c.h.b16 %v462
    %v2294 = vunpack.c.l.b16 %v463
    %v2295 = vunpack.c.h.b16 %v463
    %v2296 = vunpack.c.l.b16 %v464
    %v2297 = vunpack.c.h.b16 %v464
    %v2298 = vunpack.c.l.b16 %v465
    %v2299 = vunpack.c.h.b16 %v465
    %v2300 = vunpack.c.l.b16 %v466
    %v2301 = vunpack.c.h.b16 %v466
    %v2302 = vunpack.c.l.b16 %v467
    %v2303 = vunpack.c.h.b16 %v467
    %v2304 = vunpack.c.l.b16 %v468
    %v2305 = vunpack.c.h.b16 %v468
    %v2306 = vunpack.c.l.b16 %v469
    %v2307 = vunpack.c.h.b16 %v469
    %v2308 = vunpack.c.l.b16 %v470
    %v2309 = vunpack.c.h.b16 %v470
    %v2310 = vunpack.c.l.b16 %v471
    %v2311 = vunpack.c.h.b16 %v471
    %v2312 = vunpack.c.l.b16 %v472
    %v2313 = vunpack.c.h.b16 %v472
    %v2314 = vunpack.c.l.b16 %v473
    %v2315 = vunpack.c.h.b16 %v473
    %v2316 = vunpack.c.l.b16 %v474
    %v2317 = vunpack.c.h.b16 %v474
    %v2318 = vunpack.c.l.b16 %v475
    %v2319 = vunpack.c.h.b16 %v475
    %v2320 = vunpack.c.l.b16 %v476
    %v2321 = vunpack.c.h.b16 %v476
    %v2322 = vunpack.c.l.b16 %v477
    %v2323 = vunpack.c.h.b16 %v477
    %v2324 = vunpack.c.l.b16 %v478
    %v2325 = vunpack.c.h.b16 %v478
    %v2326 = vunpack.c.l.b16 %v479
    %v2327 = vunpack.c.h.b16 %v479
    %v2328 = vunpack.c.l.b16 %v480
    %v2329 = vunpack.c.h.b16 %v480
    %v2330 = vunpack.c.l.b16 %v481
    %v2331 = vunpack.c.h.b16 %v481
    %v2332 = vunpack.c.l.b16 %v482
    %v2333 = vunpack.c.h.b16 %v482
    %v2334 = vunpack.c.l.b16 %v483
    %v2335 = vunpack.c.h.b16 %v483
    %v2336 = vunpack.c.l.b16 %v484
    %v2337 = vunpack.c.h.b16 %v484
    %v2338 = vunpack.c.l.b16 %v485
    %v2339 = vunpack.c.h.b16 %v485
    %v2340 = vunpack.c.l.b16 %v486
    %v2341 = vunpack.c.h.b16 %v486
    %v2342 = vunpack.c.l.b16 %v487
    %v2343 = vunpack.c.h.b16 %v487
    %v2344 = vunpack.c.l.b16 %v488
    %v2345 = vunpack.c.h.b16 %v488
    %v2346 = vunpack.c.l.b16 %v489
    %v2347 = vunpack.c.h.b16 %v489
    %v2348 = vunpack.c.l.b16 %v490
    %v2349 = vunpack.c.h.b16 %v490
    %v2350 = vunpack.c.l.b16 %v491
    %v2351 = vunpack.c.h.b16 %v491
    %v2352 = vunpack.c.l.b16 %v492
    %v2353 = vunpack.c.h.b16 %v492
    %v2354 = vunpack.c.l.b16 %v493
    %v2355 = vunpack.c.h.b16 %v493
    %v2356 = vunpack.c.l.b16 %v494
    %v2357 = vunpack.c.h.b16 %v494
    %v2358 = vunpack.c.l.b16 %v495
    %v2359 = vunpack.c.h.b16 %v495
    %v2360 = vunpack.c.l.b16 %v496
    %v2361 = vunpack.c.h.b16 %v496
    %v2362 = vunpack.c.l.b16 %v497
    %v2363 = vunpack.c.h.b16 %v497
    %v2364 = vunpack.c.l.b16 %v498
    %v2365 = vunpack.c.h.b16 %v498
    %v2366 = vunpack.c.l.b16 %v499
    %v2367 = vunpack.c.h.b16 %v499
    %v2368 = vunpack.c.l.b16 %v500
    %v2369 = vunpack.c.h.b16 %v500
    %v2370 = vunpack.c.l.b16 %v501
    %v2371 = vunpack.c.h.b16 %v501
    %v2372 = vunpack.c.l.b16 %v502
    %v2373 = vunpack.c.h.b16 %v502
    %v2374 = vunpack.c.l.b16 %v503
    %v2375 = vunpack.c.h.b16 %v503
    %v2376 = vunpack.c.l.b16 %v504
    %v2377 = vunpack.c.h.b16 %v504
    %v2378 = vunpack.c.l.b16 %v505
    %v2379 = vunpack.c.h.b16 %v505
    %v2380 = vunpack.c.l.b16 %v506
    %v2381 = vunpack.c.h.b16 %v506
    %v2382 = vunpack.c.l.b16 %v507
    %v2383 = vunpack.c.h.b16 %v507
    %v2384 = vunpack.c.l.b16 %v508
    %v2385 = vunpack.c.h.b16 %v508
    %v2386 = vunpack.c.l.b16 %v509
    %v2387 = vunpack.c.h.b16 %v509
    %v2388 = vunpack.c.l.b16 %v510
    %v2389 = vunpack.c.h.b16 %v510
    %v2390 = vunpack.c.l.b16 %v511
    %v2391 = vunpack.c.h.b16 %v511
    %v2392 = vunpack.c.l.b16 %v512
    %v2393 = vunpack.c.h.b16 %v512
    %v2394 = vunpack.c.l.b16 %v513
    %v2395 = vunpack.c.h.b16 %v513
    %v2396 = vunpack.c.l.b16 %v514
    %v2397 = vunpack.c.h.b16 %v514
    %v2398 = vunpack.c.l.b16 %v515
    %v2399 = vunpack.c.h.b16 %v515
    %v2400 = vunpack.c.l.b16 %v516
    %v2401 = vunpack.c.h.b16 %v516
    %v2402 = vunpack.c.l.b16 %v517
    %v2403 = vunpack.c.h.b16 %v517
    %v2404 = vunpack.c.l.b16 %v518
    %v2405 = vunpack.c.h.b16 %v518
    %v2406 = vunpack.c.l.b16 %v519
    %v2407 = vunpack.c.h.b16 %v519
    %v2408 = vunpack.c.l.b16 %v520
    %v2409 = vunpack.c.h.b16 %v520
    %v2410 = vunpack.c.l.b16 %v521
    %v2411 = vunpack.c.h.b16 %v521
    %v2412 = vunpack.c.l.b16 %v522
    %v2413 = vunpack.c.h.b16 %v522
    %v2414 = vunpack.c.l.b16 %v523
    %v2415 = vunpack.c.h.b16 %v523
    %v2416 = vunpack.c.l.b16 %v524
    %v2417 = vunpack.c.h.b16 %v524
    %v2418 = vunpack.c.l.b16 %v525
    %v2419 = vunpack.c.h.b16 %v525
    %v2420 = vunpack.c.l.b16 %v526
    %v2421 = vunpack.c.h.b16 %v526
    %v2422 = vunpack.c.l.b16 %v527
    %v2423 = vunpack.c.h.b16 %v527
    %v2424 = vunpack.c.l.b16 %v528
    %v2425 = vunpack.c.h.b16 %v528
    %v2426 = vunpack.c.l.b16 %v529
    %v2427 = vunpack.c.h.b16 %v529
    %v2428 = vunpack.c.l.b16 %v530
    %v2429 = vunpack.c.h.b16 %v530
    %v2430 = vunpack.c.l.b16 %v531
    %v2431 = vunpack.c.h.b16 %v531
    %v2432 = vunpack.c.l.b16 %v532
    %v2433 = vunpack.c.h.b16 %v532
    %v2434 = vunpack.c.l.b16 %v533
    %v2435 = vunpack.c.h.b16 %v533
    %v2436 = vunpack.c.l.b16 %v534
    %v2437 = vunpack.c.h.b16 %v534
    %v2438 = vunpack.c.l.b16 %v535
    %v2439 = vunpack.c.h.b16 %v535
    %v2440 = vunpack.c.l.b16 %v536
    %v2441 = vunpack.c.h.b16 %v536
    %v2442 = vunpack.c.l.b16 %v537
    %v2443 = vunpack.c.h.b16 %v537
    %v2444 = vunpack.c.l.b16 %v538
    %v2445 = vunpack.c.h.b16 %v538
    %v2446 = vunpack.c.l.b16 %v539
    %v2447 = vunpack.c.h.b16 %v539
    %v2448 = vunpack.c.l.b16 %v540
    %v2449 = vunpack.c.h.b16 %v540
    %v2450 = vunpack.c.l.b16 %v541
    %v2451 = vunpack.c.h.b16 %v541
    %v2452 = vunpack.c.l.b16 %v542
    %v2453 = vunpack.c.h.b16 %v542
    %v2454 = vunpack.c.l.b16 %v543
    %v2455 = vunpack.c.h.b16 %v543
    %v2456 = vunpack.c.l.b16 %v544
    %v2457 = vunpack.c.h.b16 %v544
    %v2458 = vunpack.c.l.b16 %v545
    %v2459 = vunpack.c.h.b16 %v545
    %v2460 = vunpack.c.l.b16 %v546
    %v2461 = vunpack.c.h.b16 %v546
    %v2462 = vunpack.c.l.b16 %v547
    %v2463 = vunpack.c.h.b16 %v547
    %v2464 = vunpack.c.l.b16 %v548
    %v2465 = vunpack.c.h.b16 %v548
    %v2466 = vunpack.c.l.b16 %v549
    %v2467 = vunpack.c.h.b16 %v549
    %v2468 = vunpack.c.l.b16 %v550
    %v2469 = vunpack.c.h.b16 %v550
    %v2470 = vunpack.c.l.b16 %v551
    %v2471 = vunpack.c.h.b16 %v551
    %v2472 = vunpack.c.l.b16 %v552
    %v2473 = vunpack.c.h.b16 %v552
    %v2474 = vunpack.c.l.b16 %v553
    %v2475 = vunpack.c.h.b16 %v553
    %v2476 = vunpack.c.l.b16 %v554
    %v2477 = vunpack.c.h.b16 %v554
    %v2478 = vunpack.c.l.b16 %v555
    %v2479 = vunpack.c.h.b16 %v555
    %v2480 = vunpack.c.l.b16 %v556
    %v2481 = vunpack.c.h.b16 %v556
    %v2482 = vunpack.c.l.b16 %v557
    %v2483 = vunpack.c.h.b16 %v557
    %v2484 = vunpack.c.l.b16 %v558
    %v2485 = vunpack.c.h.b16 %v558
    %v2486 = vunpack.c.l.b16 %v559
    %v2487 = vunpack.c.h.b16 %v559
    %v2488 = vunpack.c.l.b16 %v560
    %v2489 = vunpack.c.h.b16 %v560
    %v2490 = vunpack.c.l.b16 %v561
    %v2491 = vunpack.c.h.b16 %v561
    %v2492 = vunpack.c.l.b16 %v562
    %v2493 = vunpack.c.h.b16 %v562
    %v2494 = vunpack.c.l.b16 %v563
    %v2495 = vunpack.c.h.b16 %v563
    %v2496 = vunpack.c.l.b16 %v564
    %v2497 = vunpack.c.h.b16 %v564
    %v2498 = vunpack.c.l.b16 %v565
    %v2499 = vunpack.c.h.b16 %v565
    %v2500 = vunpack.c.l.b16 %v566
    %v2501 = vunpack.c.h.b16 %v566
    %v2502 = vunpack.c.l.b16 %v567
    %v2503 = vunpack.c.h.b16 %v567
    %v2504 = vunpack.c.l.b16 %v568
    %v2505 = vunpack.c.h.b16 %v568
    %v2506 = vunpack.c.l.b16 %v569
    %v2507 = vunpack.c.h.b16 %v569
    %v2508 = vunpack.c.l.b16 %v570
    %v2509 = vunpack.c.h.b16 %v570
    %v2510 = vunpack.c.l.b16 %v571
    %v2511 = vunpack.c.h.b16 %v571
    %v2512 = vunpack.c.l.b16 %v572
    %v2513 = vunpack.c.h.b16 %v572
    %v2514 = vunpack.c.l.b16 %v573
    %v2515 = vunpack.c.h.b16 %v573
    %v2516 = vunpack.c.l.b16 %v574
    %v2517 = vunpack.c.h.b16 %v574
    %v2518 = vunpack.c.l.b16 %v575
    %v2519 = vunpack.c.h.b16 %v575
    %v2520 = vunpack.c.l.b16 %v576
    %v2521 = vunpack.c.h.b16 %v576
    %v2522 = vunpack.c.l.b16 %v577
    %v2523 = vunpack.c.h.b16 %v577
    %v2524 = vunpack.c.l.b16 %v578
    %v2525 = vunpack.c.h.b16 %v578
    %v2526 = vunpack.c.l.b16 %v579
    %v2527 = vunpack.c.h.b16 %v579
    %v2528 = vunpack.c.l.b16 %v580
    %v2529 = vunpack.c.h.b16 %v580
    %v2530 = vunpack.c.l.b16 %v581
    %v2531 = vunpack.c.h.b16 %v581
    %v2532 = vunpack.c.l.b16 %v582
    %v2533 = vunpack.c.h.b16 %v582
    %v2534 = vunpack.c.l.b16 %v583
    %v2535 = vunpack.c.h.b16 %v583
    %v2536 = vunpack.c.l.b16 %v584
    %v2537 = vunpack.c.h.b16 %v584
    %v2538 = vunpack.c.l.b16 %v585
    %v2539 = vunpack.c.h.b16 %v585
    %v2540 = vunpack.c.l.b16 %v586
    %v2541 = vunpack.c.h.b16 %v586
    %v2542 = vunpack.c.l.b16 %v587
    %v2543 = vunpack.c.h.b16 %v587
    %v2544 = vunpack.c.l.b16 %v588
    %v2545 = vunpack.c.h.b16 %v588
    %v2546 = vunpack.c.l.b16 %v589
    %v2547 = vunpack.c.h.b16 %v589
    %v2548 = vunpack.c.l.b16 %v590
    %v2549 = vunpack.c.h.b16 %v590
    %v2550 = vunpack.c.l.b16 %v591
    %v2551 = vunpack.c.h.b16 %v591
    %v2552 = vunpack.c.l.b16 %v592
    %v2553 = vunpack.c.h.b16 %v592
    %v2554 = vunpack.c.l.b16 %v593
    %v2555 = vunpack.c.h.b16 %v593
    %v2556 = vunpack.c.l.b16 %v594
    %v2557 = vunpack.c.h.b16 %v594
    %v2558 = vunpack.c.l.b16 %v595
    %v2559 = vunpack.c.h.b16 %v595
    %v2560 = vunpack.c.l.b16 %v596
    %v2561 = vunpack.c.h.b16 %v596
    %v2562 = vunpack.c.l.b16 %v597
    %v2563 = vunpack.c.h.b16 %v597
    %v2564 = vunpack.c.l.b16 %v598
    %v2565 = vunpack.c.h.b16 %v598
    %v2566 = vunpack.c.l.b16 %v599
    %v2567 = vunpack.c.h.b16 %v599
    %v2568 = vunpack.c.l.b16 %v600
    %v2569 = vunpack.c.h.b16 %v600
    %v2570 = vunpack.c.l.b16 %v601
    %v2571 = vunpack.c.h.b16 %v601
    %v2572 = vunpack.c.l.b16 %v602
    %v2573 = vunpack.c.h.b16 %v602
    %v2574 = vunpack.c.l.b16 %v603
    %v2575 = vunpack.c.h.b16 %v603
    %v2576 = vunpack.c.l.b16 %v604
    %v2577 = vunpack.c.h.b16 %v604
    %v2578 = vunpack.c.l.b16 %v605
    %v2579 = vunpack.c.h.b16 %v605
    %v2580 = vunpack.c.l.b16 %v606
    %v2581 = vunpack.c.h.b16 %v606
    %v2582 = vunpack.c.l.b16 %v607
    %v2583 = vunpack.c.h.b16 %v607
    %v2584 = vunpack.c.l.b16 %v608
    %v2585 = vunpack.c.h.b16 %v608
    %v2586 = vunpack.c.l.b16 %v609
    %v2587 = vunpack.c.h.b16 %v609
    %v2588 = vunpack.c.l.b16 %v610
    %v2589 = vunpack.c.h.b16 %v610
    %v2590 = vunpack.c.l.b16 %v611
    %v2591 = vunpack.c.h.b16 %v611
    %v2592 = vunpack.c.l.b16 %v612
    %v2593 = vunpack.c.h.b16 %v612
    %v2594 = vunpack.c.l.b16 %v613
    %v2595 = vunpack.c.h.b16 %v613
    %v2596 = vunpack.c.l.b16 %v614
    %v2597 = vunpack.c.h.b16 %v614
    %v2598 = vunpack.c.l.b16 %v615
    %v2599 = vunpack.c.h.b16 %v615
    %v2600 = vunpack.c.l.b16 %v616
    %v2601 = vunpack.c.h.b16 %v616
    %v2602 = vunpack.c.l.b16 %v617
    %v2603 = vunpack.c.h.b16 %v617
    %v2604 = vunpack.c.l.b16 %v618
    %v2605 = vunpack.c.h.b16 %v618
    %v2606 = vunpack.c.l.b16 %v619
    %v2607 = vunpack.c.h.b16 %v619
    %v2608 = vunpack.c.l.b16 %v620
    %v2609 = vunpack.c.h.b16 %v620
    %v2610 = vunpack.c.l.b16 %v621
    %v2611 = vunpack.c.h.b16 %v621
    %v2612 = vunpack.c.l.b16 %v622
    %v2613 = vunpack.c.h.b16 %v622
    %v2614 = vunpack.c.l.b16 %v623
    %v2615 = vunpack.c.h.b16 %v623
    %v2616 = vunpack.c.l.b16 %v624
    %v2617 = vunpack.c.h.b16 %v624
    %v2618 = vunpack.c.l.b16 %v625
    %v2619 = vunpack.c.h.b16 %v625
    %v2620 = vunpack.c.l.b16 %v626
    %v2621 = vunpack.c.h.b16 %v626
    %v2622 = vunpack.c.l.b16 %v627
    %v2623 = vunpack.c.h.b16 %v627
    %v2624 = vunpack.c.l.b16 %v628
    %v2625 = vunpack.c.h.b16 %v628
    %v2626 = vunpack.c.l.b16 %v629
    %v2627 = vunpack.c.h.b16 %v629
    %v2628 = vunpack.c.l.b16 %v630
    %v2629 = vunpack.c.h.b16 %v630
    %v2630 = vunpack.c.l.b16 %v631
    %v2631 = vunpack.c.h.b16 %v631
    %v2632 = vunpack.c.l.b16 %v632
    %v2633 = vunpack.c.h.b16 %v632
    %v2634 = vunpack.c.l.b16 %v633
    %v2635 = vunpack.c.h.b16 %v633
    %v2636 = vunpack.c.l.b16 %v634
    %v2637 = vunpack.c.h.b16 %v634
    %v2638 = vunpack.c.l.b16 %v635
    %v2639 = vunpack.c.h.b16 %v635
    %v2640 = vunpack.c.l.b16 %v636
    %v2641 = vunpack.c.h.b16 %v636
    %v2642 = vunpack.c.l.b16 %v637
    %v2643 = vunpack.c.h.b16 %v637
    %v2644 = vunpack.c.l.b16 %v638
    %v2645 = vunpack.c.h.b16 %v638
    %v2646 = vunpack.c.l.b16 %v639
    %v2647 = vunpack.c.h.b16 %v639
    %v2648 = vunpack.c.l.b16 %v640
    %v2649 = vunpack.c.h.b16 %v640
    %v2650 = vunpack.c.l.b16 %v641
    %v2651 = vunpack.c.h.b16 %v641
    %v2652 = vunpack.c.l.b16 %v642
    %v2653 = vunpack.c.h.b16 %v642
    %v2654 = vunpack.c.l.b16 %v643
    %v2655 = vunpack.c.h.b16 %v643
    %v2656 = vunpack.c.l.b16 %v644
    %v2657 = vunpack.c.h.b16 %v644
    %v2658 = vunpack.c.l.b16 %v645
    %v2659 = vunpack.c.h.b16 %v645
    %v2660 = vunpack.c.l.b16 %v646
    %v2661 = vunpack.c.h.b16 %v646
    %v2662 = vunpack.c.l.b16 %v647
    %v2663 = vunpack.c.h.b16 %v647
    %v2664 = vunpack.c.l.b16 %v648
    %v2665 = vunpack.c.h.b16 %v648
    %v2666 = vunpack.c.l.b16 %v649
    %v2667 = vunpack.c.h.b16 %v649
    %v2668 = vunpack.c.l.b16 %v650
    %v2669 = vunpack.c.h.b16 %v650
    %v2670 = vunpack.c.l.b16 %v651
    %v2671 = vunpack.c.h.b16 %v651
    %v2672 = vunpack.c.l.b16 %v652
    %v2673 = vunpack.c.h.b16 %v652
    %v2674 = vunpack.c.l.b16 %v653
    %v2675 = vunpack.c.h.b16 %v653
    %v2676 = vunpack.c.l.b16 %v654
    %v2677 = vunpack.c.h.b16 %v654
    %v2678 = vunpack.c.l.b16 %v655
    %v2679 = vunpack.c.h.b16 %v655
    %v2680 = vunpack.c.l.b16 %v656
    %v2681 = vunpack.c.h.b16 %v656
    %v2682 = vunpack.c.l.b16 %v657
    %v2683 = vunpack.c.h.b16 %v657
    %v2684 = vunpack.c.l.b16 %v658
    %v2685 = vunpack.c.h.b16 %v658
    %v2686 = vunpack.c.l.b16 %v659
    %v2687 = vunpack.c.h.b16 %v659
    %v2688 = vunpack.c.l.b16 %v660
    %v2689 = vunpack.c.h.b16 %v660
    %v2690 = vunpack.c.l.b16 %v661
    %v2691 = vunpack.c.h.b16 %v661
    %v2692 = vunpack.c.l.b16 %v662
    %v2693 = vunpack.c.h.b16 %v662
    %v2694 = vunpack.c.l.b16 %v663
    %v2695 = vunpack.c.h.b16 %v663
    %v2696 = vunpack.c.l.b16 %v664
    %v2697 = vunpack.c.h.b16 %v664
    %v2698 = vunpack.c.l.b16 %v665
    %v2699 = vunpack.c.h.b16 %v665
    %v2700 = vunpack.c.l.b16 %v666
    %v2701 = vunpack.c.h.b16 %v666
    %v2702 = vunpack.c.l.b16 %v667
    %v2703 = vunpack.c.h.b16 %v667
    %v2704 = vunpack.c.l.b16 %v668
    %v2705 = vunpack.c.h.b16 %v668
    %v2706 = vunpack.c.l.b16 %v669
    %v2707 = vunpack.c.h.b16 %v669
    %v2708 = vunpack.c.l.b16 %v670
    %v2709 = vunpack.c.h.b16 %v670
    %v2710 = vunpack.c.l.b16 %v671
    %v2711 = vunpack.c.h.b16 %v671
    %v2712 = vunpack.c.l.b16 %v672
    %v2713 = vunpack.c.h.b16 %v672
    %v2714 = vunpack.c.l.b16 %v673
    %v2715 = vunpack.c.h.b16 %v673
    %v2716 = vunpack.c.l.b16 %v674
    %v2717 = vunpack.c.h.b16 %v674
    %v2718 = vunpack.c.l.b16 %v675
    %v2719 = vunpack.c.h.b16 %v675
    %v2720 = vunpack.c.l.b16 %v676
    %v2721 = vunpack.c.h.b16 %v676
    %v2722 = vunpack.c.l.b16 %v677
    %v2723 = vunpack.c.h.b16 %v677
    %v2724 = vunpack.c.l.b16 %v678
    %v2725 = vunpack.c.h.b16 %v678
    %v2726 = vunpack.c.l.b16 %v679
    %v2727 = vunpack.c.h.b16 %v679
    %v2728 = vunpack.c.l.b16 %v680
    %v2729 = vunpack.c.h.b16 %v680
    %v2730 = vunpack.c.l.b16 %v681
    %v2731 = vunpack.c.h.b16 %v681
    %v2732 = vunpack.c.l.b16 %v682
    %v2733 = vunpack.c.h.b16 %v682
    %v2734 = vunpack.c.l.b16 %v683
    %v2735 = vunpack.c.h.b16 %v683
    %v2736 = vunpack.c.l.b16 %v684
    %v2737 = vunpack.c.h.b16 %v684
    %v2738 = vunpack.c.l.b16 %v685
    %v2739 = vunpack.c.h.b16 %v685
    %v2740 = vunpack.c.l.b16 %v686
    %v2741 = vunpack.c.h.b16 %v686
    %v2742 = vunpack.c.l.b16 %v687
    %v2743 = vunpack.c.h.b16 %v687
    %v2744 = vunpack.c.l.b16 %v688
    %v2745 = vunpack.c.h.b16 %v688
    %v2746 = vunpack.c.l.b16 %v689
    %v2747 = vunpack.c.h.b16 %v689
    %v2748 = vunpack.c.l.b16 %v690
    %v2749 = vunpack.c.h.b16 %v690
    %v2750 = vunpack.c.l.b16 %v691
    %v2751 = vunpack.c.h.b16 %v691
    %v2752 = vunpack.c.l.b16 %v692
    %v2753 = vunpack.c.h.b16 %v692
    %v2754 = vunpack.c.l.b16 %v693
    %v2755 = vunpack.c.h.b16 %v693
    %v2756 = vunpack.c.l.b16 %v694
    %v2757 = vunpack.c.h.b16 %v694
    %v2758 = vunpack.c.l.b16 %v695
    %v2759 = vunpack.c.h.b16 %v695
    %v2760 = vunpack.c.l.b16 %v696
    %v2761 = vunpack.c.h.b16 %v696
    %v2762 = vunpack.c.l.b16 %v697
    %v2763 = vunpack.c.h.b16 %v697
    %v2764 = vunpack.c.l.b16 %v698
    %v2765 = vunpack.c.h.b16 %v698
    %v2766 = vunpack.c.l.b16 %v699
    %v2767 = vunpack.c.h.b16 %v699
    %v2768 = vunpack.c.l.b16 %v700
    %v2769 = vunpack.c.h.b16 %v700
    %v2770 = vunpack.c.l.b16 %v701
    %v2771 = vunpack.c.h.b16 %v701
    %v2772 = vunpack.c.l.b16 %v702
    %v2773 = vunpack.c.h.b16 %v702
    %v2774 = vunpack.c.l.b16 %v703
    %v2775 = vunpack.c.h.b16 %v703
    %v2776 = vunpack.c.l.b16 %v704
    %v2777 = vunpack.c.h.b16 %v704
    %v2778 = vunpack.c.l.b16 %v705
    %v2779 = vunpack.c.h.b16 %v705
    %v2780 = vunpack.c.l.b16 %v706
    %v2781 = vunpack.c.h.b16 %v706
    %v2782 = vunpack.c.l.b16 %v707
    %v2783 = vunpack.c.h.b16 %v707
    %v2784 = vunpack.c.l.b16 %v708
    %v2785 = vunpack.c.h.b16 %v708
    %v2786 = vunpack.c.l.b16 %v709
    %v2787 = vunpack.c.h.b16 %v709
    %v2788 = vunpack.c.l.b16 %v710
    %v2789 = vunpack.c.h.b16 %v710
    %v2790 = vunpack.c.l.b16 %v711
    %v2791 = vunpack.c.h.b16 %v711
    %v2792 = vunpack.c.l.b16 %v712
    %v2793 = vunpack.c.h.b16 %v712
    %v2794 = vunpack.c.l.b16 %v713
    %v2795 = vunpack.c.h.b16 %v713
    %v2796 = vunpack.c.l.b16 %v714
    %v2797 = vunpack.c.h.b16 %v714
    %v2798 = vunpack.c.l.b16 %v715
    %v2799 = vunpack.c.h.b16 %v715
    %v2800 = vunpack.c.l.b16 %v716
    %v2801 = vunpack.c.h.b16 %v716
    %v2802 = vunpack.c.l.b16 %v717
    %v2803 = vunpack.c.h.b16 %v717
    %v2804 = vunpack.c.l.b16 %v718
    %v2805 = vunpack.c.h.b16 %v718
    %v2806 = vunpack.c.l.b16 %v719
    %v2807 = vunpack.c.h.b16 %v719
    %v2808 = vunpack.c.l.b16 %v720
    %v2809 = vunpack.c.h.b16 %v720
    %v2810 = vunpack.c.l.b16 %v721
    %v2811 = vunpack.c.h.b16 %v721
    %v2812 = vunpack.c.l.b16 %v722
    %v2813 = vunpack.c.h.b16 %v722
    %v2814 = vunpack.c.l.b16 %v723
    %v2815 = vunpack.c.h.b16 %v723
    %v2816 = vunpack.c.l.b16 %v724
    %v2817 = vunpack.c.h.b16 %v724
    %v2818 = vunpack.c.l.b16 %v725
    %v2819 = vunpack.c.h.b16 %v725
    %v2820 = vunpack.c.l.b16 %v726
    %v2821 = vunpack.c.h.b16 %v726
    %v2822 = vunpack.c.l.b16 %v727
    %v2823 = vunpack.c.h.b16 %v727
    %v2824 = vunpack.c.l.b16 %v728
    %v2825 = vunpack.c.h.b16 %v728
    %v2826 = vunpack.c.l.b16 %v729
    %v2827 = vunpack.c.h.b16 %v729
    %v2828 = vunpack.c.l.b16 %v730
    %v2829 = vunpack.c.h.b16 %v730
    %v2830 = vunpack.c.l.b16 %v731
    %v2831 = vunpack.c.h.b16 %v731
    %v2832 = vunpack.c.l.b16 %v732
    %v2833 = vunpack.c.h.b16 %v732
    %v2834 = vunpack.c.l.b16 %v733
    %v2835 = vunpack.c.h.b16 %v733
    %v2836 = vunpack.c.l.b16 %v734
    %v2837 = vunpack.c.h.b16 %v734
    %v2838 = vunpack.c.l.b16 %v735
    %v2839 = vunpack.c.h.b16 %v735
    %v2840 = vunpack.c.l.b16 %v736
    %v2841 = vunpack.c.h.b16 %v736
    %v2842 = vunpack.c.l.b16 %v737
    %v2843 = vunpack.c.h.b16 %v737
    %v2844 = vunpack.c.l.b16 %v738
    %v2845 = vunpack.c.h.b16 %v738
    %v2846 = vunpack.c.l.b16 %v739
    %v2847 = vunpack.c.h.b16 %v739
    %v2848 = vunpack.c.l.b16 %v740
    %v2849 = vunpack.c.h.b16 %v740
    %v2850 = vunpack.c.l.b16 %v741
    %v2851 = vunpack.c.h.b16 %v741
    %v2852 = vunpack.c.l.b16 %v742
    %v2853 = vunpack.c.h.b16 %v742
    %v2854 = vunpack.c.l.b16 %v743
    %v2855 = vunpack.c.h.b16 %v743
    %v2856 = vunpack.c.l.b16 %v744
    %v2857 = vunpack.c.h.b16 %v744
    %v2858 = vunpack.c.l.b16 %v745
    %v2859 = vunpack.c.h.b16 %v745
    %v2860 = vunpack.c.l.b16 %v746
    %v2861 = vunpack.c.h.b16 %v746
    %v2862 = vunpack.c.l.b16 %v747
    %v2863 = vunpack.c.h.b16 %v747
    %v2864 = vunpack.c.l.b16 %v748
    %v2865 = vunpack.c.h.b16 %v748
    %v2866 = vunpack.c.l.b16 %v749
    %v2867 = vunpack.c.h.b16 %v749
    %v2868 = vunpack.c.l.b16 %v750
    %v2869 = vunpack.c.h.b16 %v750
    %v2870 = vunpack.c.l.b16 %v751
    %v2871 = vunpack.c.h.b16 %v751
    %v2872 = vunpack.c.l.b16 %v752
    %v2873 = vunpack.c.h.b16 %v752
    %v2874 = vunpack.c.l.b16 %v753
    %v2875 = vunpack.c.h.b16 %v753
    %v2876 = vunpack.c.l.b16 %v754
    %v2877 = vunpack.c.h.b16 %v754
    %v2878 = vunpack.c.l.b16 %v755
    %v2879 = vunpack.c.h.b16 %v755
    %v2880 = vunpack.c.l.b16 %v756
    %v2881 = vunpack.c.h.b16 %v756
    %v2882 = vunpack.c.l.b16 %v757
    %v2883 = vunpack.c.h.b16 %v757
    %v2884 = vunpack.c.l.b16 %v758
    %v2885 = vunpack.c.h.b16 %v758
    %v2886 = vunpack.c.l.b16 %v759
    %v2887 = vunpack.c.h.b16 %v759
    %v2888 = vunpack.c.l.b16 %v760
    %v2889 = vunpack.c.h.b16 %v760
    %v2890 = vunpack.c.l.b16 %v761
    %v2891 = vunpack.c.h.b16 %v761
    %v2892 = vunpack.c.l.b16 %v762
    %v2893 = vunpack.c.h.b16 %v762
    %v2894 = vunpack.c.l.b16 %v763
    %v2895 = vunpack.c.h.b16 %v763
    %v2896 = vunpack.c.l.b16 %v764
    %v2897 = vunpack.c.h.b16 %v764
    %v2898 = vunpack.c.l.b16 %v765
    %v2899 = vunpack.c.h.b16 %v765
    %v2900 = vunpack.c.l.b16 %v766
    %v2901 = vunpack.c.h.b16 %v766
    %v2902 = vunpack.c.l.b16 %v767
    %v2903 = vunpack.c.h.b16 %v767
    %v2904 = vunpack.c.l.b16 %v768
    %v2905 = vunpack.c.h.b16 %v768
    %v2906 = vunpack.c.l.b16 %v769
    %v2907 = vunpack.c.h.b16 %v769
    %v2908 = vunpack.c.l.b16 %v770
    %v2909 = vunpack.c.h.b16 %v770
    %v2910 = vunpack.c.l.b16 %v771
    %v2911 = vunpack.c.h.b16 %v771
    %v2912 = vunpack.c.l.b16 %v772
    %v2913 = vunpack.c.h.b16 %v772
    %v2914 = vunpack.c.l.b16 %v773
    %v2915 = vunpack.c.h.b16 %v773
    %v2916 = vunpack.c.l.b16 %v774
    %v2917 = vunpack.c.h.b16 %v774
    %v2918 = vunpack.c.l.b16 %v775
    %v2919 = vunpack.c.h.b16 %v775
    %v2920 = vunpack.c.l.b16 %v776
    %v2921 = vunpack.c.h.b16 %v776
    %v2922 = vunpack.c.l.b16 %v777
    %v2923 = vunpack.c.h.b16 %v777
    %v2924 = vunpack.c.l.b16 %v778
    %v2925 = vunpack.c.h.b16 %v778
    %v2926 = vunpack.c.l.b16 %v779
    %v2927 = vunpack.c.h.b16 %v779
    %v2928 = vunpack.c.l.b16 %v780
    %v2929 = vunpack.c.h.b16 %v780
    %v2930 = vunpack.c.l.b16 %v781
    %v2931 = vunpack.c.h.b16 %v781
    %v2932 = vunpack.c.l.b16 %v782
    %v2933 = vunpack.c.h.b16 %v782
    %v2934 = vunpack.c.l.b16 %v783
    %v2935 = vunpack.c.h.b16 %v783
    %v2936 = vunpack.c.l.b16 %v784
    %v2937 = vunpack.c.h.b16 %v784
    %v2938 = vunpack.c.l.b16 %v785
    %v2939 = vunpack.c.h.b16 %v785
    %v2940 = vunpack.c.l.b16 %v786
    %v2941 = vunpack.c.h.b16 %v786
    %v2942 = vunpack.c.l.b16 %v787
    %v2943 = vunpack.c.h.b16 %v787
    %v2944 = vunpack.c.l.b16 %v788
    %v2945 = vunpack.c.h.b16 %v788
    %v2946 = vunpack.c.l.b16 %v789
    %v2947 = vunpack.c.h.b16 %v789
    %v2948 = vunpack.c.l.b16 %v790
    %v2949 = vunpack.c.h.b16 %v790
    %v2950 = vunpack.c.l.b16 %v791
    %v2951 = vunpack.c.h.b16 %v791
    %v2952 = vunpack.c.l.b16 %v792
    %v2953 = vunpack.c.h.b16 %v792
    %v2954 = vunpack.c.l.b16 %v793
    %v2955 = vunpack.c.h.b16 %v793
    %v2956 = vunpack.c.l.b16 %v794
    %v2957 = vunpack.c.h.b16 %v794
    %v2958 = vunpack.c.l.b16 %v795
    %v2959 = vunpack.c.h.b16 %v795
    %v2960 = vunpack.c.l.b16 %v796
    %v2961 = vunpack.c.h.b16 %v796
    %v2962 = vunpack.c.l.b16 %v797
    %v2963 = vunpack.c.h.b16 %v797
    %v2964 = vunpack.c.l.b16 %v798
    %v2965 = vunpack.c.h.b16 %v798
    %v2966 = vunpack.c.l.b16 %v799
    %v2967 = vunpack.c.h.b16 %v799
    %v2968 = vunpack.c.l.b16 %v800
    %v2969 = vunpack.c.h.b16 %v800
    %v2970 = vunpack.c.l.b16 %v801
    %v2971 = vunpack.c.h.b16 %v801
    %v2972 = vunpack.c.l.b16 %v802
    %v2973 = vunpack.c.h.b16 %v802
    %v2974 = vunpack.c.l.b16 %v803
    %v2975 = vunpack.c.h.b16 %v803
    %v2976 = vunpack.c.l.b16 %v804
    %v2977 = vunpack.c.h.b16 %v804
    %v2978 = vunpack.c.l.b16 %v805
    %v2979 = vunpack.c.h.b16 %v805
    %v2980 = vunpack.c.l.b16 %v806
    %v2981 = vunpack.c.h.b16 %v806
    %v2982 = vunpack.c.l.b16 %v807
    %v2983 = vunpack.c.h.b16 %v807
    %v2984 = vunpack.c.l.b16 %v808
    %v2985 = vunpack.c.h.b16 %v808
    %v2986 = vunpack.c.l.b16 %v809
    %v2987 = vunpack.c.h.b16 %v809
    %v2988 = vunpack.c.l.b16 %v810
    %v2989 = vunpack.c.h.b16 %v810
    %v2990 = vunpack.c.l.b16 %v811
    %v2991 = vunpack.c.h.b16 %v811
    %v2992 = vunpack.c.l.b16 %v812
    %v2993 = vunpack.c.h.b16 %v812
    %v2994 = vunpack.c.l.b16 %v813
    %v2995 = vunpack.c.h.b16 %v813
    %v2996 = vunpack.c.l.b16 %v814
    %v2997 = vunpack.c.h.b16 %v814
    %v2998 = vunpack.c.l.b16 %v815
    %v2999 = vunpack.c.h.b16 %v815
    %v3000 = vunpack.c.l.b16 %v816
    %v3001 = vunpack.c.h.b16 %v816
    %v3002 = vunpack.c.l.b16 %v817
    %v3003 = vunpack.c.h.b16 %v817
    %v3004 = vunpack.c.l.b16 %v818
    %v3005 = vunpack.c.h.b16 %v818
    %v3006 = vunpack.c.l.b16 %v819
    %v3007 = vunpack.c.h.b16 %v819
    %v3008 = vunpack.c.l.b16 %v820
    %v3009 = vunpack.c.h.b16 %v820
    %v3010 = vunpack.c.l.b16 %v821
    %v3011 = vunpack.c.h.b16 %v821
    %v3012 = vunpack.c.l.b16 %v822
    %v3013 = vunpack.c.h.b16 %v822
    %v3014 = vunpack.c.l.b16 %v823
    %v3015 = vunpack.c.h.b16 %v823
    %v3016 = vunpack.c.l.b16 %v824
    %v3017 = vunpack.c.h.b16 %v824
    %v3018 = vunpack.c.l.b16 %v825
    %v3019 = vunpack.c.h.b16 %v825
    %v3020 = vunpack.c.l.b16 %v826
    %v3021 = vunpack.c.h.b16 %v826
    %v3022 = vunpack.c.l.b16 %v827
    %v3023 = vunpack.c.h.b16 %v827
    %v3024 = vunpack.c.l.b16 %v828
    %v3025 = vunpack.c.h.b16 %v828
    %v3026 = vunpack.c.l.b16 %v829
    %v3027 = vunpack.c.h.b16 %v829
    %v3028 = vunpack.c.l.b16 %v830
    %v3029 = vunpack.c.h.b16 %v830
    %v3030 = vunpack.c.l.b16 %v831
    %v3031 = vunpack.c.h.b16 %v831
    %v3032 = vunpack.c.l.b16 %v832
    %v3033 = vunpack.c.h.b16 %v832
    %v3034 = vunpack.c.l.b16 %v833
    %v3035 = vunpack.c.h.b16 %v833
    %v3036 = vunpack.c.l.b16 %v834
    %v3037 = vunpack.c.h.b16 %v834
    %v3038 = vunpack.c.l.b16 %v835
    %v3039 = vunpack.c.h.b16 %v835
    %v3040 = vunpack.c.l.b16 %v836
    %v3041 = vunpack.c.h.b16 %v836
    %v3042 = vunpack.c.l.b16 %v837
    %v3043 = vunpack.c.h.b16 %v837
    %v3044 = vunpack.c.l.b16 %v838
    %v3045 = vunpack.c.h.b16 %v838
    %v3046 = vunpack.c.l.b16 %v839
    %v3047 = vunpack.c.h.b16 %v839
    %v3048 = vunpack.c.l.b16 %v840
    %v3049 = vunpack.c.h.b16 %v840
    %v3050 = vunpack.c.l.b16 %v841
    %v3051 = vunpack.c.h.b16 %v841
    %v3052 = vunpack.c.l.b16 %v842
    %v3053 = vunpack.c.h.b16 %v842
    %v3054 = vunpack.c.l.b16 %v843
    %v3055 = vunpack.c.h.b16 %v843
    %v3056 = vunpack.c.l.b16 %v844
    %v3057 = vunpack.c.h.b16 %v844
    %v3058 = vunpack.c.l.b16 %v845
    %v3059 = vunpack.c.h.b16 %v845
    %v3060 = vunpack.c.l.b16 %v846
    %v3061 = vunpack.c.h.b16 %v846
    %v3062 = vunpack.c.l.b16 %v847
    %v3063 = vunpack.c.h.b16 %v847
    %v3064 = vunpack.c.l.b16 %v848
    %v3065 = vunpack.c.h.b16 %v848
    %v3066 = vunpack.c.l.b16 %v849
    %v3067 = vunpack.c.h.b16 %v849
    %v3068 = vunpack.c.l.b16 %v850
    %v3069 = vunpack.c.h.b16 %v850
    %v3070 = vunpack.c.l.b16 %v851
    %v3071 = vunpack.c.h.b16 %v851
    %v3072 = vunpack.c.l.b16 %v852
    %v3073 = vunpack.c.h.b16 %v852
    %v3074 = vunpack.c.l.b16 %v853
    %v3075 = vunpack.c.h.b16 %v853
    %v3076 = vunpack.c.l.b16 %v854
    %v3077 = vunpack.c.h.b16 %v854
    %v3078 = vunpack.c.l.b16 %v855
    %v3079 = vunpack.c.h.b16 %v855
    %v3080 = vunpack.c.l.b16 %v856
    %v3081 = vunpack.c.h.b16 %v856
    %v3082 = vunpack.c.l.b16 %v857
    %v3083 = vunpack.c.h.b16 %v857
    %v3084 = vunpack.c.l.b16 %v858
    %v3085 = vunpack.c.h.b16 %v858
    %v3086 = vunpack.c.l.b16 %v859
    %v3087 = vunpack.c.h.b16 %v859
    %v3088 = vunpack.c.l.b16 %v860
    %v3089 = vunpack.c.h.b16 %v860
    %v3090 = vunpack.c.l.b16 %v861
    %v3091 = vunpack.c.h.b16 %v861
    %v3092 = vunpack.c.l.b16 %v862
    %v3093 = vunpack.c.h.b16 %v862
    %v3094 = vunpack.c.l.b16 %v863
    %v3095 = vunpack.c.h.b16 %v863
    %v3096 = vunpack.c.l.b16 %v864
    %v3097 = vunpack.c.h.b16 %v864
    %v3098 = vunpack.c.l.b16 %v865
    %v3099 = vunpack.c.h.b16 %v865
    %v3100 = vunpack.c.l.b16 %v866
    %v3101 = vunpack.c.h.b16 %v866
    %v3102 = vunpack.c.l.b16 %v867
    %v3103 = vunpack.c.h.b16 %v867
    %v3104 = vunpack.c.l.b16 %v868
    %v3105 = vunpack.c.h.b16 %v868
    %v3106 = vunpack.c.l.b16 %v869
    %v3107 = vunpack.c.h.b16 %v869
    %v3108 = vunpack.c.l.b16 %v870
    %v3109 = vunpack.c.h.b16 %v870
    %v3110 = vunpack.c.l.b16 %v871
    %v3111 = vunpack.c.h.b16 %v871
    %v3112 = vunpack.c.l.b16 %v872
    %v3113 = vunpack.c.h.b16 %v872
    %v3114 = vunpack.c.l.b16 %v873
    %v3115 = vunpack.c.h.b16 %v873
    %v3116 = vunpack.c.l.b16 %v874
    %v3117 = vunpack.c.h.b16 %v874
    %v3118 = vunpack.c.l.b16 %v875
    %v3119 = vunpack.c.h.b16 %v875
    %v3120 = vunpack.c.l.b16 %v876
    %v3121 = vunpack.c.h.b16 %v876
    %v3122 = vunpack.c.l.b16 %v877
    %v3123 = vunpack.c.h.b16 %v877
    %v3124 = vunpack.c.l.b16 %v878
    %v3125 = vunpack.c.h.b16 %v878
    %v3126 = vunpack.c.l.b16 %v879
    %v3127 = vunpack.c.h.b16 %v879
    %v3128 = vunpack.c.l.b16 %v880
    %v3129 = vunpack.c.h.b16 %v880
    %v3130 = vunpack.c.l.b16 %v881
    %v3131 = vunpack.c.h.b16 %v881
    %v3132 = vunpack.c.l.b16 %v882
    %v3133 = vunpack.c.h.b16 %v882
    %v3134 = vunpack.c.l.b16 %v883
    %v3135 = vunpack.c.h.b16 %v883
    %v3136 = vunpack.c.l.b16 %v884
    %v3137 = vunpack.c.h.b16 %v884
    %v3138 = vunpack.c.l.b16 %v885
    %v3139 = vunpack.c.h.b16 %v885
    %v3140 = vunpack.c.l.b16 %v886
    %v3141 = vunpack.c.h.b16 %v886
    %v3142 = vunpack.c.l.b16 %v887
    %v3143 = vunpack.c.h.b16 %v887
    %v3144 = vunpack.c.l.b16 %v888
    %v3145 = vunpack.c.h.b16 %v888
    %v3146 = vunpack.c.l.b16 %v889
    %v3147 = vunpack.c.h.b16 %v889
    %v3148 = vunpack.c.l.b16 %v890
    %v3149 = vunpack.c.h.b16 %v890
    %v3150 = vunpack.c.l.b16 %v891
    %v3151 = vunpack.c.h.b16 %v891
    %v3152 = vunpack.c.l.b16 %v892
    %v3153 = vunpack.c.h.b16 %v892
    %v3154 = vunpack.c.l.b16 %v893
    %v3155 = vunpack.c.h.b16 %v893
    %v3156 = vunpack.c.l.b16 %v894
    %v3157 = vunpack.c.h.b16 %v894
    %v3158 = vunpack.c.l.b16 %v895
    %v3159 = vunpack.c.h.b16 %v895
    %v3160 = vunpack.c.l.b16 %v896
    %v3161 = vunpack.c.h.b16 %v896
    %v3162 = vunpack.c.l.b16 %v897
    %v3163 = vunpack.c.h.b16 %v897
    %v3164 = vunpack.c.l.b16 %v898
    %v3165 = vunpack.c.h.b16 %v898
    %v3166 = vunpack.c.l.b16 %v899
    %v3167 = vunpack.c.h.b16 %v899
    %v3168 = vunpack.c.l.b16 %v900
    %v3169 = vunpack.c.h.b16 %v900
    %v3170 = vunpack.c.l.b16 %v901
    %v3171 = vunpack.c.h.b16 %v901
    %v3172 = vunpack.c.l.b16 %v902
    %v3173 = vunpack.c.h.b16 %v902
    %v3174 = vunpack.c.l.b16 %v903
    %v3175 = vunpack.c.h.b16 %v903
    %v3176 = vunpack.c.l.b16 %v904
    %v3177 = vunpack.c.h.b16 %v904
    %v3178 = vunpack.c.l.b16 %v905
    %v3179 = vunpack.c.h.b16 %v905
    %v3180 = vunpack.c.l.b16 %v906
    %v3181 = vunpack.c.h.b16 %v906
    %v3182 = vunpack.c.l.b16 %v907
    %v3183 = vunpack.c.h.b16 %v907
    %v3184 = vunpack.c.l.b16 %v908
    %v3185 = vunpack.c.h.b16 %v908
    %v3186 = vunpack.c.l.b16 %v909
    %v3187 = vunpack.c.h.b16 %v909
    %v3188 = vunpack.c.l.b16 %v910
    %v3189 = vunpack.c.h.b16 %v910
    %v3190 = vunpack.c.l.b16 %v911
    %v3191 = vunpack.c.h.b16 %v911
    %v3192 = vunpack.c.l.b16 %v912
    %v3193 = vunpack.c.h.b16 %v912
    %v3194 = vunpack.c.l.b16 %v913
    %v3195 = vunpack.c.h.b16 %v913
    %v3196 = vunpack.c.l.b16 %v914
    %v3197 = vunpack.c.h.b16 %v914
    %v3198 = vunpack.c.l.b16 %v915
    %v3199 = vunpack.c.h.b16 %v915
    %v3200 = vunpack.c.l.b16 %v916
    %v3201 = vunpack.c.h.b16 %v916
    %v3202 = vunpack.c.l.b16 %v917
    %v3203 = vunpack.c.h.b16 %v917
    %v3204 = vunpack.c.l.b16 %v918
    %v3205 = vunpack.c.h.b16 %v918
    %v3206 = vunpack.c.l.b16 %v919
    %v3207 = vunpack.c.h.b16 %v919
    %v3208 = vunpack.c.l.b16 %v920
    %v3209 = vunpack.c.h.b16 %v920
    %v3210 = vunpack.c.l.b16 %v921
    %v3211 = vunpack.c.h.b16 %v921
    %v3212 = vunpack.c.l.b16 %v922
    %v3213 = vunpack.c.h.b16 %v922
    %v3214 = vunpack.c.l.b16 %v923
    %v3215 = vunpack.c.h.b16 %v923
    %v3216 = vunpack.c.l.b16 %v924
    %v3217 = vunpack.c.h.b16 %v924
    %v3218 = vunpack.c.l.b16 %v925
    %v3219 = vunpack.c.h.b16 %v925
    %v3220 = vunpack.c.l.b16 %v926
    %v3221 = vunpack.c.h.b16 %v926
    %v3222 = vunpack.c.l.b16 %v927
    %v3223 = vunpack.c.h.b16 %v927
    %v3224 = vunpack.c.l.b16 %v928
    %v3225 = vunpack.c.h.b16 %v928
    %v3226 = vunpack.c.l.b16 %v929
    %v3227 = vunpack.c.h.b16 %v929
    %v3228 = vunpack.c.l.b16 %v930
    %v3229 = vunpack.c.h.b16 %v930
    %v3230 = vunpack.c.l.b16 %v931
    %v3231 = vunpack.c.h.b16 %v931
    %v3232 = vunpack.c.l.b16 %v932
    %v3233 = vunpack.c.h.b16 %v932
    %v3234 = vunpack.c.l.b16 %v933
    %v3235 = vunpack.c.h.b16 %v933
    %v3236 = vunpack.c.l.b16 %v934
    %v3237 = vunpack.c.h.b16 %v934
    %v3238 = vunpack.c.l.b16 %v935
    %v3239 = vunpack.c.h.b16 %v935
    %v3240 = vunpack.c.l.b16 %v936
    %v3241 = vunpack.c.h.b16 %v936
    %v3242 = vunpack.c.l.b16 %v937
    %v3243 = vunpack.c.h.b16 %v937
    %v3244 = vunpack.c.l.b16 %v938
    %v3245 = vunpack.c.h.b16 %v938
    %v3246 = vunpack.c.l.b16 %v939
    %v3247 = vunpack.c.h.b16 %v939
    %v3248 = vunpack.c.l.b16 %v940
    %v3249 = vunpack.c.h.b16 %v940
    %v3250 = vunpack.c.l.b16 %v941
    %v3251 = vunpack.c.h.b16 %v941
    %v3252 = vunpack.c.l.b16 %v942
    %v3253 = vunpack.c.h.b16 %v942
    %v3254 = vunpack.c.l.b16 %v943
    %v3255 = vunpack.c.h.b16 %v943
    %v3256 = vunpack.c.l.b16 %v944
    %v3257 = vunpack.c.h.b16 %v944
    %v3258 = vunpack.c.l.b16 %v945
    %v3259 = vunpack.c.h.b16 %v945
    %v3260 = vunpack.c.l.b16 %v946
    %v3261 = vunpack.c.h.b16 %v946
    %v3262 = vunpack.c.l.b16 %v947
    %v3263 = vunpack.c.h.b16 %v947
    %v3264 = vunpack.c.l.b16 %v948
    %v3265 = vunpack.c.h.b16 %v948
    %v3266 = vunpack.c.l.b16 %v949
    %v3267 = vunpack.c.h.b16 %v949
    %v3268 = vunpack.c.l.b16 %v950
    %v3269 = vunpack.c.h.b16 %v950
    %v3270 = vunpack.c.l.b16 %v951
    %v3271 = vunpack.c.h.b16 %v951
    %v3272 = vunpack.c.l.b16 %v952
    %v3273 = vunpack.c.h.b16 %v952
    %v3274 = vunpack.c.l.b16 %v953
    %v3275 = vunpack.c.h.b16 %v953
    %v3276 = vunpack.c.l.b16 %v954
    %v3277 = vunpack.c.h.b16 %v954
    %v3278 = vunpack.c.l.b16 %v955
    %v3279 = vunpack.c.h.b16 %v955
    %v3280 = vunpack.c.l.b16 %v956
    %v3281 = vunpack.c.h.b16 %v956
    %v3282 = vunpack.c.l.b16 %v957
    %v3283 = vunpack.c.h.b16 %v957
    %v3284 = vpack.c.b16 %v1752, %v1748
    %v3285 = vpack.c.b16 %v1753, %v1749
    %v3286 = vpack.c.b16 %v1754, %v1750
    %v3287 = vpack.c.b16 %v1755, %v1751
    %v3288 = vpack.c.b16 %v1760, %v1756
    %v3289 = vpack.c.b16 %v1761, %v1757
    %v3290 = vpack.c.b16 %v1762, %v1758
    %v3291 = vpack.c.b16 %v1763, %v1759
    %v3292 = vpack.c.b16 %v1768, %v1764
    %v3293 = vpack.c.b16 %v1769, %v1765
    %v3294 = vpack.c.b16 %v1770, %v1766
    %v3295 = vpack.c.b16 %v1771, %v1767
    %v3296 = vpack.c.b16 %v1776, %v1772
    %v3297 = vpack.c.b16 %v1777, %v1773
    %v3298 = vpack.c.b16 %v1778, %v1774
    %v3299 = vpack.c.b16 %v1779, %v1775
    %v3300 = vpack.c.b16 %v1784, %v1780
    %v3301 = vpack.c.b16 %v1785, %v1781
    %v3302 = vpack.c.b16 %v1786, %v1782
    %v3303 = vpack.c.b16 %v1787, %v1783
    %v3304 = vpack.c.b16 %v1792, %v1788
    %v3305 = vpack.c.b16 %v1793, %v1789
    %v3306 = vpack.c.b16 %v1794, %v1790
    %v3307 = vpack.c.b16 %v1795, %v1791
    %v3308 = vpack.c.b16 %v1800, %v1796
    %v3309 = vpack.c.b16 %v1801, %v1797
    %v3310 = vpack.c.b16 %v1802, %v1798
    %v3311 = vpack.c.b16 %v1803, %v1799
    %v3312 = vpack.c.b16 %v1808, %v1804
    %v3313 = vpack.c.b16 %v1809, %v1805
    %v3314 = vpack.c.b16 %v1810, %v1806
    %v3315 = vpack.c.b16 %v1811, %v1807
    %v3316 = vpack.c.b16 %v1816, %v1812
    %v3317 = vpack.c.b16 %v1817, %v1813
    %v3318 = vpack.c.b16 %v1818, %v1814
    %v3319 = vpack.c.b16 %v1819, %v1815
    %v3320 = vpack.c.b16 %v1824, %v1820
    %v3321 = vpack.c.b16 %v1825, %v1821
    %v3322 = vpack.c.b16 %v1826, %v1822
    %v3323 = vpack.c.b16 %v1827, %v1823
    %v3324 = vpack.c.b16 %v1832, %v1828
    %v3325 = vpack.c.b16 %v1833, %v1829
    %v3326 = vpack.c.b16 %v1834, %v1830
    %v3327 = vpack.c.b16 %v1835, %v1831
    %v3328 = vpack.c.b16 %v1840, %v1836
    %v3329 = vpack.c.b16 %v1841, %v1837
    %v3330 = vpack.c.b16 %v1842, %v1838
    %v3331 = vpack.c.b16 %v1843, %v1839
    %v3332 = vpack.c.b16 %v1848, %v1844
    %v3333 = vpack.c.b16 %v1849, %v1845
    %v3334 = vpack.c.b16 %v1850, %v1846
    %v3335 = vpack.c.b16 %v1851, %v1847
    %v3336 = vpack.c.b16 %v1856, %v1852
    %v3337 = vpack.c.b16 %v1857, %v1853
    %v3338 = vpack.c.b16 %v1858, %v1854
    %v3339 = vpack.c.b16 %v1859, %v1855
    %v3340 = vpack.c.b16 %v1864, %v1860
    %v3341 = vpack.c.b16 %v1865, %v1861
    %v3342 = vpack.c.b16 %v1866, %v1862
    %v3343 = vpack.c.b16 %v1867, %v1863
    %v3344 = vpack.c.b16 %v1872, %v1868
    %v3345 = vpack.c.b16 %v1873, %v1869
    %v3346 = vpack.c.b16 %v1874, %v1870
    %v3347 = vpack.c.b16 %v1875, %v1871
    %v3348 = vpack.c.b16 %v1880, %v1876
    %v3349 = vpack.c.b16 %v1881, %v1877
    %v3350 = vpack.c.b16 %v1882, %v1878
    %v3351 = vpack.c.b16 %v1883, %v1879
    %v3352 = vpack.c.b16 %v1888, %v1884
    %v3353 = vpack.c.b16 %v1889, %v1885
    %v3354 = vpack.c.b16 %v1890, %v1886
    %v3355 = vpack.c.b16 %v1891, %v1887
    %v3356 = vpack.c.b16 %v1896, %v1892
    %v3357 = vpack.c.b16 %v1897, %v1893
    %v3358 = vpack.c.b16 %v1898, %v1894
    %v3359 = vpack.c.b16 %v1899, %v1895
    %v3360 = vpack.c.b16 %v1904, %v1900
    %v3361 = vpack.c.b16 %v1905, %v1901
    %v3362 = vpack.c.b16 %v1906, %v1902
    %v3363 = vpack.c.b16 %v1907, %v1903
    %v3364 = vpack.c.b16 %v1912, %v1908
    %v3365 = vpack.c.b16 %v1913, %v1909
    %v3366 = vpack.c.b16 %v1914, %v1910
    %v3367 = vpack.c.b16 %v1915, %v1911
    %v3368 = vpack.c.b16 %v1920, %v1916
    %v3369 = vpack.c.b16 %v1921, %v1917
    %v3370 = vpack.c.b16 %v1922, %v1918
    %v3371 = vpack.c.b16 %v1923, %v1919
    %v3372 = vpack.c.b16 %v1928, %v1924
    %v3373 = vpack.c.b16 %v1929, %v1925
    %v3374 = vpack.c.b16 %v1930, %v1926
    %v3375 = vpack.c.b16 %v1931, %v1927
    %v3376 = vpack.c.b16 %v1936, %v1932
    %v3377 = vpack.c.b16 %v1937, %v1933
    %v3378 = vpack.c.b16 %v1938, %v1934
    %v3379 = vpack.c.b16 %v1939, %v1935
    %v3380 = vpack.c.b16 %v1944, %v1940
    %v3381 = vpack.c.b16 %v1945, %v1941
    %v3382 = vpack.c.b16 %v1946, %v1942
    %v3383 = vpack.c.b16 %v1947, %v1943
    %v3384 = vpack.c.b16 %v1952, %v1948
    %v3385 = vpack.c.b16 %v1953, %v1949
    %v3386 = vpack.c.b16 %v1954, %v1950
    %v3387 = vpack.c.b16 %v1955, %v1951
    %v3388 = vpack.c.b16 %v1960, %v1956
    %v3389 = vpack.c.b16 %v1961, %v1957
    %v3390 = vpack.c.b16 %v1962, %v1958
    %v3391 = vpack.c.b16 %v1963, %v1959
    %v3392 = vpack.c.b16 %v1968, %v1964
    %v3393 = vpack.c.b16 %v1969, %v1965
    %v3394 = vpack.c.b16 %v1970, %v1966
    %v3395 = vpack.c.b16 %v1971, %v1967
    %v3396 = vpack.c.b16 %v1976, %v1972
    %v3397 = vpack.c.b16 %v1977, %v1973
    %v3398 = vpack.c.b16 %v1978, %v1974
    %v3399 = vpack.c.b16 %v1979, %v1975
    %v3400 = vpack.c.b16 %v1984, %v1980
    %v3401 = vpack.c.b16 %v1985, %v1981
    %v3402 = vpack.c.b16 %v1986, %v1982
    %v3403 = vpack.c.b16 %v1987, %v1983
    %v3404 = vpack.c.b16 %v1992, %v1988
    %v3405 = vpack.c.b16 %v1993, %v1989
    %v3406 = vpack.c.b16 %v1994, %v1990
    %v3407 = vpack.c.b16 %v1995, %v1991
    %v3408 = vpack.c.b16 %v2000, %v1996
    %v3409 = vpack.c.b16 %v2001, %v1997
    %v3410 = vpack.c.b16 %v2002, %v1998
    %v3411 = vpack.c.b16 %v2003, %v1999
    %v3412 = vpack.c.b16 %v2008, %v2004
    %v3413 = vpack.c.b16 %v2009, %v2005
    %v3414 = vpack.c.b16 %v2010, %v2006
    %v3415 = vpack.c.b16 %v2011, %v2007
    %v3416 = vpack.c.b16 %v2016, %v2012
    %v3417 = vpack.c.b16 %v2017, %v2013
    %v3418 = vpack.c.b16 %v2018, %v2014
    %v3419 = vpack.c.b16 %v2019, %v2015
    %v3420 = vpack.c.b16 %v2024, %v2020
    %v3421 = vpack.c.b16 %v2025, %v2021
    %v3422 = vpack.c.b16 %v2026, %v2022
    %v3423 = vpack.c.b16 %v2027, %v2023
    %v3424 = vpack.c.b16 %v2032, %v2028
    %v3425 = vpack.c.b16 %v2033, %v2029
    %v3426 = vpack.c.b16 %v2034, %v2030
    %v3427 = vpack.c.b16 %v2035, %v2031
    %v3428 = vpack.c.b16 %v2040, %v2036
    %v3429 = vpack.c.b16 %v2041, %v2037
    %v3430 = vpack.c.b16 %v2042, %v2038
    %v3431 = vpack.c.b16 %v2043, %v2039
    %v3432 = vpack.c.b16 %v2048, %v2044
    %v3433 = vpack.c.b16 %v2049, %v2045
    %v3434 = vpack.c.b16 %v2050, %v2046
    %v3435 = vpack.c.b16 %v2051, %v2047
    %v3436 = vpack.c.b16 %v2056, %v2052
    %v3437 = vpack.c.b16 %v2057, %v2053
    %v3438 = vpack.c.b16 %v2058, %v2054
    %v3439 = vpack.c.b16 %v2059, %v2055
    %v3440 = vpack.c.b16 %v2064, %v2060
    %v3441 = vpack.c.b16 %v2065, %v2061
    %v3442 = vpack.c.b16 %v2066, %v2062
    %v3443 = vpack.c.b16 %v2067, %v2063
    %v3444 = vpack.c.b16 %v2072, %v2068
    %v3445 = vpack.c.b16 %v2073, %v2069
    %v3446 = vpack.c.b16 %v2074, %v2070
    %v3447 = vpack.c.b16 %v2075, %v2071
    %v3448 = vpack.c.b16 %v2080, %v2076
    %v3449 = vpack.c.b16 %v2081, %v2077
    %v3450 = vpack.c.b16 %v2082, %v2078
    %v3451 = vpack.c.b16 %v2083, %v2079
    %v3452 = vpack.c.b16 %v2088, %v2084
    %v3453 = vpack.c.b16 %v2089, %v2085
    %v3454 = vpack.c.b16 %v2090, %v2086
    %v3455 = vpack.c.b16 %v2091, %v2087
    %v3456 = vpack.c.b16 %v2096, %v2092
    %v3457 = vpack.c.b16 %v2097, %v2093
    %v3458 = vpack.c.b16 %v2098, %v2094
    %v3459 = vpack.c.b16 %v2099, %v2095
    %v3460 = vpack.c.b16 %v2104, %v2100
    %v3461 = vpack.c.b16 %v2105, %v2101
    %v3462 = vpack.c.b16 %v2106, %v2102
    %v3463 = vpack.c.b16 %v2107, %v2103
    %v3464 = vpack.c.b16 %v2112, %v2108
    %v3465 = vpack.c.b16 %v2113, %v2109
    %v3466 = vpack.c.b16 %v2114, %v2110
    %v3467 = vpack.c.b16 %v2115, %v2111
    %v3468 = vpack.c.b16 %v2120, %v2116
    %v3469 = vpack.c.b16 %v2121, %v2117
    %v3470 = vpack.c.b16 %v2122, %v2118
    %v3471 = vpack.c.b16 %v2123, %v2119
    %v3472 = vpack.c.b16 %v2128, %v2124
    %v3473 = vpack.c.b16 %v2129, %v2125
    %v3474 = vpack.c.b16 %v2130, %v2126
    %v3475 = vpack.c.b16 %v2131, %v2127
    %v3476 = vpack.c.b16 %v2136, %v2132
    %v3477 = vpack.c.b16 %v2137, %v2133
    %v3478 = vpack.c.b16 %v2138, %v2134
    %v3479 = vpack.c.b16 %v2139, %v2135
    %v3480 = vpack.c.b16 %v2144, %v2140
    %v3481 = vpack.c.b16 %v2145, %v2141
    %v3482 = vpack.c.b16 %v2146, %v2142
    %v3483 = vpack.c.b16 %v2147, %v2143
    %v3484 = vpack.c.b16 %v2152, %v2148
    %v3485 = vpack.c.b16 %v2153, %v2149
    %v3486 = vpack.c.b16 %v2154, %v2150
    %v3487 = vpack.c.b16 %v2155, %v2151
    %v3488 = vpack.c.b16 %v2160, %v2156
    %v3489 = vpack.c.b16 %v2161, %v2157
    %v3490 = vpack.c.b16 %v2162, %v2158
    %v3491 = vpack.c.b16 %v2163, %v2159
    %v3492 = vpack.c.b16 %v2168, %v2164
    %v3493 = vpack.c.b16 %v2169, %v2165
    %v3494 = vpack.c.b16 %v2170, %v2166
    %v3495 = vpack.c.b16 %v2171, %v2167
    %v3496 = vpack.c.b16 %v2176, %v2172
    %v3497 = vpack.c.b16 %v2177, %v2173
    %v3498 = vpack.c.b16 %v2178, %v2174
    %v3499 = vpack.c.b16 %v2179, %v2175
    %v3500 = vpack.c.b16 %v2184, %v2180
    %v3501 = vpack.c.b16 %v2185, %v2181
    %v3502 = vpack.c.b16 %v2186, %v2182
    %v3503 = vpack.c.b16 %v2187, %v2183
    %v3504 = vpack.c.b16 %v2192, %v2188
    %v3505 = vpack.c.b16 %v2193, %v2189
    %v3506 = vpack.c.b16 %v2194, %v2190
    %v3507 = vpack.c.b16 %v2195, %v2191
    %v3508 = vpack.c.b16 %v2200, %v2196
    %v3509 = vpack.c.b16 %v2201, %v2197
    %v3510 = vpack.c.b16 %v2202, %v2198
    %v3511 = vpack.c.b16 %v2203, %v2199
    %v3512 = vpack.c.b16 %v2208, %v2204
    %v3513 = vpack.c.b16 %v2209, %v2205
    %v3514 = vpack.c.b16 %v2210, %v2206
    %v3515 = vpack.c.b16 %v2211, %v2207
    %v3516 = vpack.c.b16 %v2216, %v2212
    %v3517 = vpack.c.b16 %v2217, %v2213
    %v3518 = vpack.c.b16 %v2218, %v2214
    %v3519 = vpack.c.b16 %v2219, %v2215
    %v3520 = vpack.c.b16 %v2224, %v2220
    %v3521 = vpack.c.b16 %v2225, %v2221
    %v3522 = vpack.c.b16 %v2226, %v2222
    %v3523 = vpack.c.b16 %v2227, %v2223
    %v3524 = vpack.c.b16 %v2232, %v2228
    %v3525 = vpack.c.b16 %v2233, %v2229
    %v3526 = vpack.c.b16 %v2234, %v2230
    %v3527 = vpack.c.b16 %v2235, %v2231
    %v3528 = vpack.c.b16 %v2240, %v2236
    %v3529 = vpack.c.b16 %v2241, %v2237
    %v3530 = vpack.c.b16 %v2242, %v2238
    %v3531 = vpack.c.b16 %v2243, %v2239
    %v3532 = vpack.c.b16 %v2248, %v2244
    %v3533 = vpack.c.b16 %v2249, %v2245
    %v3534 = vpack.c.b16 %v2250, %v2246
    %v3535 = vpack.c.b16 %v2251, %v2247
    %v3536 = vpack.c.b16 %v2256, %v2252
    %v3537 = vpack.c.b16 %v2257, %v2253
    %v3538 = vpack.c.b16 %v2258, %v2254
    %v3539 = vpack.c.b16 %v2259, %v2255
    %v3540 = vpack.c.b16 %v2264, %v2260
    %v3541 = vpack.c.b16 %v2265, %v2261
    %v3542 = vpack.c.b16 %v2266, %v2262
    %v3543 = vpack.c.b16 %v2267, %v2263
    %v3544 = vpack.c.b16 %v2272, %v2268
    %v3545 = vpack.c.b16 %v2273, %v2269
    %v3546 = vpack.c.b16 %v2274, %v2270
    %v3547 = vpack.c.b16 %v2275, %v2271
    %v3548 = vpack.c.b16 %v2280, %v2276
    %v3549 = vpack.c.b16 %v2281, %v2277
    %v3550 = vpack.c.b16 %v2282, %v2278
    %v3551 = vpack.c.b16 %v2283, %v2279
    %v3552 = vpack.c.b16 %v2288, %v2284
    %v3553 = vpack.c.b16 %v2289, %v2285
    %v3554 = vpack.c.b16 %v2290, %v2286
    %v3555 = vpack.c.b16 %v2291, %v2287
    %v3556 = vpack.c.b16 %v2296, %v2292
    %v3557 = vpack.c.b16 %v2297, %v2293
    %v3558 = vpack.c.b16 %v2298, %v2294
    %v3559 = vpack.c.b16 %v2299, %v2295
    %v3560 = vpack.c.b16 %v2304, %v2300
    %v3561 = vpack.c.b16 %v2305, %v2301
    %v3562 = vpack.c.b16 %v2306, %v2302
    %v3563 = vpack.c.b16 %v2307, %v2303
    %v3564 = vpack.c.b16 %v2312, %v2308
    %v3565 = vpack.c.b16 %v2313, %v2309
    %v3566 = vpack.c.b16 %v2314, %v2310
    %v3567 = vpack.c.b16 %v2315, %v2311
    %v3568 = vpack.c.b16 %v2320, %v2316
    %v3569 = vpack.c.b16 %v2321, %v2317
    %v3570 = vpack.c.b16 %v2322, %v2318
    %v3571 = vpack.c.b16 %v2323, %v2319
    %v3572 = vpack.c.b16 %v2328, %v2324
    %v3573 = vpack.c.b16 %v2329, %v2325
    %v3574 = vpack.c.b16 %v2330, %v2326
    %v3575 = vpack.c.b16 %v2331, %v2327
    %v3576 = vpack.c.b16 %v2336, %v2332
    %v3577 = vpack.c.b16 %v2337, %v2333
    %v3578 = vpack.c.b16 %v2338, %v2334
    %v3579 = vpack.c.b16 %v2339, %v2335
    %v3580 = vpack.c.b16 %v2344, %v2340
    %v3581 = vpack.c.b16 %v2345, %v2341
    %v3582 = vpack.c.b16 %v2346, %v2342
    %v3583 = vpack.c.b16 %v2347, %v2343
    %v3584 = vpack.c.b16 %v2352, %v2348
    %v3585 = vpack.c.b16 %v2353, %v2349
    %v3586 = vpack.c.b16 %v2354, %v2350
    %v3587 = vpack.c.b16 %v2355, %v2351
    %v3588 = vpack.c.b16 %v2360, %v2356
    %v3589 = vpack.c.b16 %v2361, %v2357
    %v3590 = vpack.c.b16 %v2362, %v2358
    %v3591 = vpack.c.b16 %v2363, %v2359
    %v3592 = vpack.c.b16 %v2368, %v2364
    %v3593 = vpack.c.b16 %v2369, %v2365
    %v3594 = vpack.c.b16 %v2370, %v2366
    %v3595 = vpack.c.b16 %v2371, %v2367
    %v3596 = vpack.c.b16 %v2376, %v2372
    %v3597 = vpack.c.b16 %v2377, %v2373
    %v3598 = vpack.c.b16 %v2378, %v2374
    %v3599 = vpack.c.b16 %v2379, %v2375
    %v3600 = vpack.c.b16 %v2384, %v2380
    %v3601 = vpack.c.b16 %v2385, %v2381
    %v3602 = vpack.c.b16 %v2386, %v2382
    %v3603 = vpack.c.b16 %v2387, %v2383
    %v3604 = vpack.c.b16 %v2392, %v2388
    %v3605 = vpack.c.b16 %v2393, %v2389
    %v3606 = vpack.c.b16 %v2394, %v2390
    %v3607 = vpack.c.b16 %v2395, %v2391
    %v3608 = vpack.c.b16 %v2400, %v2396
    %v3609 = vpack.c.b16 %v2401, %v2397
    %v3610 = vpack.c.b16 %v2402, %v2398
    %v3611 = vpack.c.b16 %v2403, %v2399
    %v3612 = vpack.c.b16 %v2408, %v2404
    %v3613 = vpack.c.b16 %v2409, %v2405
    %v3614 = vpack.c.b16 %v2410, %v2406
    %v3615 = vpack.c.b16 %v2411, %v2407
    %v3616 = vpack.c.b16 %v2416, %v2412
    %v3617 = vpack.c.b16 %v2417, %v2413
    %v3618 = vpack.c.b16 %v2418, %v2414
    %v3619 = vpack.c.b16 %v2419, %v2415
    %v3620 = vpack.c.b16 %v2424, %v2420
    %v3621 = vpack.c.b16 %v2425, %v2421
    %v3622 = vpack.c.b16 %v2426, %v2422
    %v3623 = vpack.c.b16 %v2427, %v2423
    %v3624 = vpack.c.b16 %v2432, %v2428
    %v3625 = vpack.c.b16 %v2433, %v2429
    %v3626 = vpack.c.b16 %v2434, %v2430
    %v3627 = vpack.c.b16 %v2435, %v2431
    %v3628 = vpack.c.b16 %v2440, %v2436
    %v3629 = vpack.c.b16 %v2441, %v2437
    %v3630 = vpack.c.b16 %v2442, %v2438
    %v3631 = vpack.c.b16 %v2443, %v2439
    %v3632 = vpack.c.b16 %v2448, %v2444
    %v3633 = vpack.c.b16 %v2449, %v2445
    %v3634 = vpack.c.b16 %v2450, %v2446
    %v3635 = vpack.c.b16 %v2451, %v2447
    %v3636 = vpack.c.b16 %v2456, %v2452
    %v3637 = vpack.c.b16 %v2457, %v2453
    %v3638 = vpack.c.b16 %v2458, %v2454
    %v3639 = vpack.c.b16 %v2459, %v2455
    %v3640 = vpack.c.b16 %v2464, %v2460
    %v3641 = vpack.c.b16 %v2465, %v2461
    %v3642 = vpack.c.b16 %v2466, %v2462
    %v3643 = vpack.c.b16 %v2467, %v2463
    %v3644 = vpack.c.b16 %v2472, %v2468
    %v3645 = vpack.c.b16 %v2473, %v2469
    %v3646 = vpack.c.b16 %v2474, %v2470
    %v3647 = vpack.c.b16 %v2475, %v2471
    %v3648 = vpack.c.b16 %v2480, %v2476
    %v3649 = vpack.c.b16 %v2481, %v2477
    %v3650 = vpack.c.b16 %v2482, %v2478
    %v3651 = vpack.c.b16 %v2483, %v2479
    %v3652 = vpack.c.b16 %v2488, %v2484
    %v3653 = vpack.c.b16 %v2489, %v2485
    %v3654 = vpack.c.b16 %v2490, %v2486
    %v3655 = vpack.c.b16 %v2491, %v2487
    %v3656 = vpack.c.b16 %v2496, %v2492
    %v3657 = vpack.c.b16 %v2497, %v2493
    %v3658 = vpack.c.b16 %v2498, %v2494
    %v3659 = vpack.c.b16 %v2499, %v2495
    %v3660 = vpack.c.b16 %v2504, %v2500
    %v3661 = vpack.c.b16 %v2505, %v2501
    %v3662 = vpack.c.b16 %v2506, %v2502
    %v3663 = vpack.c.b16 %v2507, %v2503
    %v3664 = vpack.c.b16 %v2512, %v2508
    %v3665 = vpack.c.b16 %v2513, %v2509
    %v3666 = vpack.c.b16 %v2514, %v2510
    %v3667 = vpack.c.b16 %v2515, %v2511
    %v3668 = vpack.c.b16 %v2520, %v2516
    %v3669 = vpack.c.b16 %v2521, %v2517
    %v3670 = vpack.c.b16 %v2522, %v2518
    %v3671 = vpack.c.b16 %v2523, %v2519
    %v3672 = vpack.c.b16 %v2528, %v2524
    %v3673 = vpack.c.b16 %v2529, %v2525
    %v3674 = vpack.c.b16 %v2530, %v2526
    %v3675 = vpack.c.b16 %v2531, %v2527
    %v3676 = vpack.c.b16 %v2536, %v2532
    %v3677 = vpack.c.b16 %v2537, %v2533
    %v3678 = vpack.c.b16 %v2538, %v2534
    %v3679 = vpack.c.b16 %v2539, %v2535
    %v3680 = vpack.c.b16 %v2544, %v2540
    %v3681 = vpack.c.b16 %v2545, %v2541
    %v3682 = vpack.c.b16 %v2546, %v2542
    %v3683 = vpack.c.b16 %v2547, %v2543
    %v3684 = vpack.c.b16 %v2552, %v2548
    %v3685 = vpack.c.b16 %v2553, %v2549
    %v3686 = vpack.c.b16 %v2554, %v2550
    %v3687 = vpack.c.b16 %v2555, %v2551
    %v3688 = vpack.c.b16 %v2560, %v2556
    %v3689 = vpack.c.b16 %v2561, %v2557
    %v3690 = vpack.c.b16 %v2562, %v2558
    %v3691 = vpack.c.b16 %v2563, %v2559
    %v3692 = vpack.c.b16 %v2568, %v2564
    %v3693 = vpack.c.b16 %v2569, %v2565
    %v3694 = vpack.c.b16 %v2570, %v2566
    %v3695 = vpack.c.b16 %v2571, %v2567
    %v3696 = vpack.c.b16 %v2576, %v2572
    %v3697 = vpack.c.b16 %v2577, %v2573
    %v3698 = vpack.c.b16 %v2578, %v2574
    %v3699 = vpack.c.b16 %v2579, %v2575
    %v3700 = vpack.c.b16 %v2584, %v2580
    %v3701 = vpack.c.b16 %v2585, %v2581
    %v3702 = vpack.c.b16 %v2586, %v2582
    %v3703 = vpack.c.b16 %v2587, %v2583
    %v3704 = vpack.c.b16 %v2592, %v2588
    %v3705 = vpack.c.b16 %v2593, %v2589
    %v3706 = vpack.c.b16 %v2594, %v2590
    %v3707 = vpack.c.b16 %v2595, %v2591
    %v3708 = vpack.c.b16 %v2600, %v2596
    %v3709 = vpack.c.b16 %v2601, %v2597
    %v3710 = vpack.c.b16 %v2602, %v2598
    %v3711 = vpack.c.b16 %v2603, %v2599
    %v3712 = vpack.c.b16 %v2608, %v2604
    %v3713 = vpack.c.b16 %v2609, %v2605
    %v3714 = vpack.c.b16 %v2610, %v2606
    %v3715 = vpack.c.b16 %v2611, %v2607
    %v3716 = vpack.c.b16 %v2616, %v2612
    %v3717 = vpack.c.b16 %v2617, %v2613
    %v3718 = vpack.c.b16 %v2618, %v2614
    %v3719 = vpack.c.b16 %v2619, %v2615
    %v3720 = vpack.c.b16 %v2624, %v2620
    %v3721 = vpack.c.b16 %v2625, %v2621
    %v3722 = vpack.c.b16 %v2626, %v2622
    %v3723 = vpack.c.b16 %v2627, %v2623
    %v3724 = vpack.c.b16 %v2632, %v2628
    %v3725 = vpack.c.b16 %v2633, %v2629
    %v3726 = vpack.c.b16 %v2634, %v2630
    %v3727 = vpack.c.b16 %v2635, %v2631
    %v3728 = vpack.c.b16 %v2640, %v2636
    %v3729 = vpack.c.b16 %v2641, %v2637
    %v3730 = vpack.c.b16 %v2642, %v2638
    %v3731 = vpack.c.b16 %v2643, %v2639
    %v3732 = vpack.c.b16 %v2648, %v2644
    %v3733 = vpack.c.b16 %v2649, %v2645
    %v3734 = vpack.c.b16 %v2650, %v2646
    %v3735 = vpack.c.b16 %v2651, %v2647
    %v3736 = vpack.c.b16 %v2656, %v2652
    %v3737 = vpack.c.b16 %v2657, %v2653
    %v3738 = vpack.c.b16 %v2658, %v2654
    %v3739 = vpack.c.b16 %v2659, %v2655
    %v3740 = vpack.c.b16 %v2664, %v2660
    %v3741 = vpack.c.b16 %v2665, %v2661
    %v3742 = vpack.c.b16 %v2666, %v2662
    %v3743 = vpack.c.b16 %v2667, %v2663
    %v3744 = vpack.c.b16 %v2672, %v2668
    %v3745 = vpack.c.b16 %v2673, %v2669
    %v3746 = vpack.c.b16 %v2674, %v2670
    %v3747 = vpack.c.b16 %v2675, %v2671
    %v3748 = vpack.c.b16 %v2680, %v2676
    %v3749 = vpack.c.b16 %v2681, %v2677
    %v3750 = vpack.c.b16 %v2682, %v2678
    %v3751 = vpack.c.b16 %v2683, %v2679
    %v3752 = vpack.c.b16 %v2688, %v2684
    %v3753 = vpack.c.b16 %v2689, %v2685
    %v3754 = vpack.c.b16 %v2690, %v2686
    %v3755 = vpack.c.b16 %v2691, %v2687
    %v3756 = vpack.c.b16 %v2696, %v2692
    %v3757 = vpack.c.b16 %v2697, %v2693
    %v3758 = vpack.c.b16 %v2698, %v2694
    %v3759 = vpack.c.b16 %v2699, %v2695
    %v3760 = vpack.c.b16 %v2704, %v2700
    %v3761 = vpack.c.b16 %v2705, %v2701
    %v3762 = vpack.c.b16 %v2706, %v2702
    %v3763 = vpack.c.b16 %v2707, %v2703
    %v3764 = vpack.c.b16 %v2712, %v2708
    %v3765 = vpack.c.b16 %v2713, %v2709
    %v3766 = vpack.c.b16 %v2714, %v2710
    %v3767 = vpack.c.b16 %v2715, %v2711
    %v3768 = vpack.c.b16 %v2720, %v2716
    %v3769 = vpack.c.b16 %v2721, %v2717
    %v3770 = vpack.c.b16 %v2722, %v2718
    %v3771 = vpack.c.b16 %v2723, %v2719
    %v3772 = vpack.c.b16 %v2728, %v2724
    %v3773 = vpack.c.b16 %v2729, %v2725
    %v3774 = vpack.c.b16 %v2730, %v2726
    %v3775 = vpack.c.b16 %v2731, %v2727
    %v3776 = vpack.c.b16 %v2736, %v2732
    %v3777 = vpack.c.b16 %v2737, %v2733
    %v3778 = vpack.c.b16 %v2738, %v2734
    %v3779 = vpack.c.b16 %v2739, %v2735
    %v3780 = vpack.c.b16 %v2744, %v2740
    %v3781 = vpack.c.b16 %v2745, %v2741
    %v3782 = vpack.c.b16 %v2746, %v2742
    %v3783 = vpack.c.b16 %v2747, %v2743
    %v3784 = vpack.c.b16 %v2752, %v2748
    %v3785 = vpack.c.b16 %v2753, %v2749
    %v3786 = vpack.c.b16 %v2754, %v2750
    %v3787 = vpack.c.b16 %v2755, %v2751
    %v3788 = vpack.c.b16 %v2760, %v2756
    %v3789 = vpack.c.b16 %v2761, %v2757
    %v3790 = vpack.c.b16 %v2762, %v2758
    %v3791 = vpack.c.b16 %v2763, %v2759
    %v3792 = vpack.c.b16 %v2768, %v2764
    %v3793 = vpack.c.b16 %v2769, %v2765
    %v3794 = vpack.c.b16 %v2770, %v2766
    %v3795 = vpack.c.b16 %v2771, %v2767
    %v3796 = vpack.c.b16 %v2776, %v2772
    %v3797 = vpack.c.b16 %v2777, %v2773
    %v3798 = vpack.c.b16 %v2778, %v2774
    %v3799 = vpack.c.b16 %v2779, %v2775
    %v3800 = vpack.c.b16 %v2784, %v2780
    %v3801 = vpack.c.b16 %v2785, %v2781
    %v3802 = vpack.c.b16 %v2786, %v2782
    %v3803 = vpack.c.b16 %v2787, %v2783
    %v3804 = vpack.c.b16 %v2792, %v2788
    %v3805 = vpack.c.b16 %v2793, %v2789
    %v3806 = vpack.c.b16 %v2794, %v2790
    %v3807 = vpack.c.b16 %v2795, %v2791
    %v3808 = vpack.c.b16 %v2800, %v2796
    %v3809 = vpack.c.b16 %v2801, %v2797
    %v3810 = vpack.c.b16 %v2802, %v2798
    %v3811 = vpack.c.b16 %v2803, %v2799
    %v3812 = vpack.c.b16 %v2808, %v2804
    %v3813 = vpack.c.b16 %v2809, %v2805
    %v3814 = vpack.c.b16 %v2810, %v2806
    %v3815 = vpack.c.b16 %v2811, %v2807
    %v3816 = vpack.c.b16 %v2816, %v2812
    %v3817 = vpack.c.b16 %v2817, %v2813
    %v3818 = vpack.c.b16 %v2818, %v2814
    %v3819 = vpack.c.b16 %v2819, %v2815
    %v3820 = vpack.c.b16 %v2824, %v2820
    %v3821 = vpack.c.b16 %v2825, %v2821
    %v3822 = vpack.c.b16 %v2826, %v2822
    %v3823 = vpack.c.b16 %v2827, %v2823
    %v3824 = vpack.c.b16 %v2832, %v2828
    %v3825 = vpack.c.b16 %v2833, %v2829
    %v3826 = vpack.c.b16 %v2834, %v2830
    %v3827 = vpack.c.b16 %v2835, %v2831
    %v3828 = vpack.c.b16 %v2840, %v2836
    %v3829 = vpack.c.b16 %v2841, %v2837
    %v3830 = vpack.c.b16 %v2842, %v2838
    %v3831 = vpack.c.b16 %v2843, %v2839
    %v3832 = vpack.c.b16 %v2848, %v2844
    %v3833 = vpack.c.b16 %v2849, %v2845
    %v3834 = vpack.c.b16 %v2850, %v2846
    %v3835 = vpack.c.b16 %v2851, %v2847
    %v3836 = vpack.c.b16 %v2856, %v2852
    %v3837 = vpack.c.b16 %v2857, %v2853
    %v3838 = vpack.c.b16 %v2858, %v2854
    %v3839 = vpack.c.b16 %v2859, %v2855
    %v3840 = vpack.c.b16 %v2864, %v2860
    %v3841 = vpack.c.b16 %v2865, %v2861
    %v3842 = vpack.c.b16 %v2866, %v2862
    %v3843 = vpack.c.b16 %v2867, %v2863
    %v3844 = vpack.c.b16 %v2872, %v2868
    %v3845 = vpack.c.b16 %v2873, %v2869
    %v3846 = vpack.c.b16 %v2874, %v2870
    %v3847 = vpack.c.b16 %v2875, %v2871
    %v3848 = vpack.c.b16 %v2880, %v2876
    %v3849 = vpack.c.b16 %v2881, %v2877
    %v3850 = vpack.c.b16 %v2882, %v2878
    %v3851 = vpack.c.b16 %v2883, %v2879
    %v3852 = vpack.c.b16 %v2888, %v2884
    %v3853 = vpack.c.b16 %v2889, %v2885
    %v3854 = vpack.c.b16 %v2890, %v2886
    %v3855 = vpack.c.b16 %v2891, %v2887
    %v3856 = vpack.c.b16 %v2896, %v2892
    %v3857 = vpack.c.b16 %v2897, %v2893
    %v3858 = vpack.c.b16 %v2898, %v2894
    %v3859 = vpack.c.b16 %v2899, %v2895
    %v3860 = vpack.c.b16 %v2904, %v2900
    %v3861 = vpack.c.b16 %v2905, %v2901
    %v3862 = vpack.c.b16 %v2906, %v2902
    %v3863 = vpack.c.b16 %v2907, %v2903
    %v3864 = vpack.c.b16 %v2912, %v2908
    %v3865 = vpack.c.b16 %v2913, %v2909
    %v3866 = vpack.c.b16 %v2914, %v2910
    %v3867 = vpack.c.b16 %v2915, %v2911
    %v3868 = vpack.c.b16 %v2920, %v2916
    %v3869 = vpack.c.b16 %v2921, %v2917
    %v3870 = vpack.c.b16 %v2922, %v2918
    %v3871 = vpack.c.b16 %v2923, %v2919
    %v3872 = vpack.c.b16 %v2928, %v2924
    %v3873 = vpack.c.b16 %v2929, %v2925
    %v3874 = vpack.c.b16 %v2930, %v2926
    %v3875 = vpack.c.b16 %v2931, %v2927
    %v3876 = vpack.c.b16 %v2936, %v2932
    %v3877 = vpack.c.b16 %v2937, %v2933
    %v3878 = vpack.c.b16 %v2938, %v2934
    %v3879 = vpack.c.b16 %v2939, %v2935
    %v3880 = vpack.c.b16 %v2944, %v2940
    %v3881 = vpack.c.b16 %v2945, %v2941
    %v3882 = vpack.c.b16 %v2946, %v2942
    %v3883 = vpack.c.b16 %v2947, %v2943
    %v3884 = vpack.c.b16 %v2952, %v2948
    %v3885 = vpack.c.b16 %v2953, %v2949
    %v3886 = vpack.c.b16 %v2954, %v2950
    %v3887 = vpack.c.b16 %v2955, %v2951
    %v3888 = vpack.c.b16 %v2960, %v2956
    %v3889 = vpack.c.b16 %v2961, %v2957
    %v3890 = vpack.c.b16 %v2962, %v2958
    %v3891 = vpack.c.b16 %v2963, %v2959
    %v3892 = vpack.c.b16 %v2968, %v2964
    %v3893 = vpack.c.b16 %v2969, %v2965
    %v3894 = vpack.c.b16 %v2970, %v2966
    %v3895 = vpack.c.b16 %v2971, %v2967
    %v3896 = vpack.c.b16 %v2976, %v2972
    %v3897 = vpack.c.b16 %v2977, %v2973
    %v3898 = vpack.c.b16 %v2978, %v2974
    %v3899 = vpack.c.b16 %v2979, %v2975
    %v3900 = vpack.c.b16 %v2984, %v2980
    %v3901 = vpack.c.b16 %v2985, %v2981
    %v3902 = vpack.c.b16 %v2986, %v2982
    %v3903 = vpack.c.b16 %v2987, %v2983
    %v3904 = vpack.c.b16 %v2992, %v2988
    %v3905 = vpack.c.b16 %v2993, %v2989
    %v3906 = vpack.c.b16 %v2994, %v2990
    %v3907 = vpack.c.b16 %v2995, %v2991
    %v3908 = vpack.c.b16 %v3000, %v2996
    %v3909 = vpack.c.b16 %v3001, %v2997
    %v3910 = vpack.c.b16 %v3002, %v2998
    %v3911 = vpack.c.b16 %v3003, %v2999
    %v3912 = vpack.c.b16 %v3008, %v3004
    %v3913 = vpack.c.b16 %v3009, %v3005
    %v3914 = vpack.c.b16 %v3010, %v3006
    %v3915 = vpack.c.b16 %v3011, %v3007
    %v3916 = vpack.c.b16 %v3016, %v3012
    %v3917 = vpack.c.b16 %v3017, %v3013
    %v3918 = vpack.c.b16 %v3018, %v3014
    %v3919 = vpack.c.b16 %v3019, %v3015
    %v3920 = vpack.c.b16 %v3024, %v3020
    %v3921 = vpack.c.b16 %v3025, %v3021
    %v3922 = vpack.c.b16 %v3026, %v3022
    %v3923 = vpack.c.b16 %v3027, %v3023
    %v3924 = vpack.c.b16 %v3032, %v3028
    %v3925 = vpack.c.b16 %v3033, %v3029
    %v3926 = vpack.c.b16 %v3034, %v3030
    %v3927 = vpack.c.b16 %v3035, %v3031
    %v3928 = vpack.c.b16 %v3040, %v3036
    %v3929 = vpack.c.b16 %v3041, %v3037
    %v3930 = vpack.c.b16 %v3042, %v3038
    %v3931 = vpack.c.b16 %v3043, %v3039
    %v3932 = vpack.c.b16 %v3048, %v3044
    %v3933 = vpack.c.b16 %v3049, %v3045
    %v3934 = vpack.c.b16 %v3050, %v3046
    %v3935 = vpack.c.b16 %v3051, %v3047
    %v3936 = vpack.c.b16 %v3056, %v3052
    %v3937 = vpack.c.b16 %v3057, %v3053
    %v3938 = vpack.c.b16 %v3058, %v3054
    %v3939 = vpack.c.b16 %v3059, %v3055
    %v3940 = vpack.c.b16 %v3064, %v3060
    %v3941 = vpack.c.b16 %v3065, %v3061
    %v3942 = vpack.c.b16 %v3066, %v3062
    %v3943 = vpack.c.b16 %v3067, %v3063
    %v3944 = vpack.c.b16 %v3072, %v3068
    %v3945 = vpack.c.b16 %v3073, %v3069
    %v3946 = vpack.c.b16 %v3074, %v3070
    %v3947 = vpack.c.b16 %v3075, %v3071
    %v3948 = vpack.c.b16 %v3080, %v3076
    %v3949 = vpack.c.b16 %v3081, %v3077
    %v3950 = vpack.c.b16 %v3082, %v3078
    %v3951 = vpack.c.b16 %v3083, %v3079
    %v3952 = vpack.c.b16 %v3088, %v3084
    %v3953 = vpack.c.b16 %v3089, %v3085
    %v3954 = vpack.c.b16 %v3090, %v3086
    %v3955 = vpack.c.b16 %v3091, %v3087
    %v3956 = vpack.c.b16 %v3096, %v3092
    %v3957 = vpack.c.b16 %v3097, %v3093
    %v3958 = vpack.c.b16 %v3098, %v3094
    %v3959 = vpack.c.b16 %v3099, %v3095
    %v3960 = vpack.c.b16 %v3104, %v3100
    %v3961 = vpack.c.b16 %v3105, %v3101
    %v3962 = vpack.c.b16 %v3106, %v3102
    %v3963 = vpack.c.b16 %v3107, %v3103
    %v3964 = vpack.c.b16 %v3112, %v3108
    %v3965 = vpack.c.b16 %v3113, %v3109
    %v3966 = vpack.c.b16 %v3114, %v3110
    %v3967 = vpack.c.b16 %v3115, %v3111
    %v3968 = vpack.c.b16 %v3120, %v3116
    %v3969 = vpack.c.b16 %v3121, %v3117
    %v3970 = vpack.c.b16 %v3122, %v3118
    %v3971 = vpack.c.b16 %v3123, %v3119
    %v3972 = vpack.c.b16 %v3128, %v3124
    %v3973 = vpack.c.b16 %v3129, %v3125
    %v3974 = vpack.c.b16 %v3130, %v3126
    %v3975 = vpack.c.b16 %v3131, %v3127
    %v3976 = vpack.c.b16 %v3136, %v3132
    %v3977 = vpack.c.b16 %v3137, %v3133
    %v3978 = vpack.c.b16 %v3138, %v3134
    %v3979 = vpack.c.b16 %v3139, %v3135
    %v3980 = vpack.c.b16 %v3144, %v3140
    %v3981 = vpack.c.b16 %v3145, %v3141
    %v3982 = vpack.c.b16 %v3146, %v3142
    %v3983 = vpack.c.b16 %v3147, %v3143
    %v3984 = vpack.c.b16 %v3152, %v3148
    %v3985 = vpack.c.b16 %v3153, %v3149
    %v3986 = vpack.c.b16 %v3154, %v3150
    %v3987 = vpack.c.b16 %v3155, %v3151
    %v3988 = vpack.c.b16 %v3160, %v3156
    %v3989 = vpack.c.b16 %v3161, %v3157
    %v3990 = vpack.c.b16 %v3162, %v3158
    %v3991 = vpack.c.b16 %v3163, %v3159
    %v3992 = vpack.c.b16 %v3168, %v3164
    %v3993 = vpack.c.b16 %v3169, %v3165
    %v3994 = vpack.c.b16 %v3170, %v3166
    %v3995 = vpack.c.b16 %v3171, %v3167
    %v3996 = vpack.c.b16 %v3176, %v3172
    %v3997 = vpack.c.b16 %v3177, %v3173
    %v3998 = vpack.c.b16 %v3178, %v3174
    %v3999 = vpack.c.b16 %v3179, %v3175
    %v4000 = vpack.c.b16 %v3184, %v3180
    %v4001 = vpack.c.b16 %v3185, %v3181
    %v4002 = vpack.c.b16 %v3186, %v3182
    %v4003 = vpack.c.b16 %v3187, %v3183
    %v4004 = vpack.c.b16 %v3192, %v3188
    %v4005 = vpack.c.b16 %v3193, %v3189
    %v4006 = vpack.c.b16 %v3194, %v3190
    %v4007 = vpack.c.b16 %v3195, %v3191
    %v4008 = vpack.c.b16 %v3200, %v3196
    %v4009 = vpack.c.b16 %v3201, %v3197
    %v4010 = vpack.c.b16 %v3202, %v3198
    %v4011 = vpack.c.b16 %v3203, %v3199
    %v4012 = vpack.c.b16 %v3208, %v3204
    %v4013 = vpack.c.b16 %v3209, %v3205
    %v4014 = vpack.c.b16 %v3210, %v3206
    %v4015 = vpack.c.b16 %v3211, %v3207
    %v4016 = vpack.c.b16 %v3216, %v3212
    %v4017 = vpack.c.b16 %v3217, %v3213
    %v4018 = vpack.c.b16 %v3218, %v3214
    %v4019 = vpack.c.b16 %v3219, %v3215
    %v4020 = vpack.c.b16 %v3224, %v3220
    %v4021 = vpack.c.b16 %v3225, %v3221
    %v4022 = vpack.c.b16 %v3226, %v3222
    %v4023 = vpack.c.b16 %v3227, %v3223
    %v4024 = vpack.c.b16 %v3232, %v3228
    %v4025 = vpack.c.b16 %v3233, %v3229
    %v4026 = vpack.c.b16 %v3234, %v3230
    %v4027 = vpack.c.b16 %v3235, %v3231
    %v4028 = vpack.c.b16 %v3240, %v3236
    %v4029 = vpack.c.b16 %v3241, %v3237
    %v4030 = vpack.c.b16 %v3242, %v3238
    %v4031 = vpack.c.b16 %v3243, %v3239
    %v4032 = vpack.c.b16 %v3248, %v3244
    %v4033 = vpack.c.b16 %v3249, %v3245
    %v4034 = vpack.c.b16 %v3250, %v3246
    %v4035 = vpack.c.b16 %v3251, %v3247
    %v4036 = vpack.c.b16 %v3256, %v3252
    %v4037 = vpack.c.b16 %v3257, %v3253
    %v4038 = vpack.c.b16 %v3258, %v3254
    %v4039 = vpack.c.b16 %v3259, %v3255
    %v4040 = vpack.c.b16 %v3264, %v3260
    %v4041 = vpack.c.b16 %v3265, %v3261
    %v4042 = vpack.c.b16 %v3266, %v3262
    %v4043 = vpack.c.b16 %v3267, %v3263
    %v4044 = vpack.c.b16 %v3272, %v3268
    %v4045 = vpack.c.b16 %v3273, %v3269
    %v4046 = vpack.c.b16 %v3274, %v3270
    %v4047 = vpack.c.b16 %v3275, %v3271
    %v4048 = vpack.c.b16 %v3280, %v3276
    %v4049 = vpack.c.b16 %v3281, %v3277
    %v4050 = vpack.c.b16 %v3282, %v3278
    %v4051 = vpack.c.b16 %v3283, %v3279
    %4820 = vmatprep.subr.bf16.mxu0 %v3285
    %4821 = vmatpush1.bf16.msra.mxu0 %v3284
    %4822 = vmatprep.subr.bf16.mxu0 %v3289
    %4823 = vmatpush1.bf16.msra.mxu0 %v3288
    %4824 = vmatprep.subr.bf16.mxu0 %v3293
    %4825 = vmatpush1.bf16.msra.mxu0 %v3292
    %4826 = vmatprep.subr.bf16.mxu0 %v3297
    %4827 = vmatpush1.bf16.msra.mxu0 %v3296
    %4828 = vmatprep.subr.bf16.mxu0 %v3301
    %4829 = vmatpush1.bf16.msra.mxu0 %v3300
    %4830 = vmatprep.subr.bf16.mxu0 %v3305
    %4831 = vmatpush1.bf16.msra.mxu0 %v3304
    %4832 = vmatprep.subr.bf16.mxu0 %v3309
    %4833 = vmatpush1.bf16.msra.mxu0 %v3308
    %4834 = vmatprep.subr.bf16.mxu0 %v3313
    %4835 = vmatpush1.bf16.msra.mxu0 %v3312
    %4836 = vmatprep.subr.bf16.mxu0 %v3317
    %4837 = vmatpush1.bf16.msra.mxu0 %v3316
    %4838 = vmatprep.subr.bf16.mxu0 %v3321
    %4839 = vmatpush1.bf16.msra.mxu0 %v3320
    %4840 = vmatprep.subr.bf16.mxu0 %v3325
    %4841 = vmatpush1.bf16.msra.mxu0 %v3324
    %4842 = vmatprep.subr.bf16.mxu0 %v3329
    %4843 = vmatpush1.bf16.msra.mxu0 %v3328
    %4844 = vmatprep.subr.bf16.mxu0 %v3333
    %4845 = vmatpush1.bf16.msra.mxu0 %v3332
    %4846 = vmatprep.subr.bf16.mxu0 %v3337
    %4847 = vmatpush1.bf16.msra.mxu0 %v3336
    %4848 = vmatprep.subr.bf16.mxu0 %v3341
    %4849 = vmatpush1.bf16.msra.mxu0 %v3340
    %4850 = vmatprep.subr.bf16.mxu0 %v3345
    %4851 = vmatpush1.bf16.msra.mxu0 %v3344
    %4852 = vmatprep.mubr.bf16.mxu0 %v167
    %4853 = vmatmul.mubr.bf16.gmra.mrb[0].mxu0 %v166
    %v4854 = vpop.f32.mrb[0].mxu0
    %v4855 = vadd.f32 %v963, %v4854
    %v4856 = vpop.f32.mrb[0].mxu0
    %v4857 = vadd.f32 %v967, %v4856
    %v4858 = vpop.f32.mrb[0].mxu0
    %v4859 = vpop.f32.mrb[0].mxu0
    %4860 = vdwg.mxu0
    %4861 = vmatprep.subr.bf16.mxu0 %v3349
    %4862 = vmatpush1.bf16.msra.mxu0 %v3348
    %4863 = vmatprep.subr.bf16.mxu0 %v3353
    %4864 = vmatpush1.bf16.msra.mxu0 %v3352
    %4865 = vmatprep.subr.bf16.mxu0 %v3357
    %4866 = vmatpush1.bf16.msra.mxu0 %v3356
    %4867 = vmatprep.subr.bf16.mxu0 %v3361
    %4868 = vmatpush1.bf16.msra.mxu0 %v3360
    %4869 = vmatprep.subr.bf16.mxu0 %v3365
    %4870 = vmatpush1.bf16.msra.mxu0 %v3364
    %4871 = vmatprep.subr.bf16.mxu0 %v3369
    %4872 = vmatpush1.bf16.msra.mxu0 %v3368
    %4873 = vmatprep.subr.bf16.mxu0 %v3373
    %4874 = vmatpush1.bf16.msra.mxu0 %v3372
    %4875 = vmatprep.subr.bf16.mxu0 %v3377
    %4876 = vmatpush1.bf16.msra.mxu0 %v3376
    %4877 = vmatprep.subr.bf16.mxu0 %v3381
    %4878 = vmatpush1.bf16.msra.mxu0 %v3380
    %4879 = vmatprep.subr.bf16.mxu0 %v3385
    %4880 = vmatpush1.bf16.msra.mxu0 %v3384
    %4881 = vmatprep.subr.bf16.mxu0 %v3389
    %4882 = vmatpush1.bf16.msra.mxu0 %v3388
    %4883 = vmatprep.subr.bf16.mxu0 %v3393
    %4884 = vmatpush1.bf16.msra.mxu0 %v3392
    %4885 = vmatprep.subr.bf16.mxu0 %v3397
    %4886 = vmatpush1.bf16.msra.mxu0 %v3396
    %4887 = vmatprep.subr.bf16.mxu0 %v3401
    %4888 = vmatpush1.bf16.msra.mxu0 %v3400
    %4889 = vmatprep.subr.bf16.mxu0 %v3405
    %4890 = vmatpush1.bf16.msra.mxu0 %v3404
    %4891 = vmatprep.subr.bf16.mxu0 %v3409
    %4892 = vmatpush1.bf16.msra.mxu0 %v3408
    %4893 = vmatprep.mubr.bf16.mxu0 %v169
    %4894 = vmatmul.mubr.bf16.gmra.mrb[0].mxu0 %v168
    %v4895 = vpop.f32.mrb[0].mxu0
    %v4896 = vadd.f32 %v4855, %v4895
    %v4897 = vpop.f32.mrb[0].mxu0
    %v4898 = vadd.f32 %v4857, %v4897
    %v4899 = vpop.f32.mrb[0].mxu0
    %v4900 = vpop.f32.mrb[0].mxu0
    %4901 = vdwg.mxu0
    %4902 = vmatprep.subr.bf16.mxu0 %v3413
    %4903 = vmatpush1.bf16.msra.mxu0 %v3412
    %4904 = vmatprep.subr.bf16.mxu0 %v3417
    %4905 = vmatpush1.bf16.msra.mxu0 %v3416
    %4906 = vmatprep.subr.bf16.mxu0 %v3421
    %4907 = vmatpush1.bf16.msra.mxu0 %v3420
    %4908 = vmatprep.subr.bf16.mxu0 %v3425
    %4909 = vmatpush1.bf16.msra.mxu0 %v3424
    %4910 = vmatprep.subr.bf16.mxu0 %v3429
    %4911 = vmatpush1.bf16.msra.mxu0 %v3428
    %4912 = vmatprep.subr.bf16.mxu0 %v3433
    %4913 = vmatpush1.bf16.msra.mxu0 %v3432
    %4914 = vmatprep.subr.bf16.mxu0 %v3437
    %4915 = vmatpush1.bf16.msra.mxu0 %v3436
    %4916 = vmatprep.subr.bf16.mxu0 %v3441
    %4917 = vmatpush1.bf16.msra.mxu0 %v3440
    %4918 = vmatprep.subr.bf16.mxu0 %v3445
    %4919 = vmatpush1.bf16.msra.mxu0 %v3444
    %4920 = vmatprep.subr.bf16.mxu0 %v3449
    %4921 = vmatpush1.bf16.msra.mxu0 %v3448
    %4922 = vmatprep.subr.bf16.mxu0 %v3453
    %4923 = vmatpush1.bf16.msra.mxu0 %v3452
    %4924 = vmatprep.subr.bf16.mxu0 %v3457
    %4925 = vmatpush1.bf16.msra.mxu0 %v3456
    %4926 = vmatprep.subr.bf16.mxu0 %v3461
    %4927 = vmatpush1.bf16.msra.mxu0 %v3460
    %4928 = vmatprep.subr.bf16.mxu0 %v3465
    %4929 = vmatpush1.bf16.msra.mxu0 %v3464
    %4930 = vmatprep.subr.bf16.mxu0 %v3469
    %4931 = vmatpush1.bf16.msra.mxu0 %v3468
    %4932 = vmatprep.subr.bf16.mxu0 %v3473
    %4933 = vmatpush1.bf16.msra.mxu0 %v3472
    %4934 = vmatprep.mubr.bf16.mxu0 %v171
    %4935 = vmatmul.mubr.bf16.gmra.mrb[0].mxu0 %v170
    %v4936 = vpop.f32.mrb[0].mxu0
    %v4937 = vadd.f32 %v4896, %v4936
    %v4938 = vpop.f32.mrb[0].mxu0
    %v4939 = vadd.f32 %v4898, %v4938
    %v4940 = vpop.f32.mrb[0].mxu0
    %v4941 = vpop.f32.mrb[0].mxu0
    %4942 = vdwg.mxu0
    %4943 = vmatprep.subr.bf16.mxu0 %v3477
    %4944 = vmatpush1.bf16.msra.mxu0 %v3476
    %4945 = vmatprep.subr.bf16.mxu0 %v3481
    %4946 = vmatpush1.bf16.msra.mxu0 %v3480
    %4947 = vmatprep.subr.bf16.mxu0 %v3485
    %4948 = vmatpush1.bf16.msra.mxu0 %v3484
    %4949 = vmatprep.subr.bf16.mxu0 %v3489
    %4950 = vmatpush1.bf16.msra.mxu0 %v3488
    %4951 = vmatprep.subr.bf16.mxu0 %v3493
    %4952 = vmatpush1.bf16.msra.mxu0 %v3492
    %4953 = vmatprep.subr.bf16.mxu0 %v3497
    %4954 = vmatpush1.bf16.msra.mxu0 %v3496
    %4955 = vmatprep.subr.bf16.mxu0 %v3501
    %4956 = vmatpush1.bf16.msra.mxu0 %v3500
    %4957 = vmatprep.subr.bf16.mxu0 %v3505
    %4958 = vmatpush1.bf16.msra.mxu0 %v3504
    %4959 = vmatprep.subr.bf16.mxu0 %v3509
    %4960 = vmatpush1.bf16.msra.mxu0 %v3508
    %4961 = vmatprep.subr.bf16.mxu0 %v3513
    %4962 = vmatpush1.bf16.msra.mxu0 %v3512
    %4963 = vmatprep.subr.bf16.mxu0 %v3517
    %4964 = vmatpush1.bf16.msra.mxu0 %v3516
    %4965 = vmatprep.subr.bf16.mxu0 %v3521
    %4966 = vmatpush1.bf16.msra.mxu0 %v3520
    %4967 = vmatprep.subr.bf16.mxu0 %v3525
    %4968 = vmatpush1.bf16.msra.mxu0 %v3524
    %4969 = vmatprep.subr.bf16.mxu0 %v3529
    %4970 = vmatpush1.bf16.msra.mxu0 %v3528
    %4971 = vmatprep.subr.bf16.mxu0 %v3533
    %4972 = vmatpush1.bf16.msra.mxu0 %v3532
    %4973 = vmatprep.subr.bf16.mxu0 %v3537
    %4974 = vmatpush1.bf16.msra.mxu0 %v3536
    %4975 = vmatprep.mubr.bf16.mxu0 %v173
    %4976 = vmatmul.mubr.bf16.gmra.mrb[0].mxu0 %v172
    %v4977 = vpop.f32.mrb[0].mxu0
    %v4978 = vadd.f32 %v4937, %v4977
    %v4979 = vpop.f32.mrb[0].mxu0
    %v4980 = vadd.f32 %v4939, %v4979
    %v4981 = vpop.f32.mrb[0].mxu0
    %v4982 = vpop.f32.mrb[0].mxu0
    %4983 = vdwg.mxu0
    %4984 = vmatprep.subr.bf16.mxu0 %v3541
    %4985 = vmatpush1.bf16.msra.mxu0 %v3540
    %4986 = vmatprep.subr.bf16.mxu0 %v3545
    %4987 = vmatpush1.bf16.msra.mxu0 %v3544
    %4988 = vmatprep.subr.bf16.mxu0 %v3549
    %4989 = vmatpush1.bf16.msra.mxu0 %v3548
    %4990 = vmatprep.subr.bf16.mxu0 %v3553
    %4991 = vmatpush1.bf16.msra.mxu0 %v3552
    %4992 = vmatprep.subr.bf16.mxu0 %v3557
    %4993 = vmatpush1.bf16.msra.mxu0 %v3556
    %4994 = vmatprep.subr.bf16.mxu0 %v3561
    %4995 = vmatpush1.bf16.msra.mxu0 %v3560
    %4996 = vmatprep.subr.bf16.mxu0 %v3565
    %4997 = vmatpush1.bf16.msra.mxu0 %v3564
    %4998 = vmatprep.subr.bf16.mxu0 %v3569
    %4999 = vmatpush1.bf16.msra.mxu0 %v3568
    %5000 = vmatprep.subr.bf16.mxu0 %v3573
    %5001 = vmatpush1.bf16.msra.mxu0 %v3572
    %5002 = vmatprep.subr.bf16.mxu0 %v3577
    %5003 = vmatpush1.bf16.msra.mxu0 %v3576
    %5004 = vmatprep.subr.bf16.mxu0 %v3581
    %5005 = vmatpush1.bf16.msra.mxu0 %v3580
    %5006 = vmatprep.subr.bf16.mxu0 %v3585
    %5007 = vmatpush1.bf16.msra.mxu0 %v3584
    %5008 = vmatprep.subr.bf16.mxu0 %v3589
    %5009 = vmatpush1.bf16.msra.mxu0 %v3588
    %5010 = vmatprep.subr.bf16.mxu0 %v3593
    %5011 = vmatpush1.bf16.msra.mxu0 %v3592
    %5012 = vmatprep.subr.bf16.mxu0 %v3597
    %5013 = vmatpush1.bf16.msra.mxu0 %v3596
    %5014 = vmatprep.subr.bf16.mxu0 %v3601
    %5015 = vmatpush1.bf16.msra.mxu0 %v3600
    %5016 = vmatprep.mubr.bf16.mxu0 %v175
    %5017 = vmatmul.mubr.bf16.gmra.mrb[0].mxu0 %v174
    %v5018 = vpop.f32.mrb[0].mxu0
    %v5019 = vadd.f32 %v4978, %v5018
    %v5020 = vpop.f32.mrb[0].mxu0
    %v5021 = vadd.f32 %v4980, %v5020
    %v5022 = vpop.f32.mrb[0].mxu0
    %v5023 = vpop.f32.mrb[0].mxu0
    %5024 = vdwg.mxu0
    %5025 = vmatprep.subr.bf16.mxu0 %v3605
    %5026 = vmatpush1.bf16.msra.mxu0 %v3604
    %5027 = vmatprep.subr.bf16.mxu0 %v3609
    %5028 = vmatpush1.bf16.msra.mxu0 %v3608
    %5029 = vmatprep.subr.bf16.mxu0 %v3613
    %5030 = vmatpush1.bf16.msra.mxu0 %v3612
    %5031 = vmatprep.subr.bf16.mxu0 %v3617
    %5032 = vmatpush1.bf16.msra.mxu0 %v3616
    %5033 = vmatprep.subr.bf16.mxu0 %v3621
    %5034 = vmatpush1.bf16.msra.mxu0 %v3620
    %5035 = vmatprep.subr.bf16.mxu0 %v3625
    %5036 = vmatpush1.bf16.msra.mxu0 %v3624
    %5037 = vmatprep.subr.bf16.mxu0 %v3629
    %5038 = vmatpush1.bf16.msra.mxu0 %v3628
    %5039 = vmatprep.subr.bf16.mxu0 %v3633
    %5040 = vmatpush1.bf16.msra.mxu0 %v3632
    %5041 = vmatprep.subr.bf16.mxu0 %v3637
    %5042 = vmatpush1.bf16.msra.mxu0 %v3636
    %5043 = vmatprep.subr.bf16.mxu0 %v3641
    %5044 = vmatpush1.bf16.msra.mxu0 %v3640
    %5045 = vmatprep.subr.bf16.mxu0 %v3645
    %5046 = vmatpush1.bf16.msra.mxu0 %v3644
    %5047 = vmatprep.subr.bf16.mxu0 %v3649
    %5048 = vmatpush1.bf16.msra.mxu0 %v3648
    %5049 = vmatprep.subr.bf16.mxu0 %v3653
    %5050 = vmatpush1.bf16.msra.mxu0 %v3652
    %5051 = vmatprep.subr.bf16.mxu0 %v3657
    %5052 = vmatpush1.bf16.msra.mxu0 %v3656
    %5053 = vmatprep.subr.bf16.mxu0 %v3661
    %5054 = vmatpush1.bf16.msra.mxu0 %v3660
    %5055 = vmatprep.subr.bf16.mxu0 %v3665
    %5056 = vmatpush1.bf16.msra.mxu0 %v3664
    %5057 = vmatprep.mubr.bf16.mxu0 %v177
    %5058 = vmatmul.mubr.bf16.gmra.mrb[0].mxu0 %v176
    %v5059 = vpop.f32.mrb[0].mxu0
    %v5060 = vadd.f32 %v5019, %v5059
    %v5061 = vpop.f32.mrb[0].mxu0
    %v5062 = vadd.f32 %v5021, %v5061
    %v5063 = vpop.f32.mrb[0].mxu0
    %v5064 = vpop.f32.mrb[0].mxu0
    %5065 = vdwg.mxu0
    %5066 = vmatprep.subr.bf16.mxu0 %v3669
    %5067 = vmatpush1.bf16.msra.mxu0 %v3668
    %5068 = vmatprep.subr.bf16.mxu0 %v3673
    %5069 = vmatpush1.bf16.msra.mxu0 %v3672
    %5070 = vmatprep.subr.bf16.mxu0 %v3677
    %5071 = vmatpush1.bf16.msra.mxu0 %v3676
    %5072 = vmatprep.subr.bf16.mxu0 %v3681
    %5073 = vmatpush1.bf16.msra.mxu0 %v3680
    %5074 = vmatprep.subr.bf16.mxu0 %v3685
    %5075 = vmatpush1.bf16.msra.mxu0 %v3684
    %5076 = vmatprep.subr.bf16.mxu0 %v3689
    %5077 = vmatpush1.bf16.msra.mxu0 %v3688
    %5078 = vmatprep.subr.bf16.mxu0 %v3693
    %5079 = vmatpush1.bf16.msra.mxu0 %v3692
    %5080 = vmatprep.subr.bf16.mxu0 %v3697
    %5081 = vmatpush1.bf16.msra.mxu0 %v3696
    %5082 = vmatprep.subr.bf16.mxu0 %v3701
    %5083 = vmatpush1.bf16.msra.mxu0 %v3700
    %5084 = vmatprep.subr.bf16.mxu0 %v3705
    %5085 = vmatpush1.bf16.msra.mxu0 %v3704
    %5086 = vmatprep.subr.bf16.mxu0 %v3709
    %5087 = vmatpush1.bf16.msra.mxu0 %v3708
    %5088 = vmatprep.subr.bf16.mxu0 %v3713
    %5089 = vmatpush1.bf16.msra.mxu0 %v3712
    %5090 = vmatprep.subr.bf16.mxu0 %v3717
    %5091 = vmatpush1.bf16.msra.mxu0 %v3716
    %5092 = vmatprep.subr.bf16.mxu0 %v3721
    %5093 = vmatpush1.bf16.msra.mxu0 %v3720
    %5094 = vmatprep.subr.bf16.mxu0 %v3725
    %5095 = vmatpush1.bf16.msra.mxu0 %v3724
    %5096 = vmatprep.subr.bf16.mxu0 %v3729
    %5097 = vmatpush1.bf16.msra.mxu0 %v3728
    %5098 = vmatprep.mubr.bf16.mxu0 %v179
    %5099 = vmatmul.mubr.bf16.gmra.mrb[0].mxu0 %v178
    %v5100 = vpop.f32.mrb[0].mxu0
    %v5101 = vadd.f32 %v5060, %v5100
    %v5102 = vpop.f32.mrb[0].mxu0
    %v5103 = vadd.f32 %v5062, %v5102
    %v5104 = vpop.f32.mrb[0].mxu0
    %v5105 = vpop.f32.mrb[0].mxu0
    %5106 = vdwg.mxu0
    %5107 = vmatprep.subr.bf16.mxu0 %v3733
    %5108 = vmatpush1.bf16.msra.mxu0 %v3732
    %5109 = vmatprep.subr.bf16.mxu0 %v3737
    %5110 = vmatpush1.bf16.msra.mxu0 %v3736
    %5111 = vmatprep.subr.bf16.mxu0 %v3741
    %5112 = vmatpush1.bf16.msra.mxu0 %v3740
    %5113 = vmatprep.subr.bf16.mxu0 %v3745
    %5114 = vmatpush1.bf16.msra.mxu0 %v3744
    %5115 = vmatprep.subr.bf16.mxu0 %v3749
    %5116 = vmatpush1.bf16.msra.mxu0 %v3748
    %5117 = vmatprep.subr.bf16.mxu0 %v3753
    %5118 = vmatpush1.bf16.msra.mxu0 %v3752
    %5119 = vmatprep.subr.bf16.mxu0 %v3757
    %5120 = vmatpush1.bf16.msra.mxu0 %v3756
    %5121 = vmatprep.subr.bf16.mxu0 %v3761
    %5122 = vmatpush1.bf16.msra.mxu0 %v3760
    %5123 = vmatprep.subr.bf16.mxu0 %v3765
    %5124 = vmatpush1.bf16.msra.mxu0 %v3764
    %5125 = vmatprep.subr.bf16.mxu0 %v3769
    %5126 = vmatpush1.bf16.msra.mxu0 %v3768
    %5127 = vmatprep.subr.bf16.mxu0 %v3773
    %5128 = vmatpush1.bf16.msra.mxu0 %v3772
    %5129 = vmatprep.subr.bf16.mxu0 %v3777
    %5130 = vmatpush1.bf16.msra.mxu0 %v3776
    %5131 = vmatprep.subr.bf16.mxu0 %v3781
    %5132 = vmatpush1.bf16.msra.mxu0 %v3780
    %5133 = vmatprep.subr.bf16.mxu0 %v3785
    %5134 = vmatpush1.bf16.msra.mxu0 %v3784
    %5135 = vmatprep.subr.bf16.mxu0 %v3789
    %5136 = vmatpush1.bf16.msra.mxu0 %v3788
    %5137 = vmatprep.subr.bf16.mxu0 %v3793
    %5138 = vmatpush1.bf16.msra.mxu0 %v3792
    %5139 = vmatprep.mubr.bf16.mxu0 %v181
    %5140 = vmatmul.mubr.bf16.gmra.mrb[0].mxu0 %v180
    %v5141 = vpop.f32.mrb[0].mxu0
    %v5142 = vadd.f32 %v5101, %v5141
    %v5143 = vpop.f32.mrb[0].mxu0
    %v5144 = vadd.f32 %v5103, %v5143
    %v5145 = vpop.f32.mrb[0].mxu0
    %v5146 = vpop.f32.mrb[0].mxu0
    %5147 = vdwg.mxu0
    %5148 = vmatprep.subr.bf16.mxu0 %v3797
    %5149 = vmatpush1.bf16.msra.mxu0 %v3796
    %5150 = vmatprep.subr.bf16.mxu0 %v3801
    %5151 = vmatpush1.bf16.msra.mxu0 %v3800
    %5152 = vmatprep.subr.bf16.mxu0 %v3805
    %5153 = vmatpush1.bf16.msra.mxu0 %v3804
    %5154 = vmatprep.subr.bf16.mxu0 %v3809
    %5155 = vmatpush1.bf16.msra.mxu0 %v3808
    %5156 = vmatprep.subr.bf16.mxu0 %v3813
    %5157 = vmatpush1.bf16.msra.mxu0 %v3812
    %5158 = vmatprep.subr.bf16.mxu0 %v3817
    %5159 = vmatpush1.bf16.msra.mxu0 %v3816
    %5160 = vmatprep.subr.bf16.mxu0 %v3821
    %5161 = vmatpush1.bf16.msra.mxu0 %v3820
    %5162 = vmatprep.subr.bf16.mxu0 %v3825
    %5163 = vmatpush1.bf16.msra.mxu0 %v3824
    %5164 = vmatprep.subr.bf16.mxu0 %v3829
    %5165 = vmatpush1.bf16.msra.mxu0 %v3828
    %5166 = vmatprep.subr.bf16.mxu0 %v3833
    %5167 = vmatpush1.bf16.msra.mxu0 %v3832
    %5168 = vmatprep.subr.bf16.mxu0 %v3837
    %5169 = vmatpush1.bf16.msra.mxu0 %v3836
    %5170 = vmatprep.subr.bf16.mxu0 %v3841
    %5171 = vmatpush1.bf16.msra.mxu0 %v3840
    %5172 = vmatprep.subr.bf16.mxu0 %v3845
    %5173 = vmatpush1.bf16.msra.mxu0 %v3844
    %5174 = vmatprep.subr.bf16.mxu0 %v3849
    %5175 = vmatpush1.bf16.msra.mxu0 %v3848
    %5176 = vmatprep.subr.bf16.mxu0 %v3853
    %5177 = vmatpush1.bf16.msra.mxu0 %v3852
    %5178 = vmatprep.subr.bf16.mxu0 %v3857
    %5179 = vmatpush1.bf16.msra.mxu0 %v3856
    %5180 = vmatprep.mubr.bf16.mxu0 %v183
    %5181 = vmatmul.mubr.bf16.gmra.mrb[0].mxu0 %v182
    %v5182 = vpop.f32.mrb[0].mxu0
    %v5183 = vadd.f32 %v5142, %v5182
    %v5184 = vpop.f32.mrb[0].mxu0
    %v5185 = vadd.f32 %v5144, %v5184
    %v5186 = vpop.f32.mrb[0].mxu0
    %v5187 = vpop.f32.mrb[0].mxu0
    %5188 = vdwg.mxu0
    %5189 = vmatprep.subr.bf16.mxu0 %v3861
    %5190 = vmatpush1.bf16.msra.mxu0 %v3860
    %5191 = vmatprep.subr.bf16.mxu0 %v3865
    %5192 = vmatpush1.bf16.msra.mxu0 %v3864
    %5193 = vmatprep.subr.bf16.mxu0 %v3869
    %5194 = vmatpush1.bf16.msra.mxu0 %v3868
    %5195 = vmatprep.subr.bf16.mxu0 %v3873
    %5196 = vmatpush1.bf16.msra.mxu0 %v3872
    %5197 = vmatprep.subr.bf16.mxu0 %v3877
    %5198 = vmatpush1.bf16.msra.mxu0 %v3876
    %5199 = vmatprep.subr.bf16.mxu0 %v3881
    %5200 = vmatpush1.bf16.msra.mxu0 %v3880
    %5201 = vmatprep.subr.bf16.mxu0 %v3885
    %5202 = vmatpush1.bf16.msra.mxu0 %v3884
    %5203 = vmatprep.subr.bf16.mxu0 %v3889
    %5204 = vmatpush1.bf16.msra.mxu0 %v3888
    %5205 = vmatprep.subr.bf16.mxu0 %v3893
    %5206 = vmatpush1.bf16.msra.mxu0 %v3892
    %5207 = vmatprep.subr.bf16.mxu0 %v3897
    %5208 = vmatpush1.bf16.msra.mxu0 %v3896
    %5209 = vmatprep.subr.bf16.mxu0 %v3901
    %5210 = vmatpush1.bf16.msra.mxu0 %v3900
    %5211 = vmatprep.subr.bf16.mxu0 %v3905
    %5212 = vmatpush1.bf16.msra.mxu0 %v3904
    %5213 = vmatprep.subr.bf16.mxu0 %v3909
    %5214 = vmatpush1.bf16.msra.mxu0 %v3908
    %5215 = vmatprep.subr.bf16.mxu0 %v3913
    %5216 = vmatpush1.bf16.msra.mxu0 %v3912
    %5217 = vmatprep.subr.bf16.mxu0 %v3917
    %5218 = vmatpush1.bf16.msra.mxu0 %v3916
    %5219 = vmatprep.subr.bf16.mxu0 %v3921
    %5220 = vmatpush1.bf16.msra.mxu0 %v3920
    %5221 = vmatprep.mubr.bf16.mxu0 %v185
    %5222 = vmatmul.mubr.bf16.gmra.mrb[0].mxu0 %v184
    %v5223 = vpop.f32.mrb[0].mxu0
    %v5224 = vadd.f32 %v5183, %v5223
    %v5225 = vpop.f32.mrb[0].mxu0
    %v5226 = vadd.f32 %v5185, %v5225
    %v5227 = vpop.f32.mrb[0].mxu0
    %v5228 = vpop.f32.mrb[0].mxu0
    %5229 = vdwg.mxu0
    %5230 = vmatprep.subr.bf16.mxu0 %v3925
    %5231 = vmatpush1.bf16.msra.mxu0 %v3924
    %5232 = vmatprep.subr.bf16.mxu0 %v3929
    %5233 = vmatpush1.bf16.msra.mxu0 %v3928
    %5234 = vmatprep.subr.bf16.mxu0 %v3933
    %5235 = vmatpush1.bf16.msra.mxu0 %v3932
    %5236 = vmatprep.subr.bf16.mxu0 %v3937
    %5237 = vmatpush1.bf16.msra.mxu0 %v3936
    %5238 = vmatprep.subr.bf16.mxu0 %v3941
    %5239 = vmatpush1.bf16.msra.mxu0 %v3940
    %5240 = vmatprep.subr.bf16.mxu0 %v3945
    %5241 = vmatpush1.bf16.msra.mxu0 %v3944
    %5242 = vmatprep.subr.bf16.mxu0 %v3949
    %5243 = vmatpush1.bf16.msra.mxu0 %v3948
    %5244 = vmatprep.subr.bf16.mxu0 %v3953
    %5245 = vmatpush1.bf16.msra.mxu0 %v3952
    %5246 = vmatprep.subr.bf16.mxu0 %v3957
    %5247 = vmatpush1.bf16.msra.mxu0 %v3956
    %5248 = vmatprep.subr.bf16.mxu0 %v3961
    %5249 = vmatpush1.bf16.msra.mxu0 %v3960
    %5250 = vmatprep.subr.bf16.mxu0 %v3965
    %5251 = vmatpush1.bf16.msra.mxu0 %v3964
    %5252 = vmatprep.subr.bf16.mxu0 %v3969
    %5253 = vmatpush1.bf16.msra.mxu0 %v3968
    %5254 = vmatprep.subr.bf16.mxu0 %v3973
    %5255 = vmatpush1.bf16.msra.mxu0 %v3972
    %5256 = vmatprep.subr.bf16.mxu0 %v3977
    %5257 = vmatpush1.bf16.msra.mxu0 %v3976
    %5258 = vmatprep.subr.bf16.mxu0 %v3981
    %5259 = vmatpush1.bf16.msra.mxu0 %v3980
    %5260 = vmatprep.subr.bf16.mxu0 %v3985
    %5261 = vmatpush1.bf16.msra.mxu0 %v3984
    %5262 = vmatprep.mubr.bf16.mxu0 %v187
    %5263 = vmatmul.mubr.bf16.gmra.mrb[0].mxu0 %v186
    %v5264 = vpop.f32.mrb[0].mxu0
    %v5265 = vadd.f32 %v5224, %v5264
    %v5266 = vpop.f32.mrb[0].mxu0
    %v5267 = vadd.f32 %v5226, %v5266
    %v5268 = vpop.f32.mrb[0].mxu0
    %v5269 = vpop.f32.mrb[0].mxu0
    %5270 = vdwg.mxu0
    %5271 = vmatprep.subr.bf16.mxu0 %v3989
    %5272 = vmatpush1.bf16.msra.mxu0 %v3988
    %5273 = vmatprep.subr.bf16.mxu0 %v3993
    %5274 = vmatpush1.bf16.msra.mxu0 %v3992
    %5275 = vmatprep.subr.bf16.mxu0 %v3997
    %5276 = vmatpush1.bf16.msra.mxu0 %v3996
    %5277 = vmatprep.subr.bf16.mxu0 %v4001
    %5278 = vmatpush1.bf16.msra.mxu0 %v4000
    %5279 = vmatprep.subr.bf16.mxu0 %v4005
    %5280 = vmatpush1.bf16.msra.mxu0 %v4004
    %5281 = vmatprep.subr.bf16.mxu0 %v4009
    %5282 = vmatpush1.bf16.msra.mxu0 %v4008
    %5283 = vmatprep.subr.bf16.mxu0 %v4013
    %5284 = vmatpush1.bf16.msra.mxu0 %v4012
    %5285 = vmatprep.subr.bf16.mxu0 %v4017
    %5286 = vmatpush1.bf16.msra.mxu0 %v4016
    %5287 = vmatprep.subr.bf16.mxu0 %v4021
    %5288 = vmatpush1.bf16.msra.mxu0 %v4020
    %5289 = vmatprep.subr.bf16.mxu0 %v4025
    %5290 = vmatpush1.bf16.msra.mxu0 %v4024
    %5291 = vmatprep.subr.bf16.mxu0 %v4029
    %5292 = vmatpush1.bf16.msra.mxu0 %v4028
    %5293 = vmatprep.subr.bf16.mxu0 %v4033
    %5294 = vmatpush1.bf16.msra.mxu0 %v4032
    %5295 = vmatprep.subr.bf16.mxu0 %v4037
    %5296 = vmatpush1.bf16.msra.mxu0 %v4036
    %5297 = vmatprep.subr.bf16.mxu0 %v4041
    %5298 = vmatpush1.bf16.msra.mxu0 %v4040
    %5299 = vmatprep.subr.bf16.mxu0 %v4045
    %5300 = vmatpush1.bf16.msra.mxu0 %v4044
    %5301 = vmatprep.subr.bf16.mxu0 %v4049
    %5302 = vmatpush1.bf16.msra.mxu0 %v4048
    %5303 = vmatprep.mubr.bf16.mxu0 %v189
    %5304 = vmatmul.mubr.bf16.gmra.mrb[0].mxu0 %v188
    %v5305 = vpop.f32.mrb[0].mxu0
    %v5306 = vadd.f32 %v5265, %v5305
    %v5307 = vpop.f32.mrb[0].mxu0
    %v5308 = vadd.f32 %v5267, %v5307
    %v5309 = vpop.f32.mrb[0].mxu0
    %v5310 = vpop.f32.mrb[0].mxu0
    %5311 = vdwg.mxu0
    %5312 = vmatprep.subr.bf16.mxu0 %v3287
    %5313 = vmatpush1.bf16.msra.mxu0 %v3286
    %5314 = vmatprep.subr.bf16.mxu0 %v3291
    %5315 = vmatpush1.bf16.msra.mxu0 %v3290
    %5316 = vmatprep.subr.bf16.mxu0 %v3295
    %5317 = vmatpush1.bf16.msra.mxu0 %v3294
    %5318 = vmatprep.subr.bf16.mxu0 %v3299
    %5319 = vmatpush1.bf16.msra.mxu0 %v3298
    %5320 = vmatprep.subr.bf16.mxu0 %v3303
    %5321 = vmatpush1.bf16.msra.mxu0 %v3302
    %5322 = vmatprep.subr.bf16.mxu0 %v3307
    %5323 = vmatpush1.bf16.msra.mxu0 %v3306
    %5324 = vmatprep.subr.bf16.mxu0 %v3311
    %5325 = vmatpush1.bf16.msra.mxu0 %v3310
    %5326 = vmatprep.subr.bf16.mxu0 %v3315
    %5327 = vmatpush1.bf16.msra.mxu0 %v3314
    %5328 = vmatprep.subr.bf16.mxu0 %v3319
    %5329 = vmatpush1.bf16.msra.mxu0 %v3318
    %5330 = vmatprep.subr.bf16.mxu0 %v3323
    %5331 = vmatpush1.bf16.msra.mxu0 %v3322
    %5332 = vmatprep.subr.bf16.mxu0 %v3327
    %5333 = vmatpush1.bf16.msra.mxu0 %v3326
    %5334 = vmatprep.subr.bf16.mxu0 %v3331
    %5335 = vmatpush1.bf16.msra.mxu0 %v3330
    %5336 = vmatprep.subr.bf16.mxu0 %v3335
    %5337 = vmatpush1.bf16.msra.mxu0 %v3334
    %5338 = vmatprep.subr.bf16.mxu0 %v3339
    %5339 = vmatpush1.bf16.msra.mxu0 %v3338
    %5340 = vmatprep.subr.bf16.mxu0 %v3343
    %5341 = vmatpush1.bf16.msra.mxu0 %v3342
    %5342 = vmatprep.subr.bf16.mxu0 %v3347
    %5343 = vmatpush1.bf16.msra.mxu0 %v3346
    %5344 = vmatprep.mubr.bf16.mxu0 %v167
    %5345 = vmatmul.mubr.bf16.gmra.mrb[0].mxu0 %v166
    %v5346 = vpop.f32.mrb[0].mxu0
    %v5347 = vadd.f32 %v971, %v5346
    %v5348 = vpop.f32.mrb[0].mxu0
    %v5349 = vadd.f32 %v975, %v5348
    %v5350 = vpop.f32.mrb[0].mxu0
    %v5351 = vpop.f32.mrb[0].mxu0
    %5352 = vdwg.mxu0
    %5353 = vmatprep.subr.bf16.mxu0 %v3351
    %5354 = vmatpush1.bf16.msra.mxu0 %v3350
    %5355 = vmatprep.subr.bf16.mxu0 %v3355
    %5356 = vmatpush1.bf16.msra.mxu0 %v3354
    %5357 = vmatprep.subr.bf16.mxu0 %v3359
    %5358 = vmatpush1.bf16.msra.mxu0 %v3358
    %5359 = vmatprep.subr.bf16.mxu0 %v3363
    %5360 = vmatpush1.bf16.msra.mxu0 %v3362
    %5361 = vmatprep.subr.bf16.mxu0 %v3367
    %5362 = vmatpush1.bf16.msra.mxu0 %v3366
    %5363 = vmatprep.subr.bf16.mxu0 %v3371
    %5364 = vmatpush1.bf16.msra.mxu0 %v3370
    %5365 = vmatprep.subr.bf16.mxu0 %v3375
    %5366 = vmatpush1.bf16.msra.mxu0 %v3374
    %5367 = vmatprep.subr.bf16.mxu0 %v3379
    %5368 = vmatpush1.bf16.msra.mxu0 %v3378
    %5369 = vmatprep.subr.bf16.mxu0 %v3383
    %5370 = vmatpush1.bf16.msra.mxu0 %v3382
    %5371 = vmatprep.subr.bf16.mxu0 %v3387
    %5372 = vmatpush1.bf16.msra.mxu0 %v3386
    %5373 = vmatprep.subr.bf16.mxu0 %v3391
    %5374 = vmatpush1.bf16.msra.mxu0 %v3390
    %5375 = vmatprep.subr.bf16.mxu0 %v3395
    %5376 = vmatpush1.bf16.msra.mxu0 %v3394
    %5377 = vmatprep.subr.bf16.mxu0 %v3399
    %5378 = vmatpush1.bf16.msra.mxu0 %v3398
    %5379 = vmatprep.subr.bf16.mxu0 %v3403
    %5380 = vmatpush1.bf16.msra.mxu0 %v3402
    %5381 = vmatprep.subr.bf16.mxu0 %v3407
    %5382 = vmatpush1.bf16.msra.mxu0 %v3406
    %5383 = vmatprep.subr.bf16.mxu0 %v3411
    %5384 = vmatpush1.bf16.msra.mxu0 %v3410
    %5385 = vmatprep.mubr.bf16.mxu0 %v169
    %5386 = vmatmul.mubr.bf16.gmra.mrb[0].mxu0 %v168
    %v5387 = vpop.f32.mrb[0].mxu0
    %v5388 = vadd.f32 %v5347, %v5387
    %v5389 = vpop.f32.mrb[0].mxu0
    %v5390 = vadd.f32 %v5349, %v5389
    %v5391 = vpop.f32.mrb[0].mxu0
    %v5392 = vpop.f32.mrb[0].mxu0
    %5393 = vdwg.mxu0
    %5394 = vmatprep.subr.bf16.mxu0 %v3415
    %5395 = vmatpush1.bf16.msra.mxu0 %v3414
    %5396 = vmatprep.subr.bf16.mxu0 %v3419
    %5397 = vmatpush1.bf16.msra.mxu0 %v3418
    %5398 = vmatprep.subr.bf16.mxu0 %v3423
    %5399 = vmatpush1.bf16.msra.mxu0 %v3422
    %5400 = vmatprep.subr.bf16.mxu0 %v3427
    %5401 = vmatpush1.bf16.msra.mxu0 %v3426
    %5402 = vmatprep.subr.bf16.mxu0 %v3431
    %5403 = vmatpush1.bf16.msra.mxu0 %v3430
    %5404 = vmatprep.subr.bf16.mxu0 %v3435
    %5405 = vmatpush1.bf16.msra.mxu0 %v3434
    %5406 = vmatprep.subr.bf16.mxu0 %v3439
    %5407 = vmatpush1.bf16.msra.mxu0 %v3438
    %5408 = vmatprep.subr.bf16.mxu0 %v3443
    %5409 = vmatpush1.bf16.msra.mxu0 %v3442
    %5410 = vmatprep.subr.bf16.mxu0 %v3447
    %5411 = vmatpush1.bf16.msra.mxu0 %v3446
    %5412 = vmatprep.subr.bf16.mxu0 %v3451
    %5413 = vmatpush1.bf16.msra.mxu0 %v3450
    %5414 = vmatprep.subr.bf16.mxu0 %v3455
    %5415 = vmatpush1.bf16.msra.mxu0 %v3454
    %5416 = vmatprep.subr.bf16.mxu0 %v3459
    %5417 = vmatpush1.bf16.msra.mxu0 %v3458
    %5418 = vmatprep.subr.bf16.mxu0 %v3463
    %5419 = vmatpush1.bf16.msra.mxu0 %v3462
    %5420 = vmatprep.subr.bf16.mxu0 %v3467
    %5421 = vmatpush1.bf16.msra.mxu0 %v3466
    %5422 = vmatprep.subr.bf16.mxu0 %v3471
    %5423 = vmatpush1.bf16.msra.mxu0 %v3470
    %5424 = vmatprep.subr.bf16.mxu0 %v3475
    %5425 = vmatpush1.bf16.msra.mxu0 %v3474
    %5426 = vmatprep.mubr.bf16.mxu0 %v171
    %5427 = vmatmul.mubr.bf16.gmra.mrb[0].mxu0 %v170
    %v5428 = vpop.f32.mrb[0].mxu0
    %v5429 = vadd.f32 %v5388, %v5428
    %v5430 = vpop.f32.mrb[0].mxu0
    %v5431 = vadd.f32 %v5390, %v5430
    %v5432 = vpop.f32.mrb[0].mxu0
    %v5433 = vpop.f32.mrb[0].mxu0
    %5434 = vdwg.mxu0
    %5435 = vmatprep.subr.bf16.mxu0 %v3479
    %5436 = vmatpush1.bf16.msra.mxu0 %v3478
    %5437 = vmatprep.subr.bf16.mxu0 %v3483
    %5438 = vmatpush1.bf16.msra.mxu0 %v3482
    %5439 = vmatprep.subr.bf16.mxu0 %v3487
    %5440 = vmatpush1.bf16.msra.mxu0 %v3486
    %5441 = vmatprep.subr.bf16.mxu0 %v3491
    %5442 = vmatpush1.bf16.msra.mxu0 %v3490
    %5443 = vmatprep.subr.bf16.mxu0 %v3495
    %5444 = vmatpush1.bf16.msra.mxu0 %v3494
    %5445 = vmatprep.subr.bf16.mxu0 %v3499
    %5446 = vmatpush1.bf16.msra.mxu0 %v3498
    %5447 = vmatprep.subr.bf16.mxu0 %v3503
    %5448 = vmatpush1.bf16.msra.mxu0 %v3502
    %5449 = vmatprep.subr.bf16.mxu0 %v3507
    %5450 = vmatpush1.bf16.msra.mxu0 %v3506
    %5451 = vmatprep.subr.bf16.mxu0 %v3511
    %5452 = vmatpush1.bf16.msra.mxu0 %v3510
    %5453 = vmatprep.subr.bf16.mxu0 %v3515
    %5454 = vmatpush1.bf16.msra.mxu0 %v3514
    %5455 = vmatprep.subr.bf16.mxu0 %v3519
    %5456 = vmatpush1.bf16.msra.mxu0 %v3518
    %5457 = vmatprep.subr.bf16.mxu0 %v3523
    %5458 = vmatpush1.bf16.msra.mxu0 %v3522
    %5459 = vmatprep.subr.bf16.mxu0 %v3527
    %5460 = vmatpush1.bf16.msra.mxu0 %v3526
    %5461 = vmatprep.subr.bf16.mxu0 %v3531
    %5462 = vmatpush1.bf16.msra.mxu0 %v3530
    %5463 = vmatprep.subr.bf16.mxu0 %v3535
    %5464 = vmatpush1.bf16.msra.mxu0 %v3534
    %5465 = vmatprep.subr.bf16.mxu0 %v3539
    %5466 = vmatpush1.bf16.msra.mxu0 %v3538
    %5467 = vmatprep.mubr.bf16.mxu0 %v173
    %5468 = vmatmul.mubr.bf16.gmra.mrb[0].mxu0 %v172
    %v5469 = vpop.f32.mrb[0].mxu0
    %v5470 = vadd.f32 %v5429, %v5469
    %v5471 = vpop.f32.mrb[0].mxu0
    %v5472 = vadd.f32 %v5431, %v5471
    %v5473 = vpop.f32.mrb[0].mxu0
    %v5474 = vpop.f32.mrb[0].mxu0
    %5475 = vdwg.mxu0
    %5476 = vmatprep.subr.bf16.mxu0 %v3543
    %5477 = vmatpush1.bf16.msra.mxu0 %v3542
    %5478 = vmatprep.subr.bf16.mxu0 %v3547
    %5479 = vmatpush1.bf16.msra.mxu0 %v3546
    %5480 = vmatprep.subr.bf16.mxu0 %v3551
    %5481 = vmatpush1.bf16.msra.mxu0 %v3550
    %5482 = vmatprep.subr.bf16.mxu0 %v3555
    %5483 = vmatpush1.bf16.msra.mxu0 %v3554
    %5484 = vmatprep.subr.bf16.mxu0 %v3559
    %5485 = vmatpush1.bf16.msra.mxu0 %v3558
    %5486 = vmatprep.subr.bf16.mxu0 %v3563
    %5487 = vmatpush1.bf16.msra.mxu0 %v3562
    %5488 = vmatprep.subr.bf16.mxu0 %v3567
    %5489 = vmatpush1.bf16.msra.mxu0 %v3566
    %5490 = vmatprep.subr.bf16.mxu0 %v3571
    %5491 = vmatpush1.bf16.msra.mxu0 %v3570
    %5492 = vmatprep.subr.bf16.mxu0 %v3575
    %5493 = vmatpush1.bf16.msra.mxu0 %v3574
    %5494 = vmatprep.subr.bf16.mxu0 %v3579
    %5495 = vmatpush1.bf16.msra.mxu0 %v3578
    %5496 = vmatprep.subr.bf16.mxu0 %v3583
    %5497 = vmatpush1.bf16.msra.mxu0 %v3582
    %5498 = vmatprep.subr.bf16.mxu0 %v3587
    %5499 = vmatpush1.bf16.msra.mxu0 %v3586
    %5500 = vmatprep.subr.bf16.mxu0 %v3591
    %5501 = vmatpush1.bf16.msra.mxu0 %v3590
    %5502 = vmatprep.subr.bf16.mxu0 %v3595
    %5503 = vmatpush1.bf16.msra.mxu0 %v3594
    %5504 = vmatprep.subr.bf16.mxu0 %v3599
    %5505 = vmatpush1.bf16.msra.mxu0 %v3598
    %5506 = vmatprep.subr.bf16.mxu0 %v3603
    %5507 = vmatpush1.bf16.msra.mxu0 %v3602
    %5508 = vmatprep.mubr.bf16.mxu0 %v175
    %5509 = vmatmul.mubr.bf16.gmra.mrb[0].mxu0 %v174
    %v5510 = vpop.f32.mrb[0].mxu0
    %v5511 = vadd.f32 %v5470, %v5510
    %v5512 = vpop.f32.mrb[0].mxu0
    %v5513 = vadd.f32 %v5472, %v5512
    %v5514 = vpop.f32.mrb[0].mxu0
    %v5515 = vpop.f32.mrb[0].mxu0
    %5516 = vdwg.mxu0
    %5517 = vmatprep.subr.bf16.mxu0 %v3607
    %5518 = vmatpush1.bf16.msra.mxu0 %v3606
    %5519 = vmatprep.subr.bf16.mxu0 %v3611
    %5520 = vmatpush1.bf16.msra.mxu0 %v3610
    %5521 = vmatprep.subr.bf16.mxu0 %v3615
    %5522 = vmatpush1.bf16.msra.mxu0 %v3614
    %5523 = vmatprep.subr.bf16.mxu0 %v3619
    %5524 = vmatpush1.bf16.msra.mxu0 %v3618
    %5525 = vmatprep.subr.bf16.mxu0 %v3623
    %5526 = vmatpush1.bf16.msra.mxu0 %v3622
    %5527 = vmatprep.subr.bf16.mxu0 %v3627
    %5528 = vmatpush1.bf16.msra.mxu0 %v3626
    %5529 = vmatprep.subr.bf16.mxu0 %v3631
    %5530 = vmatpush1.bf16.msra.mxu0 %v3630
    %5531 = vmatprep.subr.bf16.mxu0 %v3635
    %5532 = vmatpush1.bf16.msra.mxu0 %v3634
    %5533 = vmatprep.subr.bf16.mxu0 %v3639
    %5534 = vmatpush1.bf16.msra.mxu0 %v3638
    %5535 = vmatprep.subr.bf16.mxu0 %v3643
    %5536 = vmatpush1.bf16.msra.mxu0 %v3642
    %5537 = vmatprep.subr.bf16.mxu0 %v3647
    %5538 = vmatpush1.bf16.msra.mxu0 %v3646
    %5539 = vmatprep.subr.bf16.mxu0 %v3651
    %5540 = vmatpush1.bf16.msra.mxu0 %v3650
    %5541 = vmatprep.subr.bf16.mxu0 %v3655
    %5542 = vmatpush1.bf16.msra.mxu0 %v3654
    %5543 = vmatprep.subr.bf16.mxu0 %v3659
    %5544 = vmatpush1.bf16.msra.mxu0 %v3658
    %5545 = vmatprep.subr.bf16.mxu0 %v3663
    %5546 = vmatpush1.bf16.msra.mxu0 %v3662
    %5547 = vmatprep.subr.bf16.mxu0 %v3667
    %5548 = vmatpush1.bf16.msra.mxu0 %v3666
    %5549 = vmatprep.mubr.bf16.mxu0 %v177
    %5550 = vmatmul.mubr.bf16.gmra.mrb[0].mxu0 %v176
    %v5551 = vpop.f32.mrb[0].mxu0
    %v5552 = vadd.f32 %v5511, %v5551
    %v5553 = vpop.f32.mrb[0].mxu0
    %v5554 = vadd.f32 %v5513, %v5553
    %v5555 = vpop.f32.mrb[0].mxu0
    %v5556 = vpop.f32.mrb[0].mxu0
    %5557 = vdwg.mxu0
    %5558 = vmatprep.subr.bf16.mxu0 %v3671
    %5559 = vmatpush1.bf16.msra.mxu0 %v3670
    %5560 = vmatprep.subr.bf16.mxu0 %v3675
    %5561 = vmatpush1.bf16.msra.mxu0 %v3674
    %5562 = vmatprep.subr.bf16.mxu0 %v3679
    %5563 = vmatpush1.bf16.msra.mxu0 %v3678
    %5564 = vmatprep.subr.bf16.mxu0 %v3683
    %5565 = vmatpush1.bf16.msra.mxu0 %v3682
    %5566 = vmatprep.subr.bf16.mxu0 %v3687
    %5567 = vmatpush1.bf16.msra.mxu0 %v3686
    %5568 = vmatprep.subr.bf16.mxu0 %v3691
    %5569 = vmatpush1.bf16.msra.mxu0 %v3690
    %5570 = vmatprep.subr.bf16.mxu0 %v3695
    %5571 = vmatpush1.bf16.msra.mxu0 %v3694
    %5572 = vmatprep.subr.bf16.mxu0 %v3699
    %5573 = vmatpush1.bf16.msra.mxu0 %v3698
    %5574 = vmatprep.subr.bf16.mxu0 %v3703
    %5575 = vmatpush1.bf16.msra.mxu0 %v3702
    %5576 = vmatprep.subr.bf16.mxu0 %v3707
    %5577 = vmatpush1.bf16.msra.mxu0 %v3706
    %5578 = vmatprep.subr.bf16.mxu0 %v3711
    %5579 = vmatpush1.bf16.msra.mxu0 %v3710
    %5580 = vmatprep.subr.bf16.mxu0 %v3715
    %5581 = vmatpush1.bf16.msra.mxu0 %v3714
    %5582 = vmatprep.subr.bf16.mxu0 %v3719
    %5583 = vmatpush1.bf16.msra.mxu0 %v3718
    %5584 = vmatprep.subr.bf16.mxu0 %v3723
    %5585 = vmatpush1.bf16.msra.mxu0 %v3722
    %5586 = vmatprep.subr.bf16.mxu0 %v3727
    %5587 = vmatpush1.bf16.msra.mxu0 %v3726
    %5588 = vmatprep.subr.bf16.mxu0 %v3731
    %5589 = vmatpush1.bf16.msra.mxu0 %v3730
    %5590 = vmatprep.mubr.bf16.mxu0 %v179
    %5591 = vmatmul.mubr.bf16.gmra.mrb[0].mxu0 %v178
    %v5592 = vpop.f32.mrb[0].mxu0
    %v5593 = vadd.f32 %v5552, %v5592
    %v5594 = vpop.f32.mrb[0].mxu0
    %v5595 = vadd.f32 %v5554, %v5594
    %v5596 = vpop.f32.mrb[0].mxu0
    %v5597 = vpop.f32.mrb[0].mxu0
    %5598 = vdwg.mxu0
    %5599 = vmatprep.subr.bf16.mxu0 %v3735
    %5600 = vmatpush1.bf16.msra.mxu0 %v3734
    %5601 = vmatprep.subr.bf16.mxu0 %v3739
    %5602 = vmatpush1.bf16.msra.mxu0 %v3738
    %5603 = vmatprep.subr.bf16.mxu0 %v3743
    %5604 = vmatpush1.bf16.msra.mxu0 %v3742
    %5605 = vmatprep.subr.bf16.mxu0 %v3747
    %5606 = vmatpush1.bf16.msra.mxu0 %v3746
    %5607 = vmatprep.subr.bf16.mxu0 %v3751
    %5608 = vmatpush1.bf16.msra.mxu0 %v3750
    %5609 = vmatprep.subr.bf16.mxu0 %v3755
    %5610 = vmatpush1.bf16.msra.mxu0 %v3754
    %5611 = vmatprep.subr.bf16.mxu0 %v3759
    %5612 = vmatpush1.bf16.msra.mxu0 %v3758
    %5613 = vmatprep.subr.bf16.mxu0 %v3763
    %5614 = vmatpush1.bf16.msra.mxu0 %v3762
    %5615 = vmatprep.subr.bf16.mxu0 %v3767
    %5616 = vmatpush1.bf16.msra.mxu0 %v3766
    %5617 = vmatprep.subr.bf16.mxu0 %v3771
    %5618 = vmatpush1.bf16.msra.mxu0 %v3770
    %5619 = vmatprep.subr.bf16.mxu0 %v3775
    %5620 = vmatpush1.bf16.msra.mxu0 %v3774
    %5621 = vmatprep.subr.bf16.mxu0 %v3779
    %5622 = vmatpush1.bf16.msra.mxu0 %v3778
    %5623 = vmatprep.subr.bf16.mxu0 %v3783
    %5624 = vmatpush1.bf16.msra.mxu0 %v3782
    %5625 = vmatprep.subr.bf16.mxu0 %v3787
    %5626 = vmatpush1.bf16.msra.mxu0 %v3786
    %5627 = vmatprep.subr.bf16.mxu0 %v3791
    %5628 = vmatpush1.bf16.msra.mxu0 %v3790
    %5629 = vmatprep.subr.bf16.mxu0 %v3795
    %5630 = vmatpush1.bf16.msra.mxu0 %v3794
    %5631 = vmatprep.mubr.bf16.mxu0 %v181
    %5632 = vmatmul.mubr.bf16.gmra.mrb[0].mxu0 %v180
    %v5633 = vpop.f32.mrb[0].mxu0
    %v5634 = vadd.f32 %v5593, %v5633
    %v5635 = vpop.f32.mrb[0].mxu0
    %v5636 = vadd.f32 %v5595, %v5635
    %v5637 = vpop.f32.mrb[0].mxu0
    %v5638 = vpop.f32.mrb[0].mxu0
    %5639 = vdwg.mxu0
    %5640 = vmatprep.subr.bf16.mxu0 %v3799
    %5641 = vmatpush1.bf16.msra.mxu0 %v3798
    %5642 = vmatprep.subr.bf16.mxu0 %v3803
    %5643 = vmatpush1.bf16.msra.mxu0 %v3802
    %5644 = vmatprep.subr.bf16.mxu0 %v3807
    %5645 = vmatpush1.bf16.msra.mxu0 %v3806
    %5646 = vmatprep.subr.bf16.mxu0 %v3811
    %5647 = vmatpush1.bf16.msra.mxu0 %v3810
    %5648 = vmatprep.subr.bf16.mxu0 %v3815
    %5649 = vmatpush1.bf16.msra.mxu0 %v3814
    %5650 = vmatprep.subr.bf16.mxu0 %v3819
    %5651 = vmatpush1.bf16.msra.mxu0 %v3818
    %5652 = vmatprep.subr.bf16.mxu0 %v3823
    %5653 = vmatpush1.bf16.msra.mxu0 %v3822
    %5654 = vmatprep.subr.bf16.mxu0 %v3827
    %5655 = vmatpush1.bf16.msra.mxu0 %v3826
    %5656 = vmatprep.subr.bf16.mxu0 %v3831
    %5657 = vmatpush1.bf16.msra.mxu0 %v3830
    %5658 = vmatprep.subr.bf16.mxu0 %v3835
    %5659 = vmatpush1.bf16.msra.mxu0 %v3834
    %5660 = vmatprep.subr.bf16.mxu0 %v3839
    %5661 = vmatpush1.bf16.msra.mxu0 %v3838
    %5662 = vmatprep.subr.bf16.mxu0 %v3843
    %5663 = vmatpush1.bf16.msra.mxu0 %v3842
    %5664 = vmatprep.subr.bf16.mxu0 %v3847
    %5665 = vmatpush1.bf16.msra.mxu0 %v3846
    %5666 = vmatprep.subr.bf16.mxu0 %v3851
    %5667 = vmatpush1.bf16.msra.mxu0 %v3850
    %5668 = vmatprep.subr.bf16.mxu0 %v3855
    %5669 = vmatpush1.bf16.msra.mxu0 %v3854
    %5670 = vmatprep.subr.bf16.mxu0 %v3859
    %5671 = vmatpush1.bf16.msra.mxu0 %v3858
    %5672 = vmatprep.mubr.bf16.mxu0 %v183
    %5673 = vmatmul.mubr.bf16.gmra.mrb[0].mxu0 %v182
    %v5674 = vpop.f32.mrb[0].mxu0
    %v5675 = vadd.f32 %v5634, %v5674
    %v5676 = vpop.f32.mrb[0].mxu0
    %v5677 = vadd.f32 %v5636, %v5676
    %v5678 = vpop.f32.mrb[0].mxu0
    %v5679 = vpop.f32.mrb[0].mxu0
    %5680 = vdwg.mxu0
    %5681 = vmatprep.subr.bf16.mxu0 %v3863
    %5682 = vmatpush1.bf16.msra.mxu0 %v3862
    %5683 = vmatprep.subr.bf16.mxu0 %v3867
    %5684 = vmatpush1.bf16.msra.mxu0 %v3866
    %5685 = vmatprep.subr.bf16.mxu0 %v3871
    %5686 = vmatpush1.bf16.msra.mxu0 %v3870
    %5687 = vmatprep.subr.bf16.mxu0 %v3875
    %5688 = vmatpush1.bf16.msra.mxu0 %v3874
    %5689 = vmatprep.subr.bf16.mxu0 %v3879
    %5690 = vmatpush1.bf16.msra.mxu0 %v3878
    %5691 = vmatprep.subr.bf16.mxu0 %v3883
    %5692 = vmatpush1.bf16.msra.mxu0 %v3882
    %5693 = vmatprep.subr.bf16.mxu0 %v3887
    %5694 = vmatpush1.bf16.msra.mxu0 %v3886
    %5695 = vmatprep.subr.bf16.mxu0 %v3891
    %5696 = vmatpush1.bf16.msra.mxu0 %v3890
    %5697 = vmatprep.subr.bf16.mxu0 %v3895
    %5698 = vmatpush1.bf16.msra.mxu0 %v3894
    %5699 = vmatprep.subr.bf16.mxu0 %v3899
    %5700 = vmatpush1.bf16.msra.mxu0 %v3898
    %5701 = vmatprep.subr.bf16.mxu0 %v3903
    %5702 = vmatpush1.bf16.msra.mxu0 %v3902
    %5703 = vmatprep.subr.bf16.mxu0 %v3907
    %5704 = vmatpush1.bf16.msra.mxu0 %v3906
    %5705 = vmatprep.subr.bf16.mxu0 %v3911
    %5706 = vmatpush1.bf16.msra.mxu0 %v3910
    %5707 = vmatprep.subr.bf16.mxu0 %v3915
    %5708 = vmatpush1.bf16.msra.mxu0 %v3914
    %5709 = vmatprep.subr.bf16.mxu0 %v3919
    %5710 = vmatpush1.bf16.msra.mxu0 %v3918
    %5711 = vmatprep.subr.bf16.mxu0 %v3923
    %5712 = vmatpush1.bf16.msra.mxu0 %v3922
    %5713 = vmatprep.mubr.bf16.mxu0 %v185
    %5714 = vmatmul.mubr.bf16.gmra.mrb[0].mxu0 %v184
    %v5715 = vpop.f32.mrb[0].mxu0
    %v5716 = vadd.f32 %v5675, %v5715
    %v5717 = vpop.f32.mrb[0].mxu0
    %v5718 = vadd.f32 %v5677, %v5717
    %v5719 = vpop.f32.mrb[0].mxu0
    %v5720 = vpop.f32.mrb[0].mxu0
    %5721 = vdwg.mxu0
    %5722 = vmatprep.subr.bf16.mxu0 %v3927
    %5723 = vmatpush1.bf16.msra.mxu0 %v3926
    %5724 = vmatprep.subr.bf16.mxu0 %v3931
    %5725 = vmatpush1.bf16.msra.mxu0 %v3930
    %5726 = vmatprep.subr.bf16.mxu0 %v3935
    %5727 = vmatpush1.bf16.msra.mxu0 %v3934
    %5728 = vmatprep.subr.bf16.mxu0 %v3939
    %5729 = vmatpush1.bf16.msra.mxu0 %v3938
    %5730 = vmatprep.subr.bf16.mxu0 %v3943
    %5731 = vmatpush1.bf16.msra.mxu0 %v3942
    %5732 = vmatprep.subr.bf16.mxu0 %v3947
    %5733 = vmatpush1.bf16.msra.mxu0 %v3946
    %5734 = vmatprep.subr.bf16.mxu0 %v3951
    %5735 = vmatpush1.bf16.msra.mxu0 %v3950
    %5736 = vmatprep.subr.bf16.mxu0 %v3955
    %5737 = vmatpush1.bf16.msra.mxu0 %v3954
    %5738 = vmatprep.subr.bf16.mxu0 %v3959
    %5739 = vmatpush1.bf16.msra.mxu0 %v3958
    %5740 = vmatprep.subr.bf16.mxu0 %v3963
    %5741 = vmatpush1.bf16.msra.mxu0 %v3962
    %5742 = vmatprep.subr.bf16.mxu0 %v3967
    %5743 = vmatpush1.bf16.msra.mxu0 %v3966
    %5744 = vmatprep.subr.bf16.mxu0 %v3971
    %5745 = vmatpush1.bf16.msra.mxu0 %v3970
    %5746 = vmatprep.subr.bf16.mxu0 %v3975
    %5747 = vmatpush1.bf16.msra.mxu0 %v3974
    %5748 = vmatprep.subr.bf16.mxu0 %v3979
    %5749 = vmatpush1.bf16.msra.mxu0 %v3978
    %5750 = vmatprep.subr.bf16.mxu0 %v3983
    %5751 = vmatpush1.bf16.msra.mxu0 %v3982
    %5752 = vmatprep.subr.bf16.mxu0 %v3987
    %5753 = vmatpush1.bf16.msra.mxu0 %v3986
    %5754 = vmatprep.mubr.bf16.mxu0 %v187
    %5755 = vmatmul.mubr.bf16.gmra.mrb[0].mxu0 %v186
    %v5756 = vpop.f32.mrb[0].mxu0
    %v5757 = vadd.f32 %v5716, %v5756
    %v5758 = vpop.f32.mrb[0].mxu0
    %v5759 = vadd.f32 %v5718, %v5758
    %v5760 = vpop.f32.mrb[0].mxu0
    %v5761 = vpop.f32.mrb[0].mxu0
    %5762 = vdwg.mxu0
    %5763 = vmatprep.subr.bf16.mxu0 %v3991
    %5764 = vmatpush1.bf16.msra.mxu0 %v3990
    %5765 = vmatprep.subr.bf16.mxu0 %v3995
    %5766 = vmatpush1.bf16.msra.mxu0 %v3994
    %5767 = vmatprep.subr.bf16.mxu0 %v3999
    %5768 = vmatpush1.bf16.msra.mxu0 %v3998
    %5769 = vmatprep.subr.bf16.mxu0 %v4003
    %5770 = vmatpush1.bf16.msra.mxu0 %v4002
    %5771 = vmatprep.subr.bf16.mxu0 %v4007
    %5772 = vmatpush1.bf16.msra.mxu0 %v4006
    %5773 = vmatprep.subr.bf16.mxu0 %v4011
    %5774 = vmatpush1.bf16.msra.mxu0 %v4010
    %5775 = vmatprep.subr.bf16.mxu0 %v4015
    %5776 = vmatpush1.bf16.msra.mxu0 %v4014
    %5777 = vmatprep.subr.bf16.mxu0 %v4019
    %5778 = vmatpush1.bf16.msra.mxu0 %v4018
    %5779 = vmatprep.subr.bf16.mxu0 %v4023
    %5780 = vmatpush1.bf16.msra.mxu0 %v4022
    %5781 = vmatprep.subr.bf16.mxu0 %v4027
    %5782 = vmatpush1.bf16.msra.mxu0 %v4026
    %5783 = vmatprep.subr.bf16.mxu0 %v4031
    %5784 = vmatpush1.bf16.msra.mxu0 %v4030
    %5785 = vmatprep.subr.bf16.mxu0 %v4035
    %5786 = vmatpush1.bf16.msra.mxu0 %v4034
    %5787 = vmatprep.subr.bf16.mxu0 %v4039
    %5788 = vmatpush1.bf16.msra.mxu0 %v4038
    %5789 = vmatprep.subr.bf16.mxu0 %v4043
    %5790 = vmatpush1.bf16.msra.mxu0 %v4042
    %5791 = vmatprep.subr.bf16.mxu0 %v4047
    %5792 = vmatpush1.bf16.msra.mxu0 %v4046
    %5793 = vmatprep.subr.bf16.mxu0 %v4051
    %5794 = vmatpush1.bf16.msra.mxu0 %v4050
    %5795 = vmatprep.mubr.bf16.mxu0 %v189
    %5796 = vmatmul.mubr.bf16.gmra.mrb[0].mxu0 %v188
    %v5797 = vpop.f32.mrb[0].mxu0
    %v5798 = vadd.f32 %v5757, %v5797
    %v5799 = vpop.f32.mrb[0].mxu0
    %v5800 = vadd.f32 %v5759, %v5799
    %v5801 = vpop.f32.mrb[0].mxu0
    %v5802 = vpop.f32.mrb[0].mxu0
    %5803 = vdwg.mxu0
    %v5804 = vmax.f32 %v5306, 0.0
    %v5805 = vmax.f32 %v5308, 0.0
    %v5806 = vmax.f32 %v5798, 0.0
    %v5807 = vmax.f32 %v5800, 0.0
    %v5808 = vpack.c.bf16 %v5804, %v5804
    %v5809 = vpack.c.bf16 %v5805, %v5805
    %v5810 = vpack.c.bf16 %v5806, %v5806
    %v5811 = vpack.c.bf16 %v5807, %v5807
    %v5812 = vld [vmem:[%s3] sm:$0xf]
    %v5813 = vld [vmem:[%s3 + $0x4] sm:$0xf]
    %v5814 = vld [vmem:[%s3 + $0x8] sm:$0xf]
    %v5815 = vld [vmem:[%s3 + $0xc] sm:$0xf]
    %v5816 = vld [vmem:[%s3 + $0x10] sm:$0xf]
    %v5817 = vld [vmem:[%s3 + $0x14] sm:$0xf]
    %v5818 = vld [vmem:[%s3 + $0x18] sm:$0xf]
    %v5819 = vld [vmem:[%s3 + $0x1c] sm:$0xf]
    %v5820 = vld [vmem:[%s3 + $0x20] sm:$0xf]
    %v5821 = vld [vmem:[%s3 + $0x24] sm:$0xf]
    %v5822 = vld [vmem:[%s3 + $0x28] sm:$0xf]
    %v5823 = vld [vmem:[%s3 + $0x2c] sm:$0xf]
    %v5824 = vld [vmem:[%s3 + $0x30] sm:$0xf]
    %v5825 = vld [vmem:[%s3 + $0x34] sm:$0xf]
    %v5826 = vld [vmem:[%s3 + $0x38] sm:$0xf]
    %v5827 = vld [vmem:[%s3 + $0x3c] sm:$0xf]
    %v5828 = vld [vmem:[%s3 + $0x40] sm:$0xf]
    %v5829 = vld [vmem:[%s3 + $0x44] sm:$0xf]
    %v5830 = vld [vmem:[%s3 + $0x48] sm:$0xf]
    %v5831 = vld [vmem:[%s3 + $0x4c] sm:$0xf]
    %v5832 = vld [vmem:[%s3 + $0x50] sm:$0xf]
    %v5833 = vld [vmem:[%s3 + $0x54] sm:$0xf]
    %v5834 = vld [vmem:[%s3 + $0x58] sm:$0xf]
    %v5835 = vld [vmem:[%s3 + $0x5c] sm:$0xf]
    %v5836 = vld [vmem:[%s3 + $0x60] sm:$0xf]
    %v5837 = vld [vmem:[%s3 + $0x64] sm:$0xf]
    %v5838 = vld [vmem:[%s3 + $0x68] sm:$0xf]
    %v5839 = vld [vmem:[%s3 + $0x6c] sm:$0xf]
    %v5840 = vld [vmem:[%s3 + $0x70] sm:$0xf]
    %v5841 = vld [vmem:[%s3 + $0x74] sm:$0xf]
    %v5842 = vld [vmem:[%s3 + $0x78] sm:$0xf]
    %v5843 = vld [vmem:[%s3 + $0x7c] sm:$0xf]
    %v5844 = vld [vmem:[%s3 + $0x80] sm:$0xf]
    %v5845 = vld [vmem:[%s3 + $0x84] sm:$0xf]
    %v5846 = vld [vmem:[%s3 + $0x88] sm:$0xf]
    %v5847 = vld [vmem:[%s3 + $0x8c] sm:$0xf]
    %v5848 = vld [vmem:[%s3 + $0x90] sm:$0xf]
    %v5849 = vld [vmem:[%s3 + $0x94] sm:$0xf]
    %v5850 = vld [vmem:[%s3 + $0x98] sm:$0xf]
    %v5851 = vld [vmem:[%s3 + $0x9c] sm:$0xf]
    %v5852 = vld [vmem:[%s3 + $0xa0] sm:$0xf]
    %v5853 = vld [vmem:[%s3 + $0xa4] sm:$0xf]
    %v5854 = vld [vmem:[%s3 + $0xa8] sm:$0xf]
    %v5855 = vld [vmem:[%s3 + $0xac] sm:$0xf]
    %v5856 = vld [vmem:[%s3 + $0xb0] sm:$0xf]
    %v5857 = vld [vmem:[%s3 + $0xb4] sm:$0xf]
    %v5858 = vld [vmem:[%s3 + $0xb8] sm:$0xf]
    %v5859 = vld [vmem:[%s3 + $0xbc] sm:$0xf]
    %v5860 = vld [vmem:[%s3 + $0xc0] sm:$0xf]
    %v5861 = vld [vmem:[%s3 + $0xc4] sm:$0xf]
    %v5862 = vld [vmem:[%s3 + $0xc8] sm:$0xf]
    %v5863 = vld [vmem:[%s3 + $0xcc] sm:$0xf]
    %v5864 = vld [vmem:[%s3 + $0xd0] sm:$0xf]
    %v5865 = vld [vmem:[%s3 + $0xd4] sm:$0xf]
    %v5866 = vld [vmem:[%s3 + $0xd8] sm:$0xf]
    %v5867 = vld [vmem:[%s3 + $0xdc] sm:$0xf]
    %v5868 = vld [vmem:[%s3 + $0xe0] sm:$0xf]
    %v5869 = vld [vmem:[%s3 + $0xe4] sm:$0xf]
    %v5870 = vld [vmem:[%s3 + $0xe8] sm:$0xf]
    %v5871 = vld [vmem:[%s3 + $0xec] sm:$0xf]
    %v5872 = vld [vmem:[%s3 + $0xf0] sm:$0xf]
    %v5873 = vld [vmem:[%s3 + $0xf4] sm:$0xf]
    %v5874 = vld [vmem:[%s3 + $0xf8] sm:$0xf]
    %v5875 = vld [vmem:[%s3 + $0xfc] sm:$0xf]
    %v5876 = vld [vmem:[%s4] sm:$0x1]
    %v5878 = vlaneseq
    %v5879 = vshrl.u32 %v5878, 7
    %v5880 = vsub.s32 0, %v5879
    %v5881 = vrot.slane %v5876, %v5880
    %v5947 = vunpack.c.l.b16 %v5812
    %v5948 = vunpack.c.l.b16 %v5813
    %v5949 = vunpack.c.l.b16 %v5814
    %v5950 = vunpack.c.l.b16 %v5815
    %v5951 = vunpack.c.l.b16 %v5816
    %v5952 = vunpack.c.l.b16 %v5817
    %v5953 = vunpack.c.l.b16 %v5818
    %v5954 = vunpack.c.l.b16 %v5819
    %v5955 = vunpack.c.l.b16 %v5820
    %v5956 = vunpack.c.l.b16 %v5821
    %v5957 = vunpack.c.l.b16 %v5822
    %v5958 = vunpack.c.l.b16 %v5823
    %v5959 = vunpack.c.l.b16 %v5824
    %v5960 = vunpack.c.l.b16 %v5825
    %v5961 = vunpack.c.l.b16 %v5826
    %v5962 = vunpack.c.l.b16 %v5827
    %v5963 = vunpack.c.l.b16 %v5828
    %v5964 = vunpack.c.l.b16 %v5829
    %v5965 = vunpack.c.l.b16 %v5830
    %v5966 = vunpack.c.l.b16 %v5831
    %v5967 = vunpack.c.l.b16 %v5832
    %v5968 = vunpack.c.l.b16 %v5833
    %v5969 = vunpack.c.l.b16 %v5834
    %v5970 = vunpack.c.l.b16 %v5835
    %v5971 = vunpack.c.l.b16 %v5836
    %v5972 = vunpack.c.l.b16 %v5837
    %v5973 = vunpack.c.l.b16 %v5838
    %v5974 = vunpack.c.l.b16 %v5839
    %v5975 = vunpack.c.l.b16 %v5840
    %v5976 = vunpack.c.l.b16 %v5841
    %v5977 = vunpack.c.l.b16 %v5842
    %v5978 = vunpack.c.l.b16 %v5843
    %v5979 = vunpack.c.l.b16 %v5844
    %v5980 = vunpack.c.l.b16 %v5845
    %v5981 = vunpack.c.l.b16 %v5846
    %v5982 = vunpack.c.l.b16 %v5847
    %v5983 = vunpack.c.l.b16 %v5848
    %v5984 = vunpack.c.l.b16 %v5849
    %v5985 = vunpack.c.l.b16 %v5850
    %v5986 = vunpack.c.l.b16 %v5851
    %v5987 = vunpack.c.l.b16 %v5852
    %v5988 = vunpack.c.l.b16 %v5853
    %v5989 = vunpack.c.l.b16 %v5854
    %v5990 = vunpack.c.l.b16 %v5855
    %v5991 = vunpack.c.l.b16 %v5856
    %v5992 = vunpack.c.l.b16 %v5857
    %v5993 = vunpack.c.l.b16 %v5858
    %v5994 = vunpack.c.l.b16 %v5859
    %v5995 = vunpack.c.l.b16 %v5860
    %v5996 = vunpack.c.l.b16 %v5861
    %v5997 = vunpack.c.l.b16 %v5862
    %v5998 = vunpack.c.l.b16 %v5863
    %v5999 = vunpack.c.l.b16 %v5864
    %v6000 = vunpack.c.l.b16 %v5865
    %v6001 = vunpack.c.l.b16 %v5866
    %v6002 = vunpack.c.l.b16 %v5867
    %v6003 = vunpack.c.l.b16 %v5868
    %v6004 = vunpack.c.l.b16 %v5869
    %v6005 = vunpack.c.l.b16 %v5870
    %v6006 = vunpack.c.l.b16 %v5871
    %v6007 = vunpack.c.l.b16 %v5872
    %v6008 = vunpack.c.l.b16 %v5873
    %v6009 = vunpack.c.l.b16 %v5874
    %v6010 = vunpack.c.l.b16 %v5875
    %v6011 = vpack.c.b16 %v5948, %v5947
    %v6012 = vpack.c.b16 %v5950, %v5949
    %v6013 = vpack.c.b16 %v5952, %v5951
    %v6014 = vpack.c.b16 %v5954, %v5953
    %v6015 = vpack.c.b16 %v5956, %v5955
    %v6016 = vpack.c.b16 %v5958, %v5957
    %v6017 = vpack.c.b16 %v5960, %v5959
    %v6018 = vpack.c.b16 %v5962, %v5961
    %v6019 = vpack.c.b16 %v5964, %v5963
    %v6020 = vpack.c.b16 %v5966, %v5965
    %v6021 = vpack.c.b16 %v5968, %v5967
    %v6022 = vpack.c.b16 %v5970, %v5969
    %v6023 = vpack.c.b16 %v5972, %v5971
    %v6024 = vpack.c.b16 %v5974, %v5973
    %v6025 = vpack.c.b16 %v5976, %v5975
    %v6026 = vpack.c.b16 %v5978, %v5977
    %v6027 = vpack.c.b16 %v5980, %v5979
    %v6028 = vpack.c.b16 %v5982, %v5981
    %v6029 = vpack.c.b16 %v5984, %v5983
    %v6030 = vpack.c.b16 %v5986, %v5985
    %v6031 = vpack.c.b16 %v5988, %v5987
    %v6032 = vpack.c.b16 %v5990, %v5989
    %v6033 = vpack.c.b16 %v5992, %v5991
    %v6034 = vpack.c.b16 %v5994, %v5993
    %v6035 = vpack.c.b16 %v5996, %v5995
    %v6036 = vpack.c.b16 %v5998, %v5997
    %v6037 = vpack.c.b16 %v6000, %v5999
    %v6038 = vpack.c.b16 %v6002, %v6001
    %v6039 = vpack.c.b16 %v6004, %v6003
    %v6040 = vpack.c.b16 %v6006, %v6005
    %v6041 = vpack.c.b16 %v6008, %v6007
    %v6042 = vpack.c.b16 %v6010, %v6009
    %6075 = vmatprep.subr.bf16.mxu0 0
    %6076 = vmatpush1.bf16.msra.mxu0 %v6011
    %6077 = vmatprep.subr.bf16.mxu0 0
    %6078 = vmatpush1.bf16.msra.mxu0 %v6012
    %6079 = vmatprep.subr.bf16.mxu0 0
    %6080 = vmatpush1.bf16.msra.mxu0 %v6013
    %6081 = vmatprep.subr.bf16.mxu0 0
    %6082 = vmatpush1.bf16.msra.mxu0 %v6014
    %6083 = vmatprep.subr.bf16.mxu0 0
    %6084 = vmatpush1.bf16.msra.mxu0 %v6015
    %6085 = vmatprep.subr.bf16.mxu0 0
    %6086 = vmatpush1.bf16.msra.mxu0 %v6016
    %6087 = vmatprep.subr.bf16.mxu0 0
    %6088 = vmatpush1.bf16.msra.mxu0 %v6017
    %6089 = vmatprep.subr.bf16.mxu0 0
    %6090 = vmatpush1.bf16.msra.mxu0 %v6018
    %6091 = vmatprep.subr.bf16.mxu0 0
    %6092 = vmatpush1.bf16.msra.mxu0 %v6019
    %6093 = vmatprep.subr.bf16.mxu0 0
    %6094 = vmatpush1.bf16.msra.mxu0 %v6020
    %6095 = vmatprep.subr.bf16.mxu0 0
    %6096 = vmatpush1.bf16.msra.mxu0 %v6021
    %6097 = vmatprep.subr.bf16.mxu0 0
    %6098 = vmatpush1.bf16.msra.mxu0 %v6022
    %6099 = vmatprep.subr.bf16.mxu0 0
    %6100 = vmatpush1.bf16.msra.mxu0 %v6023
    %6101 = vmatprep.subr.bf16.mxu0 0
    %6102 = vmatpush1.bf16.msra.mxu0 %v6024
    %6103 = vmatprep.subr.bf16.mxu0 0
    %6104 = vmatpush1.bf16.msra.mxu0 %v6025
    %6105 = vmatprep.subr.bf16.mxu0 0
    %6106 = vmatpush1.bf16.msra.mxu0 %v6026
    %6107 = vmatprep.mubr.bf16.mxu0 %v5809
    %6108 = vmatmul.mubr.bf16.gmra.mrb[0].mxu0 %v5808
    %v6109 = vpop.f32.mrb[0].mxu0
    %v6110 = vadd.f32 %v5881, %v6109
    %v6111 = vpop.f32.mrb[0].mxu0
    %v6112 = vpop.f32.mrb[0].mxu0
    %v6113 = vpop.f32.mrb[0].mxu0
    %6114 = vdwg.mxu0
    %6115 = vmatprep.subr.bf16.mxu0 0
    %6116 = vmatpush1.bf16.msra.mxu0 %v6027
    %6117 = vmatprep.subr.bf16.mxu0 0
    %6118 = vmatpush1.bf16.msra.mxu0 %v6028
    %6119 = vmatprep.subr.bf16.mxu0 0
    %6120 = vmatpush1.bf16.msra.mxu0 %v6029
    %6121 = vmatprep.subr.bf16.mxu0 0
    %6122 = vmatpush1.bf16.msra.mxu0 %v6030
    %6123 = vmatprep.subr.bf16.mxu0 0
    %6124 = vmatpush1.bf16.msra.mxu0 %v6031
    %6125 = vmatprep.subr.bf16.mxu0 0
    %6126 = vmatpush1.bf16.msra.mxu0 %v6032
    %6127 = vmatprep.subr.bf16.mxu0 0
    %6128 = vmatpush1.bf16.msra.mxu0 %v6033
    %6129 = vmatprep.subr.bf16.mxu0 0
    %6130 = vmatpush1.bf16.msra.mxu0 %v6034
    %6131 = vmatprep.subr.bf16.mxu0 0
    %6132 = vmatpush1.bf16.msra.mxu0 %v6035
    %6133 = vmatprep.subr.bf16.mxu0 0
    %6134 = vmatpush1.bf16.msra.mxu0 %v6036
    %6135 = vmatprep.subr.bf16.mxu0 0
    %6136 = vmatpush1.bf16.msra.mxu0 %v6037
    %6137 = vmatprep.subr.bf16.mxu0 0
    %6138 = vmatpush1.bf16.msra.mxu0 %v6038
    %6139 = vmatprep.subr.bf16.mxu0 0
    %6140 = vmatpush1.bf16.msra.mxu0 %v6039
    %6141 = vmatprep.subr.bf16.mxu0 0
    %6142 = vmatpush1.bf16.msra.mxu0 %v6040
    %6143 = vmatprep.subr.bf16.mxu0 0
    %6144 = vmatpush1.bf16.msra.mxu0 %v6041
    %6145 = vmatprep.subr.bf16.mxu0 0
    %6146 = vmatpush1.bf16.msra.mxu0 %v6042
    %6147 = vmatprep.mubr.bf16.mxu0 %v5811
    %6148 = vmatmul.mubr.bf16.gmra.mrb[0].mxu0 %v5810
    %v6149 = vpop.f32.mrb[0].mxu0
    %v6150 = vadd.f32 %v6110, %v6149
    %v6151 = vpop.f32.mrb[0].mxu0
    %v6152 = vpop.f32.mrb[0].mxu0
    %v6153 = vpop.f32.mrb[0].mxu0
    %6154 = vdwg.mxu0
    %v6155 = vmax.f32 %v6150, 0.0
    %v6156 = vpack.c.bf16 %v6155, %v6155
    %v6157 = vld [vmem:[%s5] sm:$0xf]
    %v6158 = vld [vmem:[%s5 + $0x4] sm:$0xf]
    %v6159 = vld [vmem:[%s5 + $0x8] sm:$0xf]
    %v6160 = vld [vmem:[%s5 + $0xc] sm:$0xf]
    %v6161 = vld [vmem:[%s5 + $0x10] sm:$0xf]
    %v6162 = vld [vmem:[%s5 + $0x14] sm:$0xf]
    %v6163 = vld [vmem:[%s5 + $0x18] sm:$0xf]
    %v6164 = vld [vmem:[%s5 + $0x1c] sm:$0xf]
    %v6165 = vld [vmem:[%s5 + $0x20] sm:$0xf]
    %v6166 = vld [vmem:[%s5 + $0x24] sm:$0xf]
    %v6167 = vld [vmem:[%s5 + $0x28] sm:$0xf]
    %v6168 = vld [vmem:[%s5 + $0x2c] sm:$0xf]
    %v6169 = vld [vmem:[%s5 + $0x30] sm:$0xf]
    %v6170 = vld [vmem:[%s5 + $0x34] sm:$0xf]
    %v6171 = vld [vmem:[%s5 + $0x38] sm:$0xf]
    %v6172 = vld [vmem:[%s5 + $0x3c] sm:$0xf]
    %v6173 = vld [vmem:[%s6] sm:$0x1]
    %v6175 = vlaneseq
    %v6176 = vshrl.u32 %v6175, 7
    %v6177 = vsub.s32 0, %v6176
    %v6178 = vrot.slane %v6173, %v6177
    %v6196 = vunpack.c.l.b16 %v6157
    %v6197 = vunpack.c.l.b16 %v6158
    %v6198 = vunpack.c.l.b16 %v6159
    %v6199 = vunpack.c.l.b16 %v6160
    %v6200 = vunpack.c.l.b16 %v6161
    %v6201 = vunpack.c.l.b16 %v6162
    %v6202 = vunpack.c.l.b16 %v6163
    %v6203 = vunpack.c.l.b16 %v6164
    %v6204 = vunpack.c.l.b16 %v6165
    %v6205 = vunpack.c.l.b16 %v6166
    %v6206 = vunpack.c.l.b16 %v6167
    %v6207 = vunpack.c.l.b16 %v6168
    %v6208 = vunpack.c.l.b16 %v6169
    %v6209 = vunpack.c.l.b16 %v6170
    %v6210 = vunpack.c.l.b16 %v6171
    %v6211 = vunpack.c.l.b16 %v6172
    %v6212 = vpack.c.b16 %v6197, %v6196
    %v6213 = vpack.c.b16 %v6199, %v6198
    %v6214 = vpack.c.b16 %v6201, %v6200
    %v6215 = vpack.c.b16 %v6203, %v6202
    %v6216 = vpack.c.b16 %v6205, %v6204
    %v6217 = vpack.c.b16 %v6207, %v6206
    %v6218 = vpack.c.b16 %v6209, %v6208
    %v6219 = vpack.c.b16 %v6211, %v6210
    %6228 = vmatprep.subr.bf16.mxu0 0
    %6229 = vmatpush1.bf16.msra.mxu0 %v6212
    %6230 = vmatprep.subr.bf16.mxu0 0
    %6231 = vmatpush1.bf16.msra.mxu0 %v6213
    %6232 = vmatprep.subr.bf16.mxu0 0
    %6233 = vmatpush1.bf16.msra.mxu0 %v6214
    %6234 = vmatprep.subr.bf16.mxu0 0
    %6235 = vmatpush1.bf16.msra.mxu0 %v6215
    %6236 = vmatprep.subr.bf16.mxu0 0
    %6237 = vmatpush1.bf16.msra.mxu0 %v6216
    %6238 = vmatprep.subr.bf16.mxu0 0
    %6239 = vmatpush1.bf16.msra.mxu0 %v6217
    %6240 = vmatprep.subr.bf16.mxu0 0
    %6241 = vmatpush1.bf16.msra.mxu0 %v6218
    %6242 = vmatprep.subr.bf16.mxu0 0
    %6243 = vmatpush1.bf16.msra.mxu0 %v6219
    %6244 = vmatprep.subr.bf16.mxu0 0
    %6245 = vmatpush1.bf16.msra.mxu0 0
    %6246 = vmatprep.subr.bf16.mxu0 0
    %6247 = vmatpush1.bf16.msra.mxu0 0
    %6248 = vmatprep.subr.bf16.mxu0 0
    %6249 = vmatpush1.bf16.msra.mxu0 0
    %6250 = vmatprep.subr.bf16.mxu0 0
    %6251 = vmatpush1.bf16.msra.mxu0 0
    %6252 = vmatprep.subr.bf16.mxu0 0
    %6253 = vmatpush1.bf16.msra.mxu0 0
    %6254 = vmatprep.subr.bf16.mxu0 0
    %6255 = vmatpush1.bf16.msra.mxu0 0
    %6256 = vmatprep.subr.bf16.mxu0 0
    %6257 = vmatpush1.bf16.msra.mxu0 0
    %6258 = vmatprep.subr.bf16.mxu0 0
    %6259 = vmatpush1.bf16.msra.mxu0 0
    %6260 = vmatprep.mubr.bf16.mxu0 0
    %6261 = vmatmul.mubr.bf16.gmra.mrb[0].mxu0 %v6156
    %v6262 = vpop.f32.mrb[0].mxu0
    %v6263 = vadd.f32 %v6178, %v6262
    %v6264 = vpop.f32.mrb[0].mxu0
    %v6265 = vpop.f32.mrb[0].mxu0
    %v6266 = vpop.f32.mrb[0].mxu0
    %6267 = vdwg.mxu0
    %vm6268 = vcmask 74752
    %v6269 = vsel %vm6268, %v6263, -inf
    %6270 = vmax.xlane.f32.xlu0 %v6269
    %v6271 = vpop.xlane.xlu0 %6270
    %v6272 = vsub.f32 %v6263, %v6271
    %v6273 = vmul.f32 %v6272, 1.442695
    %v6274 = vpow.pop %v6273
    %v6275 = vsel %vm6268, %v6274, 0.0
    %6276 = vadd.xlane.f32.xlu0 %v6275
    %v6277 = vpop.xlane.xlu0 %6276
    %v6278 = vrcp.pop %v6277
    %v6279 = vmul.f32 %v6274, %v6278
    %6280 = vst.msk [vmem:[#allocation2] sm:$0x3] %vm6268, %v6279
    // Predicated region
    $region30: #{mlp_forward.1} parent=1 // pred_check
      _
    $region31: #{mlp_forward.1} parent=1 // pred_check_branch
      %6282 = sbr.rel (0) target = $region33
    $region32: #{mlp_forward.1} parent=1 // pred_region
      %s6284 = ssub.s32 32, 32
      %6285 = vsyncadd [#allocation3], %s6284
      %s6287 = sshll.u32 [#allocation2], 4
      %s6288 = int_to_ptr.vmem [resolvable:$true] %s6287
      %6290 = dma.vmem_to_hbm [thread:$0]  %s6288, 32, %s7, [#allocation3]
    $region33: #{mlp_forward.1} parent=1 // pred_fallthru
      _
    // Predicated region
    $region34: #{mlp_forward.1} parent=1 // pred_check
      _
    $region35: #{mlp_forward.1} parent=1 // pred_check_branch
      %6292 = sbr.rel (0) target = $region37
    $region36: #{mlp_forward.1} parent=1 // pred_region
      %6293 = dma.done [#allocation3], 32
    $region37: #{mlp_forward.1} parent=1 // pred_fallthru
      _
    %6294 = vsyncpa [#allocation3], 1

</llo_original>
